<compile_context>
chip_gen: v7x
topology: tpu7x:2x2x1
jax: 0.10.0
libtpu: 0.0.40
codegen_flags: <defaults>
</compile_context>

<pallas_src>
import math
from functools import partial

import jax
import jax.numpy as jnp
from jax.experimental import pallas as pl
from jax.experimental.pallas import tpu as pltpu

LN_EPS = 1e-5
NEG_INF = -1e9
BF16 = jnp.bfloat16
F32 = jnp.float32


# ----------------------------------------------------------------------------
# in-kernel building blocks (f32 activations, bf16 MXU operands)
# ----------------------------------------------------------------------------
def _mm(a_f32, w_bf16):
    """2-D matmul: bf16 operands for native MXU rate, f32 accumulation."""
    return jnp.dot(a_f32.astype(BF16), w_bf16, preferred_element_type=F32)


def _layer_norm(z, g, b):
    mu = jnp.mean(z, axis=-1, keepdims=True)
    c = z - mu
    var = jnp.mean(c * c, axis=-1, keepdims=True)
    return c * jax.lax.rsqrt(var + LN_EPS) * g + b


def _ffn(x2, w1_t, b1, w2_t, b2):
    h = jnp.maximum(_mm(x2, w1_t) + b1, 0.0)
    return _mm(h, w2_t) + b2


def _attention(x2, mem2, B, S, Sm, wq_t, bq, wkv_t, bkv, wo_t, bo, n_heads, causal):
    """Multi-head attention. x2: (B*S, D) f32 queries, mem2: (B*Sm, D) f32 keys/values."""
    D = x2.shape[-1]
    H = n_heads
    Dh = D // H
    scale = 1.0 / math.sqrt(Dh)

    q = _mm(x2, wq_t) + bq         # (B*S, D)   f32
    kv = _mm(mem2, wkv_t) + bkv    # (B*Sm, 2D) f32  (fused k/v projection)

    qb = q.astype(BF16).reshape(B, S, D)
    kb = kv[:, :D].astype(BF16).reshape(B, Sm, D)
    vb = kv[:, D:].astype(BF16).reshape(B, Sm, D)

    if causal:
        row = jax.lax.broadcasted_iota(jnp.int32, (S, Sm), 0)
        col = jax.lax.broadcasted_iota(jnp.int32, (S, Sm), 1)
        mask = jnp.where(col <= row, 0.0, NEG_INF).astype(F32)

    ctx_heads = []
    for h in range(H):  # H is small & static; each score matmul is batched over B
        lo, hi = h * Dh, (h + 1) * Dh
        s = jnp.einsum("bqd,bkd->bqk", qb[:, :, lo:hi], kb[:, :, lo:hi],
                       preferred_element_type=F32) * scale
        if causal:
            s = s + mask
        s = s - jnp.max(s, axis=-1, keepdims=True)
        p = jnp.exp(s)
        p = p * pl.reciprocal(jnp.sum(p, axis=-1, keepdims=True), approx=True)
        ctx_heads.append(jnp.einsum("bqk,bkd->bqd", p.astype(BF16), vb[:, :, lo:hi],
                                    preferred_element_type=F32))
    ctx = jnp.concatenate(ctx_heads, axis=-1).reshape(B * S, D)
    return _mm(ctx, wo_t) + bo     # single K=D output projection


# ----------------------------------------------------------------------------
# fused per-layer Pallas kernels
# ----------------------------------------------------------------------------
def _encoder_layer_kernel(y_ref,
                          wq_ref, bq_ref, wkv_ref, bkv_ref, wo_ref, bo_ref,
                          g1_ref, c1_ref,
                          w1_ref, d1_ref, w2_ref, d2_ref,
                          g2_ref, c2_ref,
                          o_ref, *, n_heads):
    """Fused nn.TransformerEncoderLayer (post-norm, ReLU, causal self-attn)."""
    B, S, D = y_ref.shape
    y2 = y_ref[...].reshape(B * S, D)

    attn = _attention(y2, y2, B, S, S,
                      wq_ref[...], bq_ref[...], wkv_ref[...], bkv_ref[...],
                      wo_ref[...], bo_ref[...], n_heads, causal=True)
    z = _layer_norm(y2 + attn, g1_ref[...], c1_ref[...])
    f = _ffn(z, w1_ref[...], d1_ref[...], w2_ref[...], d2_ref[...])
    o_ref[...] = _layer_norm(z + f, g2_ref[...], c2_ref[...]).reshape(B, S, D)


def _decoder_layer_kernel(x_ref, m_ref,
                          swq_ref, sbq_ref, swkv_ref, sbkv_ref, swo_ref, sbo_ref,
                          g1_ref, c1_ref,
                          cwq_ref, cbq_ref, cwkv_ref, cbkv_ref, cwo_ref, cbo_ref,
                          g2_ref, c2_ref,
                          w1_ref, d1_ref, w2_ref, d2_ref,
                          g3_ref, c3_ref,
                          o_ref, *, n_heads):
    """Fused nn.TransformerDecoderLayer (post-norm, ReLU, causal self-attn, unmasked cross-attn)."""
    B, S, D = x_ref.shape
    Sm = m_ref.shape[1]
    x2 = x_ref[...].reshape(B * S, D)
    m2 = m_ref[...].reshape(B * Sm, D)

    a1 = _attention(x2, x2, B, S, S,
                    swq_ref[...], sbq_ref[...], swkv_ref[...], sbkv_ref[...],
                    swo_ref[...], sbo_ref[...], n_heads, causal=True)
    h = _layer_norm(x2 + a1, g1_ref[...], c1_ref[...])

    a2 = _attention(h, m2, B, S, Sm,
                    cwq_ref[...], cbq_ref[...], cwkv_ref[...], cbkv_ref[...],
                    cwo_ref[...], cbo_ref[...], n_heads, causal=False)
    h2 = _layer_norm(h + a2, g2_ref[...], c2_ref[...])

    f = _ffn(h2, w1_ref[...], d1_ref[...], w2_ref[...], d2_ref[...])
    o_ref[...] = _layer_norm(h2 + f, g3_ref[...], c3_ref[...]).reshape(B, S, D)


# ----------------------------------------------------------------------------
# pallas_call wrappers (grid-free: whole batch resident in VMEM, one step)
# ----------------------------------------------------------------------------
_VMEM_SPEC = pl.BlockSpec(memory_space=pltpu.MemorySpace.VMEM)
_COMPILER_PARAMS = pltpu.CompilerParams(vmem_limit_bytes=32 * 1024 * 1024)


def encoder_layer(y, lp, n_heads):
    B, S, D = y.shape
    args = (y,
            lp["sa"]["wq_t"], lp["sa"]["bq"], lp["sa"]["wkv_t"], lp["sa"]["bkv"],
            lp["sa"]["wo_t"], lp["sa"]["bo"],
            lp["ln1"]["g"], lp["ln1"]["b"],
            lp["ff"]["w1_t"], lp["ff"]["b1"], lp["ff"]["w2_t"], lp["ff"]["b2"],
            lp["ln2"]["g"], lp["ln2"]["b"])
    return pl.pallas_call(
        partial(_encoder_layer_kernel, n_heads=n_heads),
        out_shape=jax.ShapeDtypeStruct((B, S, D), jnp.float32),
        in_specs=[_VMEM_SPEC] * len(args),
        out_specs=_VMEM_SPEC,
        compiler_params=_COMPILER_PARAMS,
    )(*args)


def decoder_layer(x, mem, lp, n_heads):
    B, S, D = x.shape
    args = (x, mem,
            lp["sa"]["wq_t"], lp["sa"]["bq"], lp["sa"]["wkv_t"], lp["sa"]["bkv"],
            lp["sa"]["wo_t"], lp["sa"]["bo"],
            lp["ln1"]["g"], lp["ln1"]["b"],
            lp["ca"]["wq_t"], lp["ca"]["bq"], lp["ca"]["wkv_t"], lp["ca"]["bkv"],
            lp["ca"]["wo_t"], lp["ca"]["bo"],
            lp["ln2"]["g"], lp["ln2"]["b"],
            lp["ff"]["w1_t"], lp["ff"]["b1"], lp["ff"]["w2_t"], lp["ff"]["b2"],
            lp["ln3"]["g"], lp["ln3"]["b"])
    return pl.pallas_call(
        partial(_decoder_layer_kernel, n_heads=n_heads),
        out_shape=jax.ShapeDtypeStruct((B, S, D), jnp.float32),
        in_specs=[_VMEM_SPEC] * len(args),
        out_specs=_VMEM_SPEC,
        compiler_params=_COMPILER_PARAMS,
    )(*args)


# ----------------------------------------------------------------------------
# parameter init (PyTorch-layout) + one-time kernel-layout preparation
# ----------------------------------------------------------------------------
def _normal(key, shape, scale=0.05):
    return (jax.random.normal(key, shape, jnp.float32) * scale).astype(jnp.float32)


def make_attn_params(key, D):
    k = jax.random.split(key, 8)
    return dict(
        wq=_normal(k[0], (D, D)), wk=_normal(k[1], (D, D)), wv=_normal(k[2], (D, D)),
        bq=_normal(k[3], (1, D)), bk=_normal(k[4], (1, D)), bv=_normal(k[5], (1, D)),
        wo=_normal(k[6], (D, D)), bo=_normal(k[7], (1, D)),
    )


def make_ffn_params(key, D, F):
    k = jax.random.split(key, 4)
    return dict(w1=_normal(k[0], (F, D)), b1=_normal(k[1], (1, F)),
                w2=_normal(k[2], (D, F)), b2=_normal(k[3], (1, D)))


def make_ln_params(D):
    return dict(g=jnp.ones((1, D), jnp.float32), b=jnp.zeros((1, D), jnp.float32))


def init_params(key, n_blocks, D, F):
    enc, dec = [], []
    keys = jax.random.split(key, 3 * n_blocks)
    for i in range(n_blocks):
        k1, k2 = jax.random.split(keys[i], 2)
        enc.append(dict(sa=make_attn_params(k1, D), ln1=make_ln_params(D),
                        ff=make_ffn_params(k2, D, F), ln2=make_ln_params(D)))
    for i in range(2 * n_blocks):
        k1, k2, k3 = jax.random.split(keys[n_blocks + i], 3)
        dec.append(dict(sa=make_attn_params(k1, D), ln1=make_ln_params(D),
                        ca=make_attn_params(k2, D), ln2=make_ln_params(D),
                        ff=make_ffn_params(k3, D, F), ln3=make_ln_params(D)))
    return dict(enc=enc, dec=dec)


def _prep_attn(ap):
    """Pre-transpose to (in, out), fuse k/v, cast weights to bf16 (biases stay f32)."""
    return dict(
        wq_t=ap["wq"].T.astype(BF16),
        bq=ap["bq"],
        wkv_t=jnp.concatenate([ap["wk"].T, ap["wv"].T], axis=1).astype(BF16),
        bkv=jnp.concatenate([ap["bk"], ap["bv"]], axis=1),
        wo_t=ap["wo"].T.astype(BF16),
        bo=ap["bo"],
    )


def _prep_ffn(fp):
    return dict(w1_t=fp["w1"].T.astype(BF16), b1=fp["b1"],
                w2_t=fp["w2"].T.astype(BF16), b2=fp["b2"])


def prepare_params(params):
    enc = [dict(sa=_prep_attn(lp["sa"]), ln1=lp["ln1"],
                ff=_prep_ffn(lp["ff"]), ln2=lp["ln2"]) for lp in params["enc"]]
    dec = [dict(sa=_prep_attn(lp["sa"]), ln1=lp["ln1"],
                ca=_prep_attn(lp["ca"]), ln2=lp["ln2"],
                ff=_prep_ffn(lp["ff"]), ln3=lp["ln3"]) for lp in params["dec"]]
    return dict(enc=enc, dec=dec)


# ----------------------------------------------------------------------------
# model forward (glue in plain JAX; each layer = one fused Pallas kernel)
# ----------------------------------------------------------------------------
def transformer_block_forward(q_embed_data, qa_embed_data, prepared_params, n_heads):
    # inputs: (seq, batch, d_model) [PyTorch batch_first=False convention]
    x = jnp.transpose(q_embed_data, (1, 0, 2))   # (B, Sx, D)
    y = jnp.transpose(qa_embed_data, (1, 0, 2))  # (B, Sy, D)

    for lp in prepared_params["enc"]:            # nn.TransformerEncoderLayer, post-norm
        y = encoder_layer(y, lp, n_heads)

    flg = True
    for lp in prepared_params["dec"]:            # nn.TransformerDecoderLayer, post-norm
        mem = x if flg else y
        flg = not flg
        x = decoder_layer(x, mem, lp, n_heads)

    return jnp.transpose(x, (1, 0, 2))           # back to (seq, batch, d_model)


# ----------------------------------------------------------------------------
# pure-JAX reference (mirrors the kernel's bf16-MXU / f32-accumulate math)
# ----------------------------------------------------------------------------
def causal_mask(S):
    i = jnp.arange(S)[:, None]
    j = jnp.arange(S)[None, :]
    return jnp.where(j <= i, 0.0, NEG_INF).astype(jnp.float32)


def _ref_attn(x, mem, mask, ap, n_heads):
    B, S, D = x.shape
    H, Dh = n_heads, D // n_heads
    q = jnp.einsum("bsd,ed->bse", x.astype(BF16), ap["wq"].astype(BF16),
                   preferred_element_type=F32) + ap["bq"]
    k = jnp.einsum("bsd,ed->bse", mem.astype(BF16), ap["wk"].astype(BF16),
                   preferred_element_type=F32) + ap["bk"]
    v = jnp.einsum("bsd,ed->bse", mem.astype(BF16), ap["wv"].astype(BF16),
                   preferred_element_type=F32) + ap["bv"]
    qh = q.reshape(B, S, H, Dh).transpose(0, 2, 1, 3).astype(BF16)
    kh = k.reshape(B, -1, H, Dh).transpose(0, 2, 1, 3).astype(BF16)
    vh = v.reshape(B, -1, H, Dh).transpose(0, 2, 1, 3).astype(BF16)
    s = jnp.einsum("bhqd,bhkd->bhqk", qh, kh, preferred_element_type=F32) / math.sqrt(Dh)
    if mask is not None:
        s = s + mask
    p = jax.nn.softmax(s, axis=-1)
    ctx = jnp.einsum("bhqk,bhkd->bhqd", p.astype(BF16), vh, preferred_element_type=F32)
    ctx = ctx.transpose(0, 2, 1, 3).reshape(B, S, D)
    return jnp.einsum("bsd,ed->bse", ctx.astype(BF16), ap["wo"].astype(BF16),
                      preferred_element_type=F32) + ap["bo"]


def _ref_ffn(x, fp):
    h = jnp.einsum("bsd,fd->bsf", x.astype(BF16), fp["w1"].astype(BF16),
                   preferred_element_type=F32) + fp["b1"]
    h = jnp.maximum(h, 0.0)
    return jnp.einsum("bsf,df->bsd", h.astype(BF16), fp["w2"].astype(BF16),
                      preferred_element_type=F32) + fp["b2"]


def _ref_ln(z, lnp):
    mu = z.mean(-1, keepdims=True)
    var = ((z - mu) ** 2).mean(-1, keepdims=True)
    return (z - mu) / jnp.sqrt(var + LN_EPS) * lnp["g"] + lnp["b"]


def reference_forward(q_embed_data, qa_embed_data, params, n_heads):
    x = jnp.transpose(q_embed_data, (1, 0, 2))
    y = jnp.transpose(qa_embed_data, (1, 0, 2))
    Sx, Sy = x.shape[1], y.shape[1]
    mask_y = causal_mask(Sy)[None, None]
    for lp in params["enc"]:
        y = _ref_ln(y + _ref_attn(y, y, mask_y, lp["sa"], n_heads), lp["ln1"])
        y = _ref_ln(y + _ref_ffn(y, lp["ff"]), lp["ln2"])
    mask_x = causal_mask(Sx)[None, None]
    flg = True
    for lp in params["dec"]:
        mem = x if flg else y
        flg = not flg
        h = _ref_ln(x + _ref_attn(x, x, mask_x, lp["sa"], n_heads), lp["ln1"])
        h = _ref_ln(h + _ref_attn(h, mem, None, lp["ca"], n_heads), lp["ln2"])
        x = _ref_ln(h + _ref_ffn(h, lp["ff"]), lp["ln3"])
    return jnp.transpose(x, (1, 0, 2))


# ----------------------------------------------------------------------------
if __name__ == "__main__":
    n_blocks, d_model, d_ff, n_heads, dropout = 1, 32, 64, 4, 0.0
    S, B = 8, 2

    key = jax.random.PRNGKey(0)
    kq, kqa, kp = jax.random.split(key, 3)
    q_embed_data = jax.random.normal(kq, (S, B, d_model), jnp.float32)
    qa_embed_data = jax.random.normal(kqa, (S, B, d_model), jnp.float32)
    params = init_params(kp, n_blocks, d_model, d_ff)

    # one-time weight layout transform (transpose + k/v fusion + bf16 cast)
    prepared = prepare_params(params)

    fwd = jax.jit(partial(transformer_block_forward, n_heads=n_heads))
    out = fwd(q_embed_data, qa_embed_data, prepared)
    out = jax.block_until_ready(out)

    ref = reference_forward(q_embed_data, qa_embed_data, params, n_heads)

    assert out.shape == (S, B, d_model)
    assert bool(jnp.all(jnp.isfinite(out)))
    assert bool(jnp.allclose(out, ref, atol=1e-2, rtol=1e-2)), \
        float(jnp.max(jnp.abs(out - ref)))

    print("KERNEL_OK")
</pallas_src>

<mosaic_0001>
module attributes {stable_mosaic.version = 11 : i64} {
  func.func @_encoder_layer_kernel(%arg0: memref<2x8x32xf32, #tpu.memory_space<vmem>>, %arg1: memref<32x32xbf16, #tpu.memory_space<vmem>>, %arg2: memref<1x32xf32, #tpu.memory_space<vmem>>, %arg3: memref<32x64xbf16, #tpu.memory_space<vmem>>, %arg4: memref<1x64xf32, #tpu.memory_space<vmem>>, %arg5: memref<32x32xbf16, #tpu.memory_space<vmem>>, %arg6: memref<1x32xf32, #tpu.memory_space<vmem>>, %arg7: memref<1x32xf32, #tpu.memory_space<vmem>>, %arg8: memref<1x32xf32, #tpu.memory_space<vmem>>, %arg9: memref<32x64xbf16, #tpu.memory_space<vmem>>, %arg10: memref<1x64xf32, #tpu.memory_space<vmem>>, %arg11: memref<64x32xbf16, #tpu.memory_space<vmem>>, %arg12: memref<1x32xf32, #tpu.memory_space<vmem>>, %arg13: memref<1x32xf32, #tpu.memory_space<vmem>>, %arg14: memref<1x32xf32, #tpu.memory_space<vmem>>, %arg15: memref<2x8x32xf32, #tpu.memory_space<vmem>>) attributes {dimension_semantics = [], scalar_prefetch = 0 : i64, scratch_operands = 0 : i64, tpu.core_type = #tpu.core_type<tc>} {
    %c0 = arith.constant 0 : index
    %c0_0 = arith.constant 0 : index
    %c0_1 = arith.constant 0 : index
    %0 = vector.load %arg0[%c0, %c0_0, %c0_1] : memref<2x8x32xf32, #tpu.memory_space<vmem>>, vector<2x8x32xf32>
    %1 = vector.shape_cast %0 : vector<2x8x32xf32> to vector<16x32xf32>
    %c0_2 = arith.constant 0 : index
    %c0_3 = arith.constant 0 : index
    %2 = vector.load %arg1[%c0_2, %c0_3] : memref<32x32xbf16, #tpu.memory_space<vmem>>, vector<32x32xbf16>
    %c0_4 = arith.constant 0 : index
    %c0_5 = arith.constant 0 : index
    %3 = vector.load %arg2[%c0_4, %c0_5] : memref<1x32xf32, #tpu.memory_space<vmem>>, vector<1x32xf32>
    %c0_6 = arith.constant 0 : index
    %c0_7 = arith.constant 0 : index
    %4 = vector.load %arg3[%c0_6, %c0_7] : memref<32x64xbf16, #tpu.memory_space<vmem>>, vector<32x64xbf16>
    %c0_8 = arith.constant 0 : index
    %c0_9 = arith.constant 0 : index
    %5 = vector.load %arg4[%c0_8, %c0_9] : memref<1x64xf32, #tpu.memory_space<vmem>>, vector<1x64xf32>
    %c0_10 = arith.constant 0 : index
    %c0_11 = arith.constant 0 : index
    %6 = vector.load %arg5[%c0_10, %c0_11] : memref<32x32xbf16, #tpu.memory_space<vmem>>, vector<32x32xbf16>
    %c0_12 = arith.constant 0 : index
    %c0_13 = arith.constant 0 : index
    %7 = vector.load %arg6[%c0_12, %c0_13] : memref<1x32xf32, #tpu.memory_space<vmem>>, vector<1x32xf32>
    %8 = arith.truncf %1 : vector<16x32xf32> to vector<16x32xbf16>
    %cst = arith.constant dense<0.000000e+00> : vector<16x32xf32>
    %9 = tpu.matmul %8, %2, %cst {dimension_numbers = #tpu.dot_dimension_numbers<[1], [0], [0], [1], [0, 0, 1, 1], [], []>} : vector<16x32xbf16>, vector<32x32xbf16>, vector<16x32xf32> -> vector<16x32xf32>
    %10 = vector.broadcast %3 : vector<1x32xf32> to vector<16x32xf32>
    %11 = arith.addf %9, %10 : vector<16x32xf32>
    %12 = arith.truncf %1 : vector<16x32xf32> to vector<16x32xbf16>
    %cst_14 = arith.constant dense<0.000000e+00> : vector<16x64xf32>
    %13 = tpu.matmul %12, %4, %cst_14 {dimension_numbers = #tpu.dot_dimension_numbers<[1], [0], [0], [1], [0, 0, 1, 1], [], []>} : vector<16x32xbf16>, vector<32x64xbf16>, vector<16x64xf32> -> vector<16x64xf32>
    %14 = vector.broadcast %5 : vector<1x64xf32> to vector<16x64xf32>
    %15 = arith.addf %13, %14 : vector<16x64xf32>
    %16 = arith.truncf %11 : vector<16x32xf32> to vector<16x32xbf16>
    %17 = vector.shape_cast %16 : vector<16x32xbf16> to vector<2x8x32xbf16>
    %18 = vector.extract_strided_slice %15 {offsets = [0, 0], sizes = [16, 32], strides = [1, 1]} : vector<16x64xf32> to vector<16x32xf32>
    %19 = arith.truncf %18 : vector<16x32xf32> to vector<16x32xbf16>
    %20 = vector.shape_cast %19 : vector<16x32xbf16> to vector<2x8x32xbf16>
    %21 = vector.extract_strided_slice %15 {offsets = [0, 32], sizes = [16, 32], strides = [1, 1]} : vector<16x64xf32> to vector<16x32xf32>
    %22 = arith.truncf %21 : vector<16x32xf32> to vector<16x32xbf16>
    %23 = vector.shape_cast %22 : vector<16x32xbf16> to vector<2x8x32xbf16>
    %24 = tpu.iota {dimensions = array<i32: 0>} : vector<8x8xi32>
    %25 = tpu.iota {dimensions = array<i32: 1>} : vector<8x8xi32>
    %26 = arith.cmpi sle, %25, %24 : vector<8x8xi32>
    %cst_15 = arith.constant 0.000000e+00 : f32
    %cst_16 = arith.constant -1.000000e+09 : f32
    %27 = vector.broadcast %cst_15 : f32 to vector<8x8xf32>
    %28 = vector.broadcast %cst_16 : f32 to vector<8x8xf32>
    %29 = arith.select %26, %27, %28 : vector<8x8xi1>, vector<8x8xf32>
    %30 = vector.extract_strided_slice %17 {offsets = [0, 0, 0], sizes = [2, 8, 8], strides = [1, 1, 1]} : vector<2x8x32xbf16> to vector<2x8x8xbf16>
    %31 = vector.extract_strided_slice %20 {offsets = [0, 0, 0], sizes = [2, 8, 8], strides = [1, 1, 1]} : vector<2x8x32xbf16> to vector<2x8x8xbf16>
    "tpu.trace_start"() <{level = 10 : i32, message = "bqd,bkd->bqk"}> : () -> ()
    %cst_17 = arith.constant dense<0.000000e+00> : vector<2x8x8xf32>
    %32 = tpu.matmul %30, %31, %cst_17 {dimension_numbers = #tpu.dot_dimension_numbers<[2], [2], [1], [1], [0, 0, 0, 1, 1, 1], [0], [0]>} : vector<2x8x8xbf16>, vector<2x8x8xbf16>, vector<2x8x8xf32> -> vector<2x8x8xf32>
    "tpu.trace_stop"() : () -> ()
    %cst_18 = arith.constant 0.353553385 : f32
    %33 = vector.broadcast %cst_18 : f32 to vector<2x8x8xf32>
    %34 = arith.mulf %32, %33 : vector<2x8x8xf32>
    %35 = vector.shape_cast %29 : vector<8x8xf32> to vector<1x8x8xf32>
    %36 = vector.broadcast %35 : vector<1x8x8xf32> to vector<2x8x8xf32>
    %37 = arith.addf %34, %36 : vector<2x8x8xf32>
    %cst_19 = arith.constant dense<0xFF800000> : vector<2x8xf32>
    %38 = vector.multi_reduction <maximumf>, %37, %cst_19 [2] : vector<2x8x8xf32> to vector<2x8xf32>
    %39 = vector.shape_cast %38 : vector<2x8xf32> to vector<2x8x1xf32>
    %40 = vector.broadcast %39 : vector<2x8x1xf32> to vector<2x8x8xf32>
    %41 = arith.subf %37, %40 : vector<2x8x8xf32>
    %42 = math.exp %41 : vector<2x8x8xf32>
    %cst_20 = arith.constant dense<0.000000e+00> : vector<2x8xf32>
    %43 = vector.multi_reduction <add>, %42, %cst_20 [2] : vector<2x8x8xf32> to vector<2x8xf32>
    %44 = vector.shape_cast %43 : vector<2x8xf32> to vector<2x8x1xf32>
    %45 = tpu.reciprocal %44 {approx = true} : vector<2x8x1xf32> -> vector<2x8x1xf32>
    %46 = vector.broadcast %45 : vector<2x8x1xf32> to vector<2x8x8xf32>
    %47 = arith.mulf %42, %46 : vector<2x8x8xf32>
    %48 = arith.truncf %47 : vector<2x8x8xf32> to vector<2x8x8xbf16>
    %49 = vector.extract_strided_slice %23 {offsets = [0, 0, 0], sizes = [2, 8, 8], strides = [1, 1, 1]} : vector<2x8x32xbf16> to vector<2x8x8xbf16>
    "tpu.trace_start"() <{level = 10 : i32, message = "bqk,bkd->bqd"}> : () -> ()
    %cst_21 = arith.constant dense<0.000000e+00> : vector<2x8x8xf32>
    %50 = tpu.matmul %48, %49, %cst_21 {dimension_numbers = #tpu.dot_dimension_numbers<[2], [1], [1], [2], [0, 0, 0, 1, 1, 2], [0], [0]>} : vector<2x8x8xbf16>, vector<2x8x8xbf16>, vector<2x8x8xf32> -> vector<2x8x8xf32>
    "tpu.trace_stop"() : () -> ()
    %51 = vector.extract_strided_slice %17 {offsets = [0, 0, 8], sizes = [2, 8, 8], strides = [1, 1, 1]} : vector<2x8x32xbf16> to vector<2x8x8xbf16>
    %52 = vector.extract_strided_slice %20 {offsets = [0, 0, 8], sizes = [2, 8, 8], strides = [1, 1, 1]} : vector<2x8x32xbf16> to vector<2x8x8xbf16>
    "tpu.trace_start"() <{level = 10 : i32, message = "bqd,bkd->bqk"}> : () -> ()
    %cst_22 = arith.constant dense<0.000000e+00> : vector<2x8x8xf32>
    %53 = tpu.matmul %51, %52, %cst_22 {dimension_numbers = #tpu.dot_dimension_numbers<[2], [2], [1], [1], [0, 0, 0, 1, 1, 1], [0], [0]>} : vector<2x8x8xbf16>, vector<2x8x8xbf16>, vector<2x8x8xf32> -> vector<2x8x8xf32>
    "tpu.trace_stop"() : () -> ()
    %cst_23 = arith.constant 0.353553385 : f32
    %54 = vector.broadcast %cst_23 : f32 to vector<2x8x8xf32>
    %55 = arith.mulf %53, %54 : vector<2x8x8xf32>
    %56 = vector.shape_cast %29 : vector<8x8xf32> to vector<1x8x8xf32>
    %57 = vector.broadcast %56 : vector<1x8x8xf32> to vector<2x8x8xf32>
    %58 = arith.addf %55, %57 : vector<2x8x8xf32>
    %cst_24 = arith.constant dense<0xFF800000> : vector<2x8xf32>
    %59 = vector.multi_reduction <maximumf>, %58, %cst_24 [2] : vector<2x8x8xf32> to vector<2x8xf32>
    %60 = vector.shape_cast %59 : vector<2x8xf32> to vector<2x8x1xf32>
    %61 = vector.broadcast %60 : vector<2x8x1xf32> to vector<2x8x8xf32>
    %62 = arith.subf %58, %61 : vector<2x8x8xf32>
    %63 = math.exp %62 : vector<2x8x8xf32>
    %cst_25 = arith.constant dense<0.000000e+00> : vector<2x8xf32>
    %64 = vector.multi_reduction <add>, %63, %cst_25 [2] : vector<2x8x8xf32> to vector<2x8xf32>
    %65 = vector.shape_cast %64 : vector<2x8xf32> to vector<2x8x1xf32>
    %66 = tpu.reciprocal %65 {approx = true} : vector<2x8x1xf32> -> vector<2x8x1xf32>
    %67 = vector.broadcast %66 : vector<2x8x1xf32> to vector<2x8x8xf32>
    %68 = arith.mulf %63, %67 : vector<2x8x8xf32>
    %69 = arith.truncf %68 : vector<2x8x8xf32> to vector<2x8x8xbf16>
    %70 = vector.extract_strided_slice %23 {offsets = [0, 0, 8], sizes = [2, 8, 8], strides = [1, 1, 1]} : vector<2x8x32xbf16> to vector<2x8x8xbf16>
    "tpu.trace_start"() <{level = 10 : i32, message = "bqk,bkd->bqd"}> : () -> ()
    %cst_26 = arith.constant dense<0.000000e+00> : vector<2x8x8xf32>
    %71 = tpu.matmul %69, %70, %cst_26 {dimension_numbers = #tpu.dot_dimension_numbers<[2], [1], [1], [2], [0, 0, 0, 1, 1, 2], [0], [0]>} : vector<2x8x8xbf16>, vector<2x8x8xbf16>, vector<2x8x8xf32> -> vector<2x8x8xf32>
    "tpu.trace_stop"() : () -> ()
    %72 = vector.extract_strided_slice %17 {offsets = [0, 0, 16], sizes = [2, 8, 8], strides = [1, 1, 1]} : vector<2x8x32xbf16> to vector<2x8x8xbf16>
    %73 = vector.extract_strided_slice %20 {offsets = [0, 0, 16], sizes = [2, 8, 8], strides = [1, 1, 1]} : vector<2x8x32xbf16> to vector<2x8x8xbf16>
    "tpu.trace_start"() <{level = 10 : i32, message = "bqd,bkd->bqk"}> : () -> ()
    %cst_27 = arith.constant dense<0.000000e+00> : vector<2x8x8xf32>
    %74 = tpu.matmul %72, %73, %cst_27 {dimension_numbers = #tpu.dot_dimension_numbers<[2], [2], [1], [1], [0, 0, 0, 1, 1, 1], [0], [0]>} : vector<2x8x8xbf16>, vector<2x8x8xbf16>, vector<2x8x8xf32> -> vector<2x8x8xf32>
    "tpu.trace_stop"() : () -> ()
    %cst_28 = arith.constant 0.353553385 : f32
    %75 = vector.broadcast %cst_28 : f32 to vector<2x8x8xf32>
    %76 = arith.mulf %74, %75 : vector<2x8x8xf32>
    %77 = vector.shape_cast %29 : vector<8x8xf32> to vector<1x8x8xf32>
    %78 = vector.broadcast %77 : vector<1x8x8xf32> to vector<2x8x8xf32>
    %79 = arith.addf %76, %78 : vector<2x8x8xf32>
    %cst_29 = arith.constant dense<0xFF800000> : vector<2x8xf32>
    %80 = vector.multi_reduction <maximumf>, %79, %cst_29 [2] : vector<2x8x8xf32> to vector<2x8xf32>
    %81 = vector.shape_cast %80 : vector<2x8xf32> to vector<2x8x1xf32>
    %82 = vector.broadcast %81 : vector<2x8x1xf32> to vector<2x8x8xf32>
    %83 = arith.subf %79, %82 : vector<2x8x8xf32>
    %84 = math.exp %83 : vector<2x8x8xf32>
    %cst_30 = arith.constant dense<0.000000e+00> : vector<2x8xf32>
    %85 = vector.multi_reduction <add>, %84, %cst_30 [2] : vector<2x8x8xf32> to vector<2x8xf32>
    %86 = vector.shape_cast %85 : vector<2x8xf32> to vector<2x8x1xf32>
    %87 = tpu.reciprocal %86 {approx = true} : vector<2x8x1xf32> -> vector<2x8x1xf32>
    %88 = vector.broadcast %87 : vector<2x8x1xf32> to vector<2x8x8xf32>
    %89 = arith.mulf %84, %88 : vector<2x8x8xf32>
    %90 = arith.truncf %89 : vector<2x8x8xf32> to vector<2x8x8xbf16>
    %91 = vector.extract_strided_slice %23 {offsets = [0, 0, 16], sizes = [2, 8, 8], strides = [1, 1, 1]} : vector<2x8x32xbf16> to vector<2x8x8xbf16>
    "tpu.trace_start"() <{level = 10 : i32, message = "bqk,bkd->bqd"}> : () -> ()
    %cst_31 = arith.constant dense<0.000000e+00> : vector<2x8x8xf32>
    %92 = tpu.matmul %90, %91, %cst_31 {dimension_numbers = #tpu.dot_dimension_numbers<[2], [1], [1], [2], [0, 0, 0, 1, 1, 2], [0], [0]>} : vector<2x8x8xbf16>, vector<2x8x8xbf16>, vector<2x8x8xf32> -> vector<2x8x8xf32>
    "tpu.trace_stop"() : () -> ()
    %93 = vector.extract_strided_slice %17 {offsets = [0, 0, 24], sizes = [2, 8, 8], strides = [1, 1, 1]} : vector<2x8x32xbf16> to vector<2x8x8xbf16>
    %94 = vector.extract_strided_slice %20 {offsets = [0, 0, 24], sizes = [2, 8, 8], strides = [1, 1, 1]} : vector<2x8x32xbf16> to vector<2x8x8xbf16>
    "tpu.trace_start"() <{level = 10 : i32, message = "bqd,bkd->bqk"}> : () -> ()
    %cst_32 = arith.constant dense<0.000000e+00> : vector<2x8x8xf32>
    %95 = tpu.matmul %93, %94, %cst_32 {dimension_numbers = #tpu.dot_dimension_numbers<[2], [2], [1], [1], [0, 0, 0, 1, 1, 1], [0], [0]>} : vector<2x8x8xbf16>, vector<2x8x8xbf16>, vector<2x8x8xf32> -> vector<2x8x8xf32>
    "tpu.trace_stop"() : () -> ()
    %cst_33 = arith.constant 0.353553385 : f32
    %96 = vector.broadcast %cst_33 : f32 to vector<2x8x8xf32>
    %97 = arith.mulf %95, %96 : vector<2x8x8xf32>
    %98 = vector.shape_cast %29 : vector<8x8xf32> to vector<1x8x8xf32>
    %99 = vector.broadcast %98 : vector<1x8x8xf32> to vector<2x8x8xf32>
    %100 = arith.addf %97, %99 : vector<2x8x8xf32>
    %cst_34 = arith.constant dense<0xFF800000> : vector<2x8xf32>
    %101 = vector.multi_reduction <maximumf>, %100, %cst_34 [2] : vector<2x8x8xf32> to vector<2x8xf32>
    %102 = vector.shape_cast %101 : vector<2x8xf32> to vector<2x8x1xf32>
    %103 = vector.broadcast %102 : vector<2x8x1xf32> to vector<2x8x8xf32>
    %104 = arith.subf %100, %103 : vector<2x8x8xf32>
    %105 = math.exp %104 : vector<2x8x8xf32>
    %cst_35 = arith.constant dense<0.000000e+00> : vector<2x8xf32>
    %106 = vector.multi_reduction <add>, %105, %cst_35 [2] : vector<2x8x8xf32> to vector<2x8xf32>
    %107 = vector.shape_cast %106 : vector<2x8xf32> to vector<2x8x1xf32>
    %108 = tpu.reciprocal %107 {approx = true} : vector<2x8x1xf32> -> vector<2x8x1xf32>
    %109 = vector.broadcast %108 : vector<2x8x1xf32> to vector<2x8x8xf32>
    %110 = arith.mulf %105, %109 : vector<2x8x8xf32>
    %111 = arith.truncf %110 : vector<2x8x8xf32> to vector<2x8x8xbf16>
    %112 = vector.extract_strided_slice %23 {offsets = [0, 0, 24], sizes = [2, 8, 8], strides = [1, 1, 1]} : vector<2x8x32xbf16> to vector<2x8x8xbf16>
    "tpu.trace_start"() <{level = 10 : i32, message = "bqk,bkd->bqd"}> : () -> ()
    %cst_36 = arith.constant dense<0.000000e+00> : vector<2x8x8xf32>
    %113 = tpu.matmul %111, %112, %cst_36 {dimension_numbers = #tpu.dot_dimension_numbers<[2], [1], [1], [2], [0, 0, 0, 1, 1, 2], [0], [0]>} : vector<2x8x8xbf16>, vector<2x8x8xbf16>, vector<2x8x8xf32> -> vector<2x8x8xf32>
    "tpu.trace_stop"() : () -> ()
    %114 = tpu.concatenate %50, %71, %92, %113 in 2 : vector<2x8x8xf32>, vector<2x8x8xf32>, vector<2x8x8xf32>, vector<2x8x8xf32> -> vector<2x8x32xf32>
    %115 = vector.shape_cast %114 : vector<2x8x32xf32> to vector<16x32xf32>
    %116 = arith.truncf %115 : vector<16x32xf32> to vector<16x32xbf16>
    %cst_37 = arith.constant dense<0.000000e+00> : vector<16x32xf32>
    %117 = tpu.matmul %116, %6, %cst_37 {dimension_numbers = #tpu.dot_dimension_numbers<[1], [0], [0], [1], [0, 0, 1, 1], [], []>} : vector<16x32xbf16>, vector<32x32xbf16>, vector<16x32xf32> -> vector<16x32xf32>
    %118 = vector.broadcast %7 : vector<1x32xf32> to vector<16x32xf32>
    %119 = arith.addf %117, %118 : vector<16x32xf32>
    %120 = arith.addf %1, %119 : vector<16x32xf32>
    %c0_38 = arith.constant 0 : index
    %c0_39 = arith.constant 0 : index
    %121 = vector.load %arg7[%c0_38, %c0_39] : memref<1x32xf32, #tpu.memory_space<vmem>>, vector<1x32xf32>
    %c0_40 = arith.constant 0 : index
    %c0_41 = arith.constant 0 : index
    %122 = vector.load %arg8[%c0_40, %c0_41] : memref<1x32xf32, #tpu.memory_space<vmem>>, vector<1x32xf32>
    %cst_42 = arith.constant dense<0.000000e+00> : vector<16xf32>
    %123 = vector.multi_reduction <add>, %120, %cst_42 [1] : vector<16x32xf32> to vector<16xf32>
    %124 = vector.shape_cast %123 : vector<16xf32> to vector<16x1xf32>
    %cst_43 = arith.constant 3.200000e+01 : f32
    %125 = vector.broadcast %cst_43 : f32 to vector<16x1xf32>
    %126 = arith.divf %124, %125 : vector<16x1xf32>
    %127 = vector.broadcast %126 : vector<16x1xf32> to vector<16x32xf32>
    %128 = arith.subf %120, %127 : vector<16x32xf32>
    %129 = arith.mulf %128, %128 : vector<16x32xf32>
    %cst_44 = arith.constant dense<0.000000e+00> : vector<16xf32>
    %130 = vector.multi_reduction <add>, %129, %cst_44 [1] : vector<16x32xf32> to vector<16xf32>
    %131 = vector.shape_cast %130 : vector<16xf32> to vector<16x1xf32>
    %cst_45 = arith.constant 3.200000e+01 : f32
    %132 = vector.broadcast %cst_45 : f32 to vector<16x1xf32>
    %133 = arith.divf %131, %132 : vector<16x1xf32>
    %cst_46 = arith.constant 9.99999974E-6 : f32
    %134 = vector.broadcast %cst_46 : f32 to vector<16x1xf32>
    %135 = arith.addf %133, %134 : vector<16x1xf32>
    %136 = math.rsqrt %135 : vector<16x1xf32>
    %137 = vector.broadcast %136 : vector<16x1xf32> to vector<16x32xf32>
    %138 = arith.mulf %128, %137 : vector<16x32xf32>
    %139 = vector.broadcast %121 : vector<1x32xf32> to vector<16x32xf32>
    %140 = arith.mulf %138, %139 : vector<16x32xf32>
    %141 = vector.broadcast %122 : vector<1x32xf32> to vector<16x32xf32>
    %142 = arith.addf %140, %141 : vector<16x32xf32>
    %c0_47 = arith.constant 0 : index
    %c0_48 = arith.constant 0 : index
    %143 = vector.load %arg9[%c0_47, %c0_48] : memref<32x64xbf16, #tpu.memory_space<vmem>>, vector<32x64xbf16>
    %c0_49 = arith.constant 0 : index
    %c0_50 = arith.constant 0 : index
    %144 = vector.load %arg10[%c0_49, %c0_50] : memref<1x64xf32, #tpu.memory_space<vmem>>, vector<1x64xf32>
    %c0_51 = arith.constant 0 : index
    %c0_52 = arith.constant 0 : index
    %145 = vector.load %arg11[%c0_51, %c0_52] : memref<64x32xbf16, #tpu.memory_space<vmem>>, vector<64x32xbf16>
    %c0_53 = arith.constant 0 : index
    %c0_54 = arith.constant 0 : index
    %146 = vector.load %arg12[%c0_53, %c0_54] : memref<1x32xf32, #tpu.memory_space<vmem>>, vector<1x32xf32>
    %147 = arith.truncf %142 : vector<16x32xf32> to vector<16x32xbf16>
    %cst_55 = arith.constant dense<0.000000e+00> : vector<16x64xf32>
    %148 = tpu.matmul %147, %143, %cst_55 {dimension_numbers = #tpu.dot_dimension_numbers<[1], [0], [0], [1], [0, 0, 1, 1], [], []>} : vector<16x32xbf16>, vector<32x64xbf16>, vector<16x64xf32> -> vector<16x64xf32>
    %149 = vector.broadcast %144 : vector<1x64xf32> to vector<16x64xf32>
    %150 = arith.addf %148, %149 : vector<16x64xf32>
    %cst_56 = arith.constant 0.000000e+00 : f32
    %151 = vector.broadcast %cst_56 : f32 to vector<16x64xf32>
    %152 = arith.maximumf %150, %151 : vector<16x64xf32>
    %153 = arith.truncf %152 : vector<16x64xf32> to vector<16x64xbf16>
    %cst_57 = arith.constant dense<0.000000e+00> : vector<16x32xf32>
    %154 = tpu.matmul %153, %145, %cst_57 {dimension_numbers = #tpu.dot_dimension_numbers<[1], [0], [0], [1], [0, 0, 1, 1], [], []>} : vector<16x64xbf16>, vector<64x32xbf16>, vector<16x32xf32> -> vector<16x32xf32>
    %155 = vector.broadcast %146 : vector<1x32xf32> to vector<16x32xf32>
    %156 = arith.addf %154, %155 : vector<16x32xf32>
    %157 = arith.addf %142, %156 : vector<16x32xf32>
    %c0_58 = arith.constant 0 : index
    %c0_59 = arith.constant 0 : index
    %158 = vector.load %arg13[%c0_58, %c0_59] : memref<1x32xf32, #tpu.memory_space<vmem>>, vector<1x32xf32>
    %c0_60 = arith.constant 0 : index
    %c0_61 = arith.constant 0 : index
    %159 = vector.load %arg14[%c0_60, %c0_61] : memref<1x32xf32, #tpu.memory_space<vmem>>, vector<1x32xf32>
    %cst_62 = arith.constant dense<0.000000e+00> : vector<16xf32>
    %160 = vector.multi_reduction <add>, %157, %cst_62 [1] : vector<16x32xf32> to vector<16xf32>
    %161 = vector.shape_cast %160 : vector<16xf32> to vector<16x1xf32>
    %cst_63 = arith.constant 3.200000e+01 : f32
    %162 = vector.broadcast %cst_63 : f32 to vector<16x1xf32>
    %163 = arith.divf %161, %162 : vector<16x1xf32>
    %164 = vector.broadcast %163 : vector<16x1xf32> to vector<16x32xf32>
    %165 = arith.subf %157, %164 : vector<16x32xf32>
    %166 = arith.mulf %165, %165 : vector<16x32xf32>
    %cst_64 = arith.constant dense<0.000000e+00> : vector<16xf32>
    %167 = vector.multi_reduction <add>, %166, %cst_64 [1] : vector<16x32xf32> to vector<16xf32>
    %168 = vector.shape_cast %167 : vector<16xf32> to vector<16x1xf32>
    %cst_65 = arith.constant 3.200000e+01 : f32
    %169 = vector.broadcast %cst_65 : f32 to vector<16x1xf32>
    %170 = arith.divf %168, %169 : vector<16x1xf32>
    %cst_66 = arith.constant 9.99999974E-6 : f32
    %171 = vector.broadcast %cst_66 : f32 to vector<16x1xf32>
    %172 = arith.addf %170, %171 : vector<16x1xf32>
    %173 = math.rsqrt %172 : vector<16x1xf32>
    %174 = vector.broadcast %173 : vector<16x1xf32> to vector<16x32xf32>
    %175 = arith.mulf %165, %174 : vector<16x32xf32>
    %176 = vector.broadcast %158 : vector<1x32xf32> to vector<16x32xf32>
    %177 = arith.mulf %175, %176 : vector<16x32xf32>
    %178 = vector.broadcast %159 : vector<1x32xf32> to vector<16x32xf32>
    %179 = arith.addf %177, %178 : vector<16x32xf32>
    %180 = vector.shape_cast %179 : vector<16x32xf32> to vector<2x8x32xf32>
    %c0_67 = arith.constant 0 : index
    %c0_68 = arith.constant 0 : index
    %c0_69 = arith.constant 0 : index
    %181 = vector.load %arg15[%c0_67, %c0_68, %c0_69] : memref<2x8x32xf32, #tpu.memory_space<vmem>>, vector<2x8x32xf32>
    tpu.vector_store %arg15[%c0_67, %c0_68, %c0_69], %180 {strides = array<i32>} : memref<2x8x32xf32, #tpu.memory_space<vmem>>, vector<2x8x32xf32>,
    return
  }
}

module attributes {stable_mosaic.version = 11 : i64} {
  func.func @_decoder_layer_kernel(%arg0: memref<2x8x32xf32, #tpu.memory_space<vmem>>, %arg1: memref<2x8x32xf32, #tpu.memory_space<vmem>>, %arg2: memref<32x32xbf16, #tpu.memory_space<vmem>>, %arg3: memref<1x32xf32, #tpu.memory_space<vmem>>, %arg4: memref<32x64xbf16, #tpu.memory_space<vmem>>, %arg5: memref<1x64xf32, #tpu.memory_space<vmem>>, %arg6: memref<32x32xbf16, #tpu.memory_space<vmem>>, %arg7: memref<1x32xf32, #tpu.memory_space<vmem>>, %arg8: memref<1x32xf32, #tpu.memory_space<vmem>>, %arg9: memref<1x32xf32, #tpu.memory_space<vmem>>, %arg10: memref<32x32xbf16, #tpu.memory_space<vmem>>, %arg11: memref<1x32xf32, #tpu.memory_space<vmem>>, %arg12: memref<32x64xbf16, #tpu.memory_space<vmem>>, %arg13: memref<1x64xf32, #tpu.memory_space<vmem>>, %arg14: memref<32x32xbf16, #tpu.memory_space<vmem>>, %arg15: memref<1x32xf32, #tpu.memory_space<vmem>>, %arg16: memref<1x32xf32, #tpu.memory_space<vmem>>, %arg17: memref<1x32xf32, #tpu.memory_space<vmem>>, %arg18: memref<32x64xbf16, #tpu.memory_space<vmem>>, %arg19: memref<1x64xf32, #tpu.memory_space<vmem>>, %arg20: memref<64x32xbf16, #tpu.memory_space<vmem>>, %arg21: memref<1x32xf32, #tpu.memory_space<vmem>>, %arg22: memref<1x32xf32, #tpu.memory_space<vmem>>, %arg23: memref<1x32xf32, #tpu.memory_space<vmem>>, %arg24: memref<2x8x32xf32, #tpu.memory_space<vmem>>) attributes {dimension_semantics = [], scalar_prefetch = 0 : i64, scratch_operands = 0 : i64, tpu.core_type = #tpu.core_type<tc>} {
    %c0 = arith.constant 0 : index
    %c0_0 = arith.constant 0 : index
    %c0_1 = arith.constant 0 : index
    %0 = vector.load %arg0[%c0, %c0_0, %c0_1] : memref<2x8x32xf32, #tpu.memory_space<vmem>>, vector<2x8x32xf32>
    %1 = vector.shape_cast %0 : vector<2x8x32xf32> to vector<16x32xf32>
    %c0_2 = arith.constant 0 : index
    %c0_3 = arith.constant 0 : index
    %c0_4 = arith.constant 0 : index
    %2 = vector.load %arg1[%c0_2, %c0_3, %c0_4] : memref<2x8x32xf32, #tpu.memory_space<vmem>>, vector<2x8x32xf32>
    %3 = vector.shape_cast %2 : vector<2x8x32xf32> to vector<16x32xf32>
    %c0_5 = arith.constant 0 : index
    %c0_6 = arith.constant 0 : index
    %4 = vector.load %arg2[%c0_5, %c0_6] : memref<32x32xbf16, #tpu.memory_space<vmem>>, vector<32x32xbf16>
    %c0_7 = arith.constant 0 : index
    %c0_8 = arith.constant 0 : index
    %5 = vector.load %arg3[%c0_7, %c0_8] : memref<1x32xf32, #tpu.memory_space<vmem>>, vector<1x32xf32>
    %c0_9 = arith.constant 0 : index
    %c0_10 = arith.constant 0 : index
    %6 = vector.load %arg4[%c0_9, %c0_10] : memref<32x64xbf16, #tpu.memory_space<vmem>>, vector<32x64xbf16>
    %c0_11 = arith.constant 0 : index
    %c0_12 = arith.constant 0 : index
    %7 = vector.load %arg5[%c0_11, %c0_12] : memref<1x64xf32, #tpu.memory_space<vmem>>, vector<1x64xf32>
    %c0_13 = arith.constant 0 : index
    %c0_14 = arith.constant 0 : index
    %8 = vector.load %arg6[%c0_13, %c0_14] : memref<32x32xbf16, #tpu.memory_space<vmem>>, vector<32x32xbf16>
    %c0_15 = arith.constant 0 : index
    %c0_16 = arith.constant 0 : index
    %9 = vector.load %arg7[%c0_15, %c0_16] : memref<1x32xf32, #tpu.memory_space<vmem>>, vector<1x32xf32>
    %10 = arith.truncf %1 : vector<16x32xf32> to vector<16x32xbf16>
    %cst = arith.constant dense<0.000000e+00> : vector<16x32xf32>
    %11 = tpu.matmul %10, %4, %cst {dimension_numbers = #tpu.dot_dimension_numbers<[1], [0], [0], [1], [0, 0, 1, 1], [], []>} : vector<16x32xbf16>, vector<32x32xbf16>, vector<16x32xf32> -> vector<16x32xf32>
    %12 = vector.broadcast %5 : vector<1x32xf32> to vector<16x32xf32>
    %13 = arith.addf %11, %12 : vector<16x32xf32>
    %14 = arith.truncf %1 : vector<16x32xf32> to vector<16x32xbf16>
    %cst_17 = arith.constant dense<0.000000e+00> : vector<16x64xf32>
    %15 = tpu.matmul %14, %6, %cst_17 {dimension_numbers = #tpu.dot_dimension_numbers<[1], [0], [0], [1], [0, 0, 1, 1], [], []>} : vector<16x32xbf16>, vector<32x64xbf16>, vector<16x64xf32> -> vector<16x64xf32>
    %16 = vector.broadcast %7 : vector<1x64xf32> to vector<16x64xf32>
    %17 = arith.addf %15, %16 : vector<16x64xf32>
    %18 = arith.truncf %13 : vector<16x32xf32> to vector<16x32xbf16>
    %19 = vector.shape_cast %18 : vector<16x32xbf16> to vector<2x8x32xbf16>
    %20 = vector.extract_strided_slice %17 {offsets = [0, 0], sizes = [16, 32], strides = [1, 1]} : vector<16x64xf32> to vector<16x32xf32>
    %21 = arith.truncf %20 : vector<16x32xf32> to vector<16x32xbf16>
    %22 = vector.shape_cast %21 : vector<16x32xbf16> to vector<2x8x32xbf16>
    %23 = vector.extract_strided_slice %17 {offsets = [0, 32], sizes = [16, 32], strides = [1, 1]} : vector<16x64xf32> to vector<16x32xf32>
    %24 = arith.truncf %23 : vector<16x32xf32> to vector<16x32xbf16>
    %25 = vector.shape_cast %24 : vector<16x32xbf16> to vector<2x8x32xbf16>
    %26 = tpu.iota {dimensions = array<i32: 0>} : vector<8x8xi32>
    %27 = tpu.iota {dimensions = array<i32: 1>} : vector<8x8xi32>
    %28 = arith.cmpi sle, %27, %26 : vector<8x8xi32>
    %cst_18 = arith.constant 0.000000e+00 : f32
    %cst_19 = arith.constant -1.000000e+09 : f32
    %29 = vector.broadcast %cst_18 : f32 to vector<8x8xf32>
    %30 = vector.broadcast %cst_19 : f32 to vector<8x8xf32>
    %31 = arith.select %28, %29, %30 : vector<8x8xi1>, vector<8x8xf32>
    %32 = vector.extract_strided_slice %19 {offsets = [0, 0, 0], sizes = [2, 8, 8], strides = [1, 1, 1]} : vector<2x8x32xbf16> to vector<2x8x8xbf16>
    %33 = vector.extract_strided_slice %22 {offsets = [0, 0, 0], sizes = [2, 8, 8], strides = [1, 1, 1]} : vector<2x8x32xbf16> to vector<2x8x8xbf16>
    "tpu.trace_start"() <{level = 10 : i32, message = "bqd,bkd->bqk"}> : () -> ()
    %cst_20 = arith.constant dense<0.000000e+00> : vector<2x8x8xf32>
    %34 = tpu.matmul %32, %33, %cst_20 {dimension_numbers = #tpu.dot_dimension_numbers<[2], [2], [1], [1], [0, 0, 0, 1, 1, 1], [0], [0]>} : vector<2x8x8xbf16>, vector<2x8x8xbf16>, vector<2x8x8xf32> -> vector<2x8x8xf32>
    "tpu.trace_stop"() : () -> ()
    %cst_21 = arith.constant 0.353553385 : f32
    %35 = vector.broadcast %cst_21 : f32 to vector<2x8x8xf32>
    %36 = arith.mulf %34, %35 : vector<2x8x8xf32>
    %37 = vector.shape_cast %31 : vector<8x8xf32> to vector<1x8x8xf32>
    %38 = vector.broadcast %37 : vector<1x8x8xf32> to vector<2x8x8xf32>
    %39 = arith.addf %36, %38 : vector<2x8x8xf32>
    %cst_22 = arith.constant dense<0xFF800000> : vector<2x8xf32>
    %40 = vector.multi_reduction <maximumf>, %39, %cst_22 [2] : vector<2x8x8xf32> to vector<2x8xf32>
    %41 = vector.shape_cast %40 : vector<2x8xf32> to vector<2x8x1xf32>
    %42 = vector.broadcast %41 : vector<2x8x1xf32> to vector<2x8x8xf32>
    %43 = arith.subf %39, %42 : vector<2x8x8xf32>
    %44 = math.exp %43 : vector<2x8x8xf32>
    %cst_23 = arith.constant dense<0.000000e+00> : vector<2x8xf32>
    %45 = vector.multi_reduction <add>, %44, %cst_23 [2] : vector<2x8x8xf32> to vector<2x8xf32>
    %46 = vector.shape_cast %45 : vector<2x8xf32> to vector<2x8x1xf32>
    %47 = tpu.reciprocal %46 {approx = true} : vector<2x8x1xf32> -> vector<2x8x1xf32>
    %48 = vector.broadcast %47 : vector<2x8x1xf32> to vector<2x8x8xf32>
    %49 = arith.mulf %44, %48 : vector<2x8x8xf32>
    %50 = arith.truncf %49 : vector<2x8x8xf32> to vector<2x8x8xbf16>
    %51 = vector.extract_strided_slice %25 {offsets = [0, 0, 0], sizes = [2, 8, 8], strides = [1, 1, 1]} : vector<2x8x32xbf16> to vector<2x8x8xbf16>
    "tpu.trace_start"() <{level = 10 : i32, message = "bqk,bkd->bqd"}> : () -> ()
    %cst_24 = arith.constant dense<0.000000e+00> : vector<2x8x8xf32>
    %52 = tpu.matmul %50, %51, %cst_24 {dimension_numbers = #tpu.dot_dimension_numbers<[2], [1], [1], [2], [0, 0, 0, 1, 1, 2], [0], [0]>} : vector<2x8x8xbf16>, vector<2x8x8xbf16>, vector<2x8x8xf32> -> vector<2x8x8xf32>
    "tpu.trace_stop"() : () -> ()
    %53 = vector.extract_strided_slice %19 {offsets = [0, 0, 8], sizes = [2, 8, 8], strides = [1, 1, 1]} : vector<2x8x32xbf16> to vector<2x8x8xbf16>
    %54 = vector.extract_strided_slice %22 {offsets = [0, 0, 8], sizes = [2, 8, 8], strides = [1, 1, 1]} : vector<2x8x32xbf16> to vector<2x8x8xbf16>
    "tpu.trace_start"() <{level = 10 : i32, message = "bqd,bkd->bqk"}> : () -> ()
    %cst_25 = arith.constant dense<0.000000e+00> : vector<2x8x8xf32>
    %55 = tpu.matmul %53, %54, %cst_25 {dimension_numbers = #tpu.dot_dimension_numbers<[2], [2], [1], [1], [0, 0, 0, 1, 1, 1], [0], [0]>} : vector<2x8x8xbf16>, vector<2x8x8xbf16>, vector<2x8x8xf32> -> vector<2x8x8xf32>
    "tpu.trace_stop"() : () -> ()
    %cst_26 = arith.constant 0.353553385 : f32
    %56 = vector.broadcast %cst_26 : f32 to vector<2x8x8xf32>
    %57 = arith.mulf %55, %56 : vector<2x8x8xf32>
    %58 = vector.shape_cast %31 : vector<8x8xf32> to vector<1x8x8xf32>
    %59 = vector.broadcast %58 : vector<1x8x8xf32> to vector<2x8x8xf32>
    %60 = arith.addf %57, %59 : vector<2x8x8xf32>
    %cst_27 = arith.constant dense<0xFF800000> : vector<2x8xf32>
    %61 = vector.multi_reduction <maximumf>, %60, %cst_27 [2] : vector<2x8x8xf32> to vector<2x8xf32>
    %62 = vector.shape_cast %61 : vector<2x8xf32> to vector<2x8x1xf32>
    %63 = vector.broadcast %62 : vector<2x8x1xf32> to vector<2x8x8xf32>
    %64 = arith.subf %60, %63 : vector<2x8x8xf32>
    %65 = math.exp %64 : vector<2x8x8xf32>
    %cst_28 = arith.constant dense<0.000000e+00> : vector<2x8xf32>
    %66 = vector.multi_reduction <add>, %65, %cst_28 [2] : vector<2x8x8xf32> to vector<2x8xf32>
    %67 = vector.shape_cast %66 : vector<2x8xf32> to vector<2x8x1xf32>
    %68 = tpu.reciprocal %67 {approx = true} : vector<2x8x1xf32> -> vector<2x8x1xf32>
    %69 = vector.broadcast %68 : vector<2x8x1xf32> to vector<2x8x8xf32>
    %70 = arith.mulf %65, %69 : vector<2x8x8xf32>
    %71 = arith.truncf %70 : vector<2x8x8xf32> to vector<2x8x8xbf16>
    %72 = vector.extract_strided_slice %25 {offsets = [0, 0, 8], sizes = [2, 8, 8], strides = [1, 1, 1]} : vector<2x8x32xbf16> to vector<2x8x8xbf16>
    "tpu.trace_start"() <{level = 10 : i32, message = "bqk,bkd->bqd"}> : () -> ()
    %cst_29 = arith.constant dense<0.000000e+00> : vector<2x8x8xf32>
    %73 = tpu.matmul %71, %72, %cst_29 {dimension_numbers = #tpu.dot_dimension_numbers<[2], [1], [1], [2], [0, 0, 0, 1, 1, 2], [0], [0]>} : vector<2x8x8xbf16>, vector<2x8x8xbf16>, vector<2x8x8xf32> -> vector<2x8x8xf32>
    "tpu.trace_stop"() : () -> ()
    %74 = vector.extract_strided_slice %19 {offsets = [0, 0, 16], sizes = [2, 8, 8], strides = [1, 1, 1]} : vector<2x8x32xbf16> to vector<2x8x8xbf16>
    %75 = vector.extract_strided_slice %22 {offsets = [0, 0, 16], sizes = [2, 8, 8], strides = [1, 1, 1]} : vector<2x8x32xbf16> to vector<2x8x8xbf16>
    "tpu.trace_start"() <{level = 10 : i32, message = "bqd,bkd->bqk"}> : () -> ()
    %cst_30 = arith.constant dense<0.000000e+00> : vector<2x8x8xf32>
    %76 = tpu.matmul %74, %75, %cst_30 {dimension_numbers = #tpu.dot_dimension_numbers<[2], [2], [1], [1], [0, 0, 0, 1, 1, 1], [0], [0]>} : vector<2x8x8xbf16>, vector<2x8x8xbf16>, vector<2x8x8xf32> -> vector<2x8x8xf32>
    "tpu.trace_stop"() : () -> ()
    %cst_31 = arith.constant 0.353553385 : f32
    %77 = vector.broadcast %cst_31 : f32 to vector<2x8x8xf32>
    %78 = arith.mulf %76, %77 : vector<2x8x8xf32>
    %79 = vector.shape_cast %31 : vector<8x8xf32> to vector<1x8x8xf32>
    %80 = vector.broadcast %79 : vector<1x8x8xf32> to vector<2x8x8xf32>
    %81 = arith.addf %78, %80 : vector<2x8x8xf32>
    %cst_32 = arith.constant dense<0xFF800000> : vector<2x8xf32>
    %82 = vector.multi_reduction <maximumf>, %81, %cst_32 [2] : vector<2x8x8xf32> to vector<2x8xf32>
    %83 = vector.shape_cast %82 : vector<2x8xf32> to vector<2x8x1xf32>
    %84 = vector.broadcast %83 : vector<2x8x1xf32> to vector<2x8x8xf32>
    %85 = arith.subf %81, %84 : vector<2x8x8xf32>
    %86 = math.exp %85 : vector<2x8x8xf32>
    %cst_33 = arith.constant dense<0.000000e+00> : vector<2x8xf32>
    %87 = vector.multi_reduction <add>, %86, %cst_33 [2] : vector<2x8x8xf32> to vector<2x8xf32>
    %88 = vector.shape_cast %87 : vector<2x8xf32> to vector<2x8x1xf32>
    %89 = tpu.reciprocal %88 {approx = true} : vector<2x8x1xf32> -> vector<2x8x1xf32>
    %90 = vector.broadcast %89 : vector<2x8x1xf32> to vector<2x8x8xf32>
    %91 = arith.mulf %86, %90 : vector<2x8x8xf32>
    %92 = arith.truncf %91 : vector<2x8x8xf32> to vector<2x8x8xbf16>
    %93 = vector.extract_strided_slice %25 {offsets = [0, 0, 16], sizes = [2, 8, 8], strides = [1, 1, 1]} : vector<2x8x32xbf16> to vector<2x8x8xbf16>
    "tpu.trace_start"() <{level = 10 : i32, message = "bqk,bkd->bqd"}> : () -> ()
    %cst_34 = arith.constant dense<0.000000e+00> : vector<2x8x8xf32>
    %94 = tpu.matmul %92, %93, %cst_34 {dimension_numbers = #tpu.dot_dimension_numbers<[2], [1], [1], [2], [0, 0, 0, 1, 1, 2], [0], [0]>} : vector<2x8x8xbf16>, vector<2x8x8xbf16>, vector<2x8x8xf32> -> vector<2x8x8xf32>
    "tpu.trace_stop"() : () -> ()
    %95 = vector.extract_strided_slice %19 {offsets = [0, 0, 24], sizes = [2, 8, 8], strides = [1, 1, 1]} : vector<2x8x32xbf16> to vector<2x8x8xbf16>
    %96 = vector.extract_strided_slice %22 {offsets = [0, 0, 24], sizes = [2, 8, 8], strides = [1, 1, 1]} : vector<2x8x32xbf16> to vector<2x8x8xbf16>
    "tpu.trace_start"() <{level = 10 : i32, message = "bqd,bkd->bqk"}> : () -> ()
    %cst_35 = arith.constant dense<0.000000e+00> : vector<2x8x8xf32>
    %97 = tpu.matmul %95, %96, %cst_35 {dimension_numbers = #tpu.dot_dimension_numbers<[2], [2], [1], [1], [0, 0, 0, 1, 1, 1], [0], [0]>} : vector<2x8x8xbf16>, vector<2x8x8xbf16>, vector<2x8x8xf32> -> vector<2x8x8xf32>
    "tpu.trace_stop"() : () -> ()
    %cst_36 = arith.constant 0.353553385 : f32
    %98 = vector.broadcast %cst_36 : f32 to vector<2x8x8xf32>
    %99 = arith.mulf %97, %98 : vector<2x8x8xf32>
    %100 = vector.shape_cast %31 : vector<8x8xf32> to vector<1x8x8xf32>
    %101 = vector.broadcast %100 : vector<1x8x8xf32> to vector<2x8x8xf32>
    %102 = arith.addf %99, %101 : vector<2x8x8xf32>
    %cst_37 = arith.constant dense<0xFF800000> : vector<2x8xf32>
    %103 = vector.multi_reduction <maximumf>, %102, %cst_37 [2] : vector<2x8x8xf32> to vector<2x8xf32>
    %104 = vector.shape_cast %103 : vector<2x8xf32> to vector<2x8x1xf32>
    %105 = vector.broadcast %104 : vector<2x8x1xf32> to vector<2x8x8xf32>
    %106 = arith.subf %102, %105 : vector<2x8x8xf32>
    %107 = math.exp %106 : vector<2x8x8xf32>
    %cst_38 = arith.constant dense<0.000000e+00> : vector<2x8xf32>
    %108 = vector.multi_reduction <add>, %107, %cst_38 [2] : vector<2x8x8xf32> to vector<2x8xf32>
    %109 = vector.shape_cast %108 : vector<2x8xf32> to vector<2x8x1xf32>
    %110 = tpu.reciprocal %109 {approx = true} : vector<2x8x1xf32> -> vector<2x8x1xf32>
    %111 = vector.broadcast %110 : vector<2x8x1xf32> to vector<2x8x8xf32>
    %112 = arith.mulf %107, %111 : vector<2x8x8xf32>
    %113 = arith.truncf %112 : vector<2x8x8xf32> to vector<2x8x8xbf16>
    %114 = vector.extract_strided_slice %25 {offsets = [0, 0, 24], sizes = [2, 8, 8], strides = [1, 1, 1]} : vector<2x8x32xbf16> to vector<2x8x8xbf16>
    "tpu.trace_start"() <{level = 10 : i32, message = "bqk,bkd->bqd"}> : () -> ()
    %cst_39 = arith.constant dense<0.000000e+00> : vector<2x8x8xf32>
    %115 = tpu.matmul %113, %114, %cst_39 {dimension_numbers = #tpu.dot_dimension_numbers<[2], [1], [1], [2], [0, 0, 0, 1, 1, 2], [0], [0]>} : vector<2x8x8xbf16>, vector<2x8x8xbf16>, vector<2x8x8xf32> -> vector<2x8x8xf32>
    "tpu.trace_stop"() : () -> ()
    %116 = tpu.concatenate %52, %73, %94, %115 in 2 : vector<2x8x8xf32>, vector<2x8x8xf32>, vector<2x8x8xf32>, vector<2x8x8xf32> -> vector<2x8x32xf32>
    %117 = vector.shape_cast %116 : vector<2x8x32xf32> to vector<16x32xf32>
    %118 = arith.truncf %117 : vector<16x32xf32> to vector<16x32xbf16>
    %cst_40 = arith.constant dense<0.000000e+00> : vector<16x32xf32>
    %119 = tpu.matmul %118, %8, %cst_40 {dimension_numbers = #tpu.dot_dimension_numbers<[1], [0], [0], [1], [0, 0, 1, 1], [], []>} : vector<16x32xbf16>, vector<32x32xbf16>, vector<16x32xf32> -> vector<16x32xf32>
    %120 = vector.broadcast %9 : vector<1x32xf32> to vector<16x32xf32>
    %121 = arith.addf %119, %120 : vector<16x32xf32>
    %122 = arith.addf %1, %121 : vector<16x32xf32>
    %c0_41 = arith.constant 0 : index
    %c0_42 = arith.constant 0 : index
    %123 = vector.load %arg8[%c0_41, %c0_42] : memref<1x32xf32, #tpu.memory_space<vmem>>, vector<1x32xf32>
    %c0_43 = arith.constant 0 : index
    %c0_44 = arith.constant 0 : index
    %124 = vector.load %arg9[%c0_43, %c0_44] : memref<1x32xf32, #tpu.memory_space<vmem>>, vector<1x32xf32>
    %cst_45 = arith.constant dense<0.000000e+00> : vector<16xf32>
    %125 = vector.multi_reduction <add>, %122, %cst_45 [1] : vector<16x32xf32> to vector<16xf32>
    %126 = vector.shape_cast %125 : vector<16xf32> to vector<16x1xf32>
    %cst_46 = arith.constant 3.200000e+01 : f32
    %127 = vector.broadcast %cst_46 : f32 to vector<16x1xf32>
    %128 = arith.divf %126, %127 : vector<16x1xf32>
    %129 = vector.broadcast %128 : vector<16x1xf32> to vector<16x32xf32>
    %130 = arith.subf %122, %129 : vector<16x32xf32>
    %131 = arith.mulf %130, %130 : vector<16x32xf32>
    %cst_47 = arith.constant dense<0.000000e+00> : vector<16xf32>
    %132 = vector.multi_reduction <add>, %131, %cst_47 [1] : vector<16x32xf32> to vector<16xf32>
    %133 = vector.shape_cast %132 : vector<16xf32> to vector<16x1xf32>
    %cst_48 = arith.constant 3.200000e+01 : f32
    %134 = vector.broadcast %cst_48 : f32 to vector<16x1xf32>
    %135 = arith.divf %133, %134 : vector<16x1xf32>
    %cst_49 = arith.constant 9.99999974E-6 : f32
    %136 = vector.broadcast %cst_49 : f32 to vector<16x1xf32>
    %137 = arith.addf %135, %136 : vector<16x1xf32>
    %138 = math.rsqrt %137 : vector<16x1xf32>
    %139 = vector.broadcast %138 : vector<16x1xf32> to vector<16x32xf32>
    %140 = arith.mulf %130, %139 : vector<16x32xf32>
    %141 = vector.broadcast %123 : vector<1x32xf32> to vector<16x32xf32>
    %142 = arith.mulf %140, %141 : vector<16x32xf32>
    %143 = vector.broadcast %124 : vector<1x32xf32> to vector<16x32xf32>
    %144 = arith.addf %142, %143 : vector<16x32xf32>
    %c0_50 = arith.constant 0 : index
    %c0_51 = arith.constant 0 : index
    %145 = vector.load %arg10[%c0_50, %c0_51] : memref<32x32xbf16, #tpu.memory_space<vmem>>, vector<32x32xbf16>
    %c0_52 = arith.constant 0 : index
    %c0_53 = arith.constant 0 : index
    %146 = vector.load %arg11[%c0_52, %c0_53] : memref<1x32xf32, #tpu.memory_space<vmem>>, vector<1x32xf32>
    %c0_54 = arith.constant 0 : index
    %c0_55 = arith.constant 0 : index
    %147 = vector.load %arg12[%c0_54, %c0_55] : memref<32x64xbf16, #tpu.memory_space<vmem>>, vector<32x64xbf16>
    %c0_56 = arith.constant 0 : index
    %c0_57 = arith.constant 0 : index
    %148 = vector.load %arg13[%c0_56, %c0_57] : memref<1x64xf32, #tpu.memory_space<vmem>>, vector<1x64xf32>
    %c0_58 = arith.constant 0 : index
    %c0_59 = arith.constant 0 : index
    %149 = vector.load %arg14[%c0_58, %c0_59] : memref<32x32xbf16, #tpu.memory_space<vmem>>, vector<32x32xbf16>
    %c0_60 = arith.constant 0 : index
    %c0_61 = arith.constant 0 : index
    %150 = vector.load %arg15[%c0_60, %c0_61] : memref<1x32xf32, #tpu.memory_space<vmem>>, vector<1x32xf32>
    %151 = arith.truncf %144 : vector<16x32xf32> to vector<16x32xbf16>
    %cst_62 = arith.constant dense<0.000000e+00> : vector<16x32xf32>
    %152 = tpu.matmul %151, %145, %cst_62 {dimension_numbers = #tpu.dot_dimension_numbers<[1], [0], [0], [1], [0, 0, 1, 1], [], []>} : vector<16x32xbf16>, vector<32x32xbf16>, vector<16x32xf32> -> vector<16x32xf32>
    %153 = vector.broadcast %146 : vector<1x32xf32> to vector<16x32xf32>
    %154 = arith.addf %152, %153 : vector<16x32xf32>
    %155 = arith.truncf %3 : vector<16x32xf32> to vector<16x32xbf16>
    %cst_63 = arith.constant dense<0.000000e+00> : vector<16x64xf32>
    %156 = tpu.matmul %155, %147, %cst_63 {dimension_numbers = #tpu.dot_dimension_numbers<[1], [0], [0], [1], [0, 0, 1, 1], [], []>} : vector<16x32xbf16>, vector<32x64xbf16>, vector<16x64xf32> -> vector<16x64xf32>
    %157 = vector.broadcast %148 : vector<1x64xf32> to vector<16x64xf32>
    %158 = arith.addf %156, %157 : vector<16x64xf32>
    %159 = arith.truncf %154 : vector<16x32xf32> to vector<16x32xbf16>
    %160 = vector.shape_cast %159 : vector<16x32xbf16> to vector<2x8x32xbf16>
    %161 = vector.extract_strided_slice %158 {offsets = [0, 0], sizes = [16, 32], strides = [1, 1]} : vector<16x64xf32> to vector<16x32xf32>
    %162 = arith.truncf %161 : vector<16x32xf32> to vector<16x32xbf16>
    %163 = vector.shape_cast %162 : vector<16x32xbf16> to vector<2x8x32xbf16>
    %164 = vector.extract_strided_slice %158 {offsets = [0, 32], sizes = [16, 32], strides = [1, 1]} : vector<16x64xf32> to vector<16x32xf32>
    %165 = arith.truncf %164 : vector<16x32xf32> to vector<16x32xbf16>
    %166 = vector.shape_cast %165 : vector<16x32xbf16> to vector<2x8x32xbf16>
    %167 = vector.extract_strided_slice %160 {offsets = [0, 0, 0], sizes = [2, 8, 8], strides = [1, 1, 1]} : vector<2x8x32xbf16> to vector<2x8x8xbf16>
    %168 = vector.extract_strided_slice %163 {offsets = [0, 0, 0], sizes = [2, 8, 8], strides = [1, 1, 1]} : vector<2x8x32xbf16> to vector<2x8x8xbf16>
    "tpu.trace_start"() <{level = 10 : i32, message = "bqd,bkd->bqk"}> : () -> ()
    %cst_64 = arith.constant dense<0.000000e+00> : vector<2x8x8xf32>
    %169 = tpu.matmul %167, %168, %cst_64 {dimension_numbers = #tpu.dot_dimension_numbers<[2], [2], [1], [1], [0, 0, 0, 1, 1, 1], [0], [0]>} : vector<2x8x8xbf16>, vector<2x8x8xbf16>, vector<2x8x8xf32> -> vector<2x8x8xf32>
    "tpu.trace_stop"() : () -> ()
    %cst_65 = arith.constant 0.353553385 : f32
    %170 = vector.broadcast %cst_65 : f32 to vector<2x8x8xf32>
    %171 = arith.mulf %169, %170 : vector<2x8x8xf32>
    %cst_66 = arith.constant dense<0xFF800000> : vector<2x8xf32>
    %172 = vector.multi_reduction <maximumf>, %171, %cst_66 [2] : vector<2x8x8xf32> to vector<2x8xf32>
    %173 = vector.shape_cast %172 : vector<2x8xf32> to vector<2x8x1xf32>
    %174 = vector.broadcast %173 : vector<2x8x1xf32> to vector<2x8x8xf32>
    %175 = arith.subf %171, %174 : vector<2x8x8xf32>
    %176 = math.exp %175 : vector<2x8x8xf32>
    %cst_67 = arith.constant dense<0.000000e+00> : vector<2x8xf32>
    %177 = vector.multi_reduction <add>, %176, %cst_67 [2] : vector<2x8x8xf32> to vector<2x8xf32>
    %178 = vector.shape_cast %177 : vector<2x8xf32> to vector<2x8x1xf32>
    %179 = tpu.reciprocal %178 {approx = true} : vector<2x8x1xf32> -> vector<2x8x1xf32>
    %180 = vector.broadcast %179 : vector<2x8x1xf32> to vector<2x8x8xf32>
    %181 = arith.mulf %176, %180 : vector<2x8x8xf32>
    %182 = arith.truncf %181 : vector<2x8x8xf32> to vector<2x8x8xbf16>
    %183 = vector.extract_strided_slice %166 {offsets = [0, 0, 0], sizes = [2, 8, 8], strides = [1, 1, 1]} : vector<2x8x32xbf16> to vector<2x8x8xbf16>
    "tpu.trace_start"() <{level = 10 : i32, message = "bqk,bkd->bqd"}> : () -> ()
    %cst_68 = arith.constant dense<0.000000e+00> : vector<2x8x8xf32>
    %184 = tpu.matmul %182, %183, %cst_68 {dimension_numbers = #tpu.dot_dimension_numbers<[2], [1], [1], [2], [0, 0, 0, 1, 1, 2], [0], [0]>} : vector<2x8x8xbf16>, vector<2x8x8xbf16>, vector<2x8x8xf32> -> vector<2x8x8xf32>
    "tpu.trace_stop"() : () -> ()
    %185 = vector.extract_strided_slice %160 {offsets = [0, 0, 8], sizes = [2, 8, 8], strides = [1, 1, 1]} : vector<2x8x32xbf16> to vector<2x8x8xbf16>
    %186 = vector.extract_strided_slice %163 {offsets = [0, 0, 8], sizes = [2, 8, 8], strides = [1, 1, 1]} : vector<2x8x32xbf16> to vector<2x8x8xbf16>
    "tpu.trace_start"() <{level = 10 : i32, message = "bqd,bkd->bqk"}> : () -> ()
    %cst_69 = arith.constant dense<0.000000e+00> : vector<2x8x8xf32>
    %187 = tpu.matmul %185, %186, %cst_69 {dimension_numbers = #tpu.dot_dimension_numbers<[2], [2], [1], [1], [0, 0, 0, 1, 1, 1], [0], [0]>} : vector<2x8x8xbf16>, vector<2x8x8xbf16>, vector<2x8x8xf32> -> vector<2x8x8xf32>
    "tpu.trace_stop"() : () -> ()
    %cst_70 = arith.constant 0.353553385 : f32
    %188 = vector.broadcast %cst_70 : f32 to vector<2x8x8xf32>
    %189 = arith.mulf %187, %188 : vector<2x8x8xf32>
    %cst_71 = arith.constant dense<0xFF800000> : vector<2x8xf32>
    %190 = vector.multi_reduction <maximumf>, %189, %cst_71 [2] : vector<2x8x8xf32> to vector<2x8xf32>
    %191 = vector.shape_cast %190 : vector<2x8xf32> to vector<2x8x1xf32>
    %192 = vector.broadcast %191 : vector<2x8x1xf32> to vector<2x8x8xf32>
    %193 = arith.subf %189, %192 : vector<2x8x8xf32>
    %194 = math.exp %193 : vector<2x8x8xf32>
    %cst_72 = arith.constant dense<0.000000e+00> : vector<2x8xf32>
    %195 = vector.multi_reduction <add>, %194, %cst_72 [2] : vector<2x8x8xf32> to vector<2x8xf32>
    %196 = vector.shape_cast %195 : vector<2x8xf32> to vector<2x8x1xf32>
    %197 = tpu.reciprocal %196 {approx = true} : vector<2x8x1xf32> -> vector<2x8x1xf32>
    %198 = vector.broadcast %197 : vector<2x8x1xf32> to vector<2x8x8xf32>
    %199 = arith.mulf %194, %198 : vector<2x8x8xf32>
    %200 = arith.truncf %199 : vector<2x8x8xf32> to vector<2x8x8xbf16>
    %201 = vector.extract_strided_slice %166 {offsets = [0, 0, 8], sizes = [2, 8, 8], strides = [1, 1, 1]} : vector<2x8x32xbf16> to vector<2x8x8xbf16>
    "tpu.trace_start"() <{level = 10 : i32, message = "bqk,bkd->bqd"}> : () -> ()
    %cst_73 = arith.constant dense<0.000000e+00> : vector<2x8x8xf32>
    %202 = tpu.matmul %200, %201, %cst_73 {dimension_numbers = #tpu.dot_dimension_numbers<[2], [1], [1], [2], [0, 0, 0, 1, 1, 2], [0], [0]>} : vector<2x8x8xbf16>, vector<2x8x8xbf16>, vector<2x8x8xf32> -> vector<2x8x8xf32>
    "tpu.trace_stop"() : () -> ()
    %203 = vector.extract_strided_slice %160 {offsets = [0, 0, 16], sizes = [2, 8, 8], strides = [1, 1, 1]} : vector<2x8x32xbf16> to vector<2x8x8xbf16>
    %204 = vector.extract_strided_slice %163 {offsets = [0, 0, 16], sizes = [2, 8, 8], strides = [1, 1, 1]} : vector<2x8x32xbf16> to vector<2x8x8xbf16>
    "tpu.trace_start"() <{level = 10 : i32, message = "bqd,bkd->bqk"}> : () -> ()
    %cst_74 = arith.constant dense<0.000000e+00> : vector<2x8x8xf32>
    %205 = tpu.matmul %203, %204, %cst_74 {dimension_numbers = #tpu.dot_dimension_numbers<[2], [2], [1], [1], [0, 0, 0, 1, 1, 1], [0], [0]>} : vector<2x8x8xbf16>, vector<2x8x8xbf16>, vector<2x8x8xf32> -> vector<2x8x8xf32>
    "tpu.trace_stop"() : () -> ()
    %cst_75 = arith.constant 0.353553385 : f32
    %206 = vector.broadcast %cst_75 : f32 to vector<2x8x8xf32>
    %207 = arith.mulf %205, %206 : vector<2x8x8xf32>
    %cst_76 = arith.constant dense<0xFF800000> : vector<2x8xf32>
    %208 = vector.multi_reduction <maximumf>, %207, %cst_76 [2] : vector<2x8x8xf32> to vector<2x8xf32>
    %209 = vector.shape_cast %208 : vector<2x8xf32> to vector<2x8x1xf32>
    %210 = vector.broadcast %209 : vector<2x8x1xf32> to vector<2x8x8xf32>
    %211 = arith.subf %207, %210 : vector<2x8x8xf32>
    %212 = math.exp %211 : vector<2x8x8xf32>
    %cst_77 = arith.constant dense<0.000000e+00> : vector<2x8xf32>
    %213 = vector.multi_reduction <add>, %212, %cst_77 [2] : vector<2x8x8xf32> to vector<2x8xf32>
    %214 = vector.shape_cast %213 : vector<2x8xf32> to vector<2x8x1xf32>
    %215 = tpu.reciprocal %214 {approx = true} : vector<2x8x1xf32> -> vector<2x8x1xf32>
    %216 = vector.broadcast %215 : vector<2x8x1xf32> to vector<2x8x8xf32>
    %217 = arith.mulf %212, %216 : vector<2x8x8xf32>
    %218 = arith.truncf %217 : vector<2x8x8xf32> to vector<2x8x8xbf16>
    %219 = vector.extract_strided_slice %166 {offsets = [0, 0, 16], sizes = [2, 8, 8], strides = [1, 1, 1]} : vector<2x8x32xbf16> to vector<2x8x8xbf16>
    "tpu.trace_start"() <{level = 10 : i32, message = "bqk,bkd->bqd"}> : () -> ()
    %cst_78 = arith.constant dense<0.000000e+00> : vector<2x8x8xf32>
    %220 = tpu.matmul %218, %219, %cst_78 {dimension_numbers = #tpu.dot_dimension_numbers<[2], [1], [1], [2], [0, 0, 0, 1, 1, 2], [0], [0]>} : vector<2x8x8xbf16>, vector<2x8x8xbf16>, vector<2x8x8xf32> -> vector<2x8x8xf32>
    "tpu.trace_stop"() : () -> ()
    %221 = vector.extract_strided_slice %160 {offsets = [0, 0, 24], sizes = [2, 8, 8], strides = [1, 1, 1]} : vector<2x8x32xbf16> to vector<2x8x8xbf16>
    %222 = vector.extract_strided_slice %163 {offsets = [0, 0, 24], sizes = [2, 8, 8], strides = [1, 1, 1]} : vector<2x8x32xbf16> to vector<2x8x8xbf16>
    "tpu.trace_start"() <{level = 10 : i32, message = "bqd,bkd->bqk"}> : () -> ()
    %cst_79 = arith.constant dense<0.000000e+00> : vector<2x8x8xf32>
    %223 = tpu.matmul %221, %222, %cst_79 {dimension_numbers = #tpu.dot_dimension_numbers<[2], [2], [1], [1], [0, 0, 0, 1, 1, 1], [0], [0]>} : vector<2x8x8xbf16>, vector<2x8x8xbf16>, vector<2x8x8xf32> -> vector<2x8x8xf32>
    "tpu.trace_stop"() : () -> ()
    %cst_80 = arith.constant 0.353553385 : f32
    %224 = vector.broadcast %cst_80 : f32 to vector<2x8x8xf32>
    %225 = arith.mulf %223, %224 : vector<2x8x8xf32>
    %cst_81 = arith.constant dense<0xFF800000> : vector<2x8xf32>
    %226 = vector.multi_reduction <maximumf>, %225, %cst_81 [2] : vector<2x8x8xf32> to vector<2x8xf32>
    %227 = vector.shape_cast %226 : vector<2x8xf32> to vector<2x8x1xf32>
    %228 = vector.broadcast %227 : vector<2x8x1xf32> to vector<2x8x8xf32>
    %229 = arith.subf %225, %228 : vector<2x8x8xf32>
    %230 = math.exp %229 : vector<2x8x8xf32>
    %cst_82 = arith.constant dense<0.000000e+00> : vector<2x8xf32>
    %231 = vector.multi_reduction <add>, %230, %cst_82 [2] : vector<2x8x8xf32> to vector<2x8xf32>
    %232 = vector.shape_cast %231 : vector<2x8xf32> to vector<2x8x1xf32>
    %233 = tpu.reciprocal %232 {approx = true} : vector<2x8x1xf32> -> vector<2x8x1xf32>
    %234 = vector.broadcast %233 : vector<2x8x1xf32> to vector<2x8x8xf32>
    %235 = arith.mulf %230, %234 : vector<2x8x8xf32>
    %236 = arith.truncf %235 : vector<2x8x8xf32> to vector<2x8x8xbf16>
    %237 = vector.extract_strided_slice %166 {offsets = [0, 0, 24], sizes = [2, 8, 8], strides = [1, 1, 1]} : vector<2x8x32xbf16> to vector<2x8x8xbf16>
    "tpu.trace_start"() <{level = 10 : i32, message = "bqk,bkd->bqd"}> : () -> ()
    %cst_83 = arith.constant dense<0.000000e+00> : vector<2x8x8xf32>
    %238 = tpu.matmul %236, %237, %cst_83 {dimension_numbers = #tpu.dot_dimension_numbers<[2], [1], [1], [2], [0, 0, 0, 1, 1, 2], [0], [0]>} : vector<2x8x8xbf16>, vector<2x8x8xbf16>, vector<2x8x8xf32> -> vector<2x8x8xf32>
    "tpu.trace_stop"() : () -> ()
    %239 = tpu.concatenate %184, %202, %220, %238 in 2 : vector<2x8x8xf32>, vector<2x8x8xf32>, vector<2x8x8xf32>, vector<2x8x8xf32> -> vector<2x8x32xf32>
    %240 = vector.shape_cast %239 : vector<2x8x32xf32> to vector<16x32xf32>
    %241 = arith.truncf %240 : vector<16x32xf32> to vector<16x32xbf16>
    %cst_84 = arith.constant dense<0.000000e+00> : vector<16x32xf32>
    %242 = tpu.matmul %241, %149, %cst_84 {dimension_numbers = #tpu.dot_dimension_numbers<[1], [0], [0], [1], [0, 0, 1, 1], [], []>} : vector<16x32xbf16>, vector<32x32xbf16>, vector<16x32xf32> -> vector<16x32xf32>
    %243 = vector.broadcast %150 : vector<1x32xf32> to vector<16x32xf32>
    %244 = arith.addf %242, %243 : vector<16x32xf32>
    %245 = arith.addf %144, %244 : vector<16x32xf32>
    %c0_85 = arith.constant 0 : index
    %c0_86 = arith.constant 0 : index
    %246 = vector.load %arg16[%c0_85, %c0_86] : memref<1x32xf32, #tpu.memory_space<vmem>>, vector<1x32xf32>
    %c0_87 = arith.constant 0 : index
    %c0_88 = arith.constant 0 : index
    %247 = vector.load %arg17[%c0_87, %c0_88] : memref<1x32xf32, #tpu.memory_space<vmem>>, vector<1x32xf32>
    %cst_89 = arith.constant dense<0.000000e+00> : vector<16xf32>
    %248 = vector.multi_reduction <add>, %245, %cst_89 [1] : vector<16x32xf32> to vector<16xf32>
    %249 = vector.shape_cast %248 : vector<16xf32> to vector<16x1xf32>
    %cst_90 = arith.constant 3.200000e+01 : f32
    %250 = vector.broadcast %cst_90 : f32 to vector<16x1xf32>
    %251 = arith.divf %249, %250 : vector<16x1xf32>
    %252 = vector.broadcast %251 : vector<16x1xf32> to vector<16x32xf32>
    %253 = arith.subf %245, %252 : vector<16x32xf32>
    %254 = arith.mulf %253, %253 : vector<16x32xf32>
    %cst_91 = arith.constant dense<0.000000e+00> : vector<16xf32>
    %255 = vector.multi_reduction <add>, %254, %cst_91 [1] : vector<16x32xf32> to vector<16xf32>
    %256 = vector.shape_cast %255 : vector<16xf32> to vector<16x1xf32>
    %cst_92 = arith.constant 3.200000e+01 : f32
    %257 = vector.broadcast %cst_92 : f32 to vector<16x1xf32>
    %258 = arith.divf %256, %257 : vector<16x1xf32>
    %cst_93 = arith.constant 9.99999974E-6 : f32
    %259 = vector.broadcast %cst_93 : f32 to vector<16x1xf32>
    %260 = arith.addf %258, %259 : vector<16x1xf32>
    %261 = math.rsqrt %260 : vector<16x1xf32>
    %262 = vector.broadcast %261 : vector<16x1xf32> to vector<16x32xf32>
    %263 = arith.mulf %253, %262 : vector<16x32xf32>
    %264 = vector.broadcast %246 : vector<1x32xf32> to vector<16x32xf32>
    %265 = arith.mulf %263, %264 : vector<16x32xf32>
    %266 = vector.broadcast %247 : vector<1x32xf32> to vector<16x32xf32>
    %267 = arith.addf %265, %266 : vector<16x32xf32>
    %c0_94 = arith.constant 0 : index
    %c0_95 = arith.constant 0 : index
    %268 = vector.load %arg18[%c0_94, %c0_95] : memref<32x64xbf16, #tpu.memory_space<vmem>>, vector<32x64xbf16>
    %c0_96 = arith.constant 0 : index
    %c0_97 = arith.constant 0 : index
    %269 = vector.load %arg19[%c0_96, %c0_97] : memref<1x64xf32, #tpu.memory_space<vmem>>, vector<1x64xf32>
    %c0_98 = arith.constant 0 : index
    %c0_99 = arith.constant 0 : index
    %270 = vector.load %arg20[%c0_98, %c0_99] : memref<64x32xbf16, #tpu.memory_space<vmem>>, vector<64x32xbf16>
    %c0_100 = arith.constant 0 : index
    %c0_101 = arith.constant 0 : index
    %271 = vector.load %arg21[%c0_100, %c0_101] : memref<1x32xf32, #tpu.memory_space<vmem>>, vector<1x32xf32>
    %272 = arith.truncf %267 : vector<16x32xf32> to vector<16x32xbf16>
    %cst_102 = arith.constant dense<0.000000e+00> : vector<16x64xf32>
    %273 = tpu.matmul %272, %268, %cst_102 {dimension_numbers = #tpu.dot_dimension_numbers<[1], [0], [0], [1], [0, 0, 1, 1], [], []>} : vector<16x32xbf16>, vector<32x64xbf16>, vector<16x64xf32> -> vector<16x64xf32>
    %274 = vector.broadcast %269 : vector<1x64xf32> to vector<16x64xf32>
    %275 = arith.addf %273, %274 : vector<16x64xf32>
    %cst_103 = arith.constant 0.000000e+00 : f32
    %276 = vector.broadcast %cst_103 : f32 to vector<16x64xf32>
    %277 = arith.maximumf %275, %276 : vector<16x64xf32>
    %278 = arith.truncf %277 : vector<16x64xf32> to vector<16x64xbf16>
    %cst_104 = arith.constant dense<0.000000e+00> : vector<16x32xf32>
    %279 = tpu.matmul %278, %270, %cst_104 {dimension_numbers = #tpu.dot_dimension_numbers<[1], [0], [0], [1], [0, 0, 1, 1], [], []>} : vector<16x64xbf16>, vector<64x32xbf16>, vector<16x32xf32> -> vector<16x32xf32>
    %280 = vector.broadcast %271 : vector<1x32xf32> to vector<16x32xf32>
    %281 = arith.addf %279, %280 : vector<16x32xf32>
    %282 = arith.addf %267, %281 : vector<16x32xf32>
    %c0_105 = arith.constant 0 : index
    %c0_106 = arith.constant 0 : index
    %283 = vector.load %arg22[%c0_105, %c0_106] : memref<1x32xf32, #tpu.memory_space<vmem>>, vector<1x32xf32>
    %c0_107 = arith.constant 0 : index
    %c0_108 = arith.constant 0 : index
    %284 = vector.load %arg23[%c0_107, %c0_108] : memref<1x32xf32, #tpu.memory_space<vmem>>, vector<1x32xf32>
    %cst_109 = arith.constant dense<0.000000e+00> : vector<16xf32>
    %285 = vector.multi_reduction <add>, %282, %cst_109 [1] : vector<16x32xf32> to vector<16xf32>
    %286 = vector.shape_cast %285 : vector<16xf32> to vector<16x1xf32>
    %cst_110 = arith.constant 3.200000e+01 : f32
    %287 = vector.broadcast %cst_110 : f32 to vector<16x1xf32>
    %288 = arith.divf %286, %287 : vector<16x1xf32>
    %289 = vector.broadcast %288 : vector<16x1xf32> to vector<16x32xf32>
    %290 = arith.subf %282, %289 : vector<16x32xf32>
    %291 = arith.mulf %290, %290 : vector<16x32xf32>
    %cst_111 = arith.constant dense<0.000000e+00> : vector<16xf32>
    %292 = vector.multi_reduction <add>, %291, %cst_111 [1] : vector<16x32xf32> to vector<16xf32>
    %293 = vector.shape_cast %292 : vector<16xf32> to vector<16x1xf32>
    %cst_112 = arith.constant 3.200000e+01 : f32
    %294 = vector.broadcast %cst_112 : f32 to vector<16x1xf32>
    %295 = arith.divf %293, %294 : vector<16x1xf32>
    %cst_113 = arith.constant 9.99999974E-6 : f32
    %296 = vector.broadcast %cst_113 : f32 to vector<16x1xf32>
    %297 = arith.addf %295, %296 : vector<16x1xf32>
    %298 = math.rsqrt %297 : vector<16x1xf32>
    %299 = vector.broadcast %298 : vector<16x1xf32> to vector<16x32xf32>
    %300 = arith.mulf %290, %299 : vector<16x32xf32>
    %301 = vector.broadcast %283 : vector<1x32xf32> to vector<16x32xf32>
    %302 = arith.mulf %300, %301 : vector<16x32xf32>
    %303 = vector.broadcast %284 : vector<1x32xf32> to vector<16x32xf32>
    %304 = arith.addf %302, %303 : vector<16x32xf32>
    %305 = vector.shape_cast %304 : vector<16x32xf32> to vector<2x8x32xf32>
    %c0_114 = arith.constant 0 : index
    %c0_115 = arith.constant 0 : index
    %c0_116 = arith.constant 0 : index
    %306 = vector.load %arg24[%c0_114, %c0_115, %c0_116] : memref<2x8x32xf32, #tpu.memory_space<vmem>>, vector<2x8x32xf32>
    tpu.vector_store %arg24[%c0_114, %c0_115, %c0_116], %305 {strides = array<i32>} : memref<2x8x32xf32, #tpu.memory_space<vmem>>, vector<2x8x32xf32>,
    return
  }
}

</mosaic_0001>

<llo_original>
// kernel: transformer_block_forward.3
$region0: #{transformer_block_forward.3}
  #allocation0 [shape = 'u32[]', space=smem, size = 0x4, offset = 0x4, fixed_abs, tag = 'smem constant byte address 0x4 - core index']
  #allocation1 [shape = 'u32[144,128]{1,0:T(1,128)}', space=vmem, size = 0x12000, scoped, tag = 'internal scratch']
  %s0 = inlined_call_operand.vmem [shape: f32[2,8,32], index: 0, kind: input, shape index: {}]
  %s1 = inlined_call_operand.vmem [shape: bf16[32,32], index: 1, kind: input, shape index: {}]
  %s2 = inlined_call_operand.vmem [shape: f32[1,32], index: 2, kind: input, shape index: {}]
  %s3 = inlined_call_operand.vmem [shape: bf16[32,64], index: 3, kind: input, shape index: {}]
  %s4 = inlined_call_operand.vmem [shape: f32[1,64], index: 4, kind: input, shape index: {}]
  %s5 = inlined_call_operand.vmem [shape: bf16[32,32], index: 5, kind: input, shape index: {}]
  %s6 = inlined_call_operand.vmem [shape: f32[1,32], index: 6, kind: input, shape index: {}]
  %s7 = inlined_call_operand.vmem [shape: f32[1,32], index: 7, kind: input, shape index: {}]
  %s8 = inlined_call_operand.vmem [shape: f32[1,32], index: 8, kind: input, shape index: {}]
  %s9 = inlined_call_operand.vmem [shape: bf16[32,64], index: 9, kind: input, shape index: {}]
  %s10 = inlined_call_operand.vmem [shape: f32[1,64], index: 10, kind: input, shape index: {}]
  %s11 = inlined_call_operand.vmem [shape: bf16[64,32], index: 11, kind: input, shape index: {}]
  %s12 = inlined_call_operand.vmem [shape: f32[1,32], index: 12, kind: input, shape index: {}]
  %s13 = inlined_call_operand.vmem [shape: f32[1,32], index: 13, kind: input, shape index: {}]
  %s14 = inlined_call_operand.vmem [shape: f32[1,32], index: 14, kind: input, shape index: {}]
  %s15 = inlined_call_operand.vmem [shape: f32[2,8,32], index: 15, kind: output, shape index: {}]
  %s16 = sld [smem:[#allocation0]]
  $region70: #{transformer_block_forward.3} parent=0
    _
  %s18 = ssub.s32 1, %s16
  %s19 = scalar_select 0, %s18, %s16
  // Predicated region
  $region2: #{transformer_block_forward.3} parent=0 // pred_check
    _
  $region3: #{transformer_block_forward.3} parent=0 // pred_check_branch
    %21 = sbr.rel (0) target = $region5
  $region4: #{transformer_block_forward.3} parent=0 // pred_region
    _
  $region5: #{transformer_block_forward.3} parent=0 // pred_fallthru
    _
  // Predicated region
  $region6: #{transformer_block_forward.3} parent=0 // pred_check
    _
  $region7: #{transformer_block_forward.3} parent=0 // pred_check_branch
    %23 = sbr.rel (0) target = $region9
  $region8: #{transformer_block_forward.3} parent=0 // pred_region
    _
  $region9: #{transformer_block_forward.3} parent=0 // pred_fallthru
    _
  // Predicated region
  $region10: #{transformer_block_forward.3} parent=0 // pred_check
    _
  $region11: #{transformer_block_forward.3} parent=0 // pred_check_branch
    %25 = sbr.rel (0) target = $region13
  $region12: #{transformer_block_forward.3} parent=0 // pred_region
    _
  $region13: #{transformer_block_forward.3} parent=0 // pred_fallthru
    _
  // Predicated region
  $region14: #{transformer_block_forward.3} parent=0 // pred_check
    _
  $region15: #{transformer_block_forward.3} parent=0 // pred_check_branch
    %27 = sbr.rel (0) target = $region17
  $region16: #{transformer_block_forward.3} parent=0 // pred_region
    _
  $region17: #{transformer_block_forward.3} parent=0 // pred_fallthru
    _
  // Predicated region
  $region18: #{transformer_block_forward.3} parent=0 // pred_check
    _
  $region19: #{transformer_block_forward.3} parent=0 // pred_check_branch
    %29 = sbr.rel (0) target = $region21
  $region20: #{transformer_block_forward.3} parent=0 // pred_region
    _
  $region21: #{transformer_block_forward.3} parent=0 // pred_fallthru
    _
  // Predicated region
  $region22: #{transformer_block_forward.3} parent=0 // pred_check
    _
  $region23: #{transformer_block_forward.3} parent=0 // pred_check_branch
    %31 = sbr.rel (0) target = $region25
  $region24: #{transformer_block_forward.3} parent=0 // pred_region
    _
  $region25: #{transformer_block_forward.3} parent=0 // pred_fallthru
    _
  // Predicated region
  $region26: #{transformer_block_forward.3} parent=0 // pred_check
    _
  $region27: #{transformer_block_forward.3} parent=0 // pred_check_branch
    %33 = sbr.rel (0) target = $region29
  $region28: #{transformer_block_forward.3} parent=0 // pred_region
    _
  $region29: #{transformer_block_forward.3} parent=0 // pred_fallthru
    _
  // Predicated region
  $region30: #{transformer_block_forward.3} parent=0 // pred_check
    _
  $region31: #{transformer_block_forward.3} parent=0 // pred_check_branch
    %35 = sbr.rel (0) target = $region33
  $region32: #{transformer_block_forward.3} parent=0 // pred_region
    _
  $region33: #{transformer_block_forward.3} parent=0 // pred_fallthru
    _
  // Predicated region
  $region34: #{transformer_block_forward.3} parent=0 // pred_check
    _
  $region35: #{transformer_block_forward.3} parent=0 // pred_check_branch
    %37 = sbr.rel (0) target = $region37
  $region36: #{transformer_block_forward.3} parent=0 // pred_region
    _
  $region37: #{transformer_block_forward.3} parent=0 // pred_fallthru
    _
  // Predicated region
  $region38: #{transformer_block_forward.3} parent=0 // pred_check
    _
  $region39: #{transformer_block_forward.3} parent=0 // pred_check_branch
    %39 = sbr.rel (0) target = $region41
  $region40: #{transformer_block_forward.3} parent=0 // pred_region
    _
  $region41: #{transformer_block_forward.3} parent=0 // pred_fallthru
    _
  // Predicated region
  $region42: #{transformer_block_forward.3} parent=0 // pred_check
    _
  $region43: #{transformer_block_forward.3} parent=0 // pred_check_branch
    %41 = sbr.rel (0) target = $region45
  $region44: #{transformer_block_forward.3} parent=0 // pred_region
    _
  $region45: #{transformer_block_forward.3} parent=0 // pred_fallthru
    _
  // Predicated region
  $region46: #{transformer_block_forward.3} parent=0 // pred_check
    _
  $region47: #{transformer_block_forward.3} parent=0 // pred_check_branch
    %43 = sbr.rel (0) target = $region49
  $region48: #{transformer_block_forward.3} parent=0 // pred_region
    _
  $region49: #{transformer_block_forward.3} parent=0 // pred_fallthru
    _
  // Predicated region
  $region50: #{transformer_block_forward.3} parent=0 // pred_check
    _
  $region51: #{transformer_block_forward.3} parent=0 // pred_check_branch
    %45 = sbr.rel (0) target = $region53
  $region52: #{transformer_block_forward.3} parent=0 // pred_region
    _
  $region53: #{transformer_block_forward.3} parent=0 // pred_fallthru
    _
  // Predicated region
  $region54: #{transformer_block_forward.3} parent=0 // pred_check
    _
  $region55: #{transformer_block_forward.3} parent=0 // pred_check_branch
    %47 = sbr.rel (0) target = $region57
  $region56: #{transformer_block_forward.3} parent=0 // pred_region
    _
  $region57: #{transformer_block_forward.3} parent=0 // pred_fallthru
    _
  // Predicated region
  $region58: #{transformer_block_forward.3} parent=0 // pred_check
    _
  $region59: #{transformer_block_forward.3} parent=0 // pred_check_branch
    %49 = sbr.rel (0) target = $region61
  $region60: #{transformer_block_forward.3} parent=0 // pred_region
    _
  $region61: #{transformer_block_forward.3} parent=0 // pred_fallthru
    _
  %v51 = vld [vmem:[%s0] sm:$0xff]
  %v52 = vld [vmem:[%s0 + $0x8] sm:$0xff]
  %v53 = vld [vmem:[%s1] sm:$0xf]
  %v54 = vld [vmem:[%s1 + $0x4] sm:$0xf]
  %v55 = vld [vmem:[%s1 + $0x8] sm:$0xf]
  %v56 = vld [vmem:[%s1 + $0xc] sm:$0xf]
  %v57 = vld [vmem:[%s2] sm:$0x1]
  %v58 = vld [vmem:[%s3] sm:$0xf]
  %v59 = vld [vmem:[%s3 + $0x4] sm:$0xf]
  %v60 = vld [vmem:[%s3 + $0x8] sm:$0xf]
  %v61 = vld [vmem:[%s3 + $0xc] sm:$0xf]
  %v62 = vld [vmem:[%s4] sm:$0x1]
  %v63 = vld [vmem:[%s5] sm:$0xf]
  %v64 = vld [vmem:[%s5 + $0x4] sm:$0xf]
  %v65 = vld [vmem:[%s5 + $0x8] sm:$0xf]
  %v66 = vld [vmem:[%s5 + $0xc] sm:$0xf]
  %v67 = vld [vmem:[%s6] sm:$0x1]
  %v68 = vpack.c.bf16 %v52, %v51
  %v70 = vlaneseq
  %v71 = vshrl.u32 %v70, 7
  %v72 = vsub.s32 0, %v71
  %v73 = vrot.slane %v57, %v72
  %v79 = vunpack.c.l.b16 %v53
  %v80 = vunpack.c.l.b16 %v54
  %v81 = vunpack.c.l.b16 %v55
  %v82 = vunpack.c.l.b16 %v56
  %v83 = vpack.c.b16 %v80, %v79
  %v84 = vpack.c.b16 %v82, %v81
  %vm87 = vcmask 261120
  %v89 = vsel %vm87, %v68, 0
  %91 = vmatprep.subr.bf16.mxu0 0
  %92 = vmatpush1.bf16.msra.mxu0 %v83
  %93 = vmatprep.subr.bf16.mxu0 0
  %94 = vmatpush1.bf16.msra.mxu0 %v84
  %95 = vmatprep.subr.bf16.mxu0 0
  %96 = vmatpush1.bf16.msra.mxu0 0
  %97 = vmatprep.subr.bf16.mxu0 0
  %98 = vmatpush1.bf16.msra.mxu0 0
  %99 = vmatprep.subr.bf16.mxu0 0
  %100 = vmatpush1.bf16.msra.mxu0 0
  %101 = vmatprep.subr.bf16.mxu0 0
  %102 = vmatpush1.bf16.msra.mxu0 0
  %103 = vmatprep.subr.bf16.mxu0 0
  %104 = vmatpush1.bf16.msra.mxu0 0
  %105 = vmatprep.subr.bf16.mxu0 0
  %106 = vmatpush1.bf16.msra.mxu0 0
  %107 = vmatprep.subr.bf16.mxu0 0
  %108 = vmatpush1.bf16.msra.mxu0 0
  %109 = vmatprep.subr.bf16.mxu0 0
  %110 = vmatpush1.bf16.msra.mxu0 0
  %111 = vmatprep.subr.bf16.mxu0 0
  %112 = vmatpush1.bf16.msra.mxu0 0
  %113 = vmatprep.subr.bf16.mxu0 0
  %114 = vmatpush1.bf16.msra.mxu0 0
  %115 = vmatprep.subr.bf16.mxu0 0
  %116 = vmatpush1.bf16.msra.mxu0 0
  %117 = vmatprep.subr.bf16.mxu0 0
  %118 = vmatpush1.bf16.msra.mxu0 0
  %119 = vmatprep.subr.bf16.mxu0 0
  %120 = vmatpush1.bf16.msra.mxu0 0
  %121 = vmatprep.subr.bf16.mxu0 0
  %122 = vmatpush1.bf16.msra.mxu0 0
  %123 = vmatprep.mubr.bf16.mxu0 0
  %124 = vmatmul.mubr.bf16.gmra.mrb[0].mxu0 %v89
  %v125 = vpop.f32.mrb[0].mxu0
  %v126 = vadd.f32 %v73, %v125
  %v127 = vpop.f32.mrb[0].mxu0
  %v128 = vpop.f32.mrb[0].mxu0
  %v129 = vadd.f32 %v73, %v128
  %v130 = vpop.f32.mrb[0].mxu0
  %131 = vdwg.mxu0
  %v133 = vlaneseq
  %v134 = vshrl.u32 %v133, 7
  %v135 = vsub.s32 0, %v134
  %v136 = vrot.slane %v62, %v135
  %v142 = vunpack.c.l.b16 %v58
  %v143 = vunpack.c.l.b16 %v59
  %v144 = vunpack.c.l.b16 %v60
  %v145 = vunpack.c.l.b16 %v61
  %v146 = vpack.c.b16 %v143, %v142
  %v147 = vpack.c.b16 %v145, %v144
  %150 = vmatprep.subr.bf16.mxu0 0
  %151 = vmatpush1.bf16.msra.mxu0 %v146
  %152 = vmatprep.subr.bf16.mxu0 0
  %153 = vmatpush1.bf16.msra.mxu0 %v147
  %154 = vmatprep.subr.bf16.mxu0 0
  %155 = vmatpush1.bf16.msra.mxu0 0
  %156 = vmatprep.subr.bf16.mxu0 0
  %157 = vmatpush1.bf16.msra.mxu0 0
  %158 = vmatprep.subr.bf16.mxu0 0
  %159 = vmatpush1.bf16.msra.mxu0 0
  %160 = vmatprep.subr.bf16.mxu0 0
  %161 = vmatpush1.bf16.msra.mxu0 0
  %162 = vmatprep.subr.bf16.mxu0 0
  %163 = vmatpush1.bf16.msra.mxu0 0
  %164 = vmatprep.subr.bf16.mxu0 0
  %165 = vmatpush1.bf16.msra.mxu0 0
  %166 = vmatprep.subr.bf16.mxu0 0
  %167 = vmatpush1.bf16.msra.mxu0 0
  %168 = vmatprep.subr.bf16.mxu0 0
  %169 = vmatpush1.bf16.msra.mxu0 0
  %170 = vmatprep.subr.bf16.mxu0 0
  %171 = vmatpush1.bf16.msra.mxu0 0
  %172 = vmatprep.subr.bf16.mxu0 0
  %173 = vmatpush1.bf16.msra.mxu0 0
  %174 = vmatprep.subr.bf16.mxu0 0
  %175 = vmatpush1.bf16.msra.mxu0 0
  %176 = vmatprep.subr.bf16.mxu0 0
  %177 = vmatpush1.bf16.msra.mxu0 0
  %178 = vmatprep.subr.bf16.mxu0 0
  %179 = vmatpush1.bf16.msra.mxu0 0
  %180 = vmatprep.subr.bf16.mxu0 0
  %181 = vmatpush1.bf16.msra.mxu0 0
  %182 = vmatprep.mubr.bf16.mxu0 0
  %183 = vmatmul.mubr.bf16.gmra.mrb[0].mxu0 %v89
  %v184 = vpop.f32.mrb[0].mxu0
  %v185 = vadd.f32 %v136, %v184
  %v186 = vpop.f32.mrb[0].mxu0
  %v187 = vpop.f32.mrb[0].mxu0
  %v188 = vadd.f32 %v136, %v187
  %v189 = vpop.f32.mrb[0].mxu0
  %190 = vdwg.mxu0
  %v191 = vpack.c.bf16 %v129, %v126
  %v193 = vunpack.c.l.b16 %v191
  %v194 = vunpack.c.h.b16 %v191
  %v195 = vpack.c.b16 %v193, %v193
  %v196 = vpack.c.b16 %v194, %v194
  %v197 = vpack.c.bf16 %v188, %v185
  %v199 = vunpack.c.l.b16 %v197
  %v200 = vunpack.c.h.b16 %v197
  %v201 = vpack.c.b16 %v199, %v199
  %v202 = vpack.c.b16 %v200, %v200
  %v203 = vlaneseq
  %v204 = vshrl.u32 %v203, 7
  %v205 = vlaneseq
  %v206 = vand.u32 %v205, 127
  %vm207 = vcmp.le.s32.totalorder %v206, %v204
  %v208 = vsel %vm207, 0.0, -1e+09
  %vm209 = vcmask 64512
  %v211 = vsel %vm209, %v195, 0
  %v214 = vsel %vm209, %v201, 0
  %216 = vmatprep.subr.bf16.mxu0 0
  %217 = vmatpush1.bf16.xpose.msra.mxu0 %v214
  %218 = vmatprep.subr.bf16.mxu0 0
  %219 = vmatpush1.bf16.xpose.msra.mxu0 0
  %220 = vmatprep.subr.bf16.mxu0 0
  %221 = vmatpush1.bf16.xpose.msra.mxu0 0
  %222 = vmatprep.subr.bf16.mxu0 0
  %223 = vmatpush1.bf16.xpose.msra.mxu0 0
  %224 = vmatprep.subr.bf16.mxu0 0
  %225 = vmatpush1.bf16.xpose.msra.mxu0 0
  %226 = vmatprep.subr.bf16.mxu0 0
  %227 = vmatpush1.bf16.xpose.msra.mxu0 0
  %228 = vmatprep.subr.bf16.mxu0 0
  %229 = vmatpush1.bf16.xpose.msra.mxu0 0
  %230 = vmatprep.subr.bf16.mxu0 0
  %231 = vmatpush1.bf16.xpose.msra.mxu0 0
  %232 = vmatprep.subr.bf16.mxu0 0
  %233 = vmatpush1.bf16.xpose.msra.mxu0 0
  %234 = vmatprep.subr.bf16.mxu0 0
  %235 = vmatpush1.bf16.xpose.msra.mxu0 0
  %236 = vmatprep.subr.bf16.mxu0 0
  %237 = vmatpush1.bf16.xpose.msra.mxu0 0
  %238 = vmatprep.subr.bf16.mxu0 0
  %239 = vmatpush1.bf16.xpose.msra.mxu0 0
  %240 = vmatprep.subr.bf16.mxu0 0
  %241 = vmatpush1.bf16.xpose.msra.mxu0 0
  %242 = vmatprep.subr.bf16.mxu0 0
  %243 = vmatpush1.bf16.xpose.msra.mxu0 0
  %244 = vmatprep.subr.bf16.mxu0 0
  %245 = vmatpush1.bf16.xpose.msra.mxu0 0
  %246 = vmatprep.subr.bf16.mxu0 0
  %247 = vmatpush1.bf16.xpose.msra.mxu0 0
  %248 = vmatprep.mubr.bf16.mxu0 0
  %249 = vmatmul.mubr.bf16.gmra.mrb[0].mxu0 %v211
  %v250 = vpop.f32.mrb[0].mxu0
  %v251 = vadd.f32 0.0, %v250
  %v252 = vpop.f32.mrb[0].mxu0
  %v253 = vpop.f32.mrb[0].mxu0
  %v254 = vpop.f32.mrb[0].mxu0
  %255 = vdwg.mxu0
  %v257 = vsel %vm209, %v196, 0
  %v260 = vsel %vm209, %v202, 0
  %262 = vmatprep.subr.bf16.mxu0 0
  %263 = vmatpush1.bf16.xpose.msra.mxu0 %v260
  %264 = vmatprep.subr.bf16.mxu0 0
  %265 = vmatpush1.bf16.xpose.msra.mxu0 0
  %266 = vmatprep.subr.bf16.mxu0 0
  %267 = vmatpush1.bf16.xpose.msra.mxu0 0
  %268 = vmatprep.subr.bf16.mxu0 0
  %269 = vmatpush1.bf16.xpose.msra.mxu0 0
  %270 = vmatprep.subr.bf16.mxu0 0
  %271 = vmatpush1.bf16.xpose.msra.mxu0 0
  %272 = vmatprep.subr.bf16.mxu0 0
  %273 = vmatpush1.bf16.xpose.msra.mxu0 0
  %274 = vmatprep.subr.bf16.mxu0 0
  %275 = vmatpush1.bf16.xpose.msra.mxu0 0
  %276 = vmatprep.subr.bf16.mxu0 0
  %277 = vmatpush1.bf16.xpose.msra.mxu0 0
  %278 = vmatprep.subr.bf16.mxu0 0
  %279 = vmatpush1.bf16.xpose.msra.mxu0 0
  %280 = vmatprep.subr.bf16.mxu0 0
  %281 = vmatpush1.bf16.xpose.msra.mxu0 0
  %282 = vmatprep.subr.bf16.mxu0 0
  %283 = vmatpush1.bf16.xpose.msra.mxu0 0
  %284 = vmatprep.subr.bf16.mxu0 0
  %285 = vmatpush1.bf16.xpose.msra.mxu0 0
  %286 = vmatprep.subr.bf16.mxu0 0
  %287 = vmatpush1.bf16.xpose.msra.mxu0 0
  %288 = vmatprep.subr.bf16.mxu0 0
  %289 = vmatpush1.bf16.xpose.msra.mxu0 0
  %290 = vmatprep.subr.bf16.mxu0 0
  %291 = vmatpush1.bf16.xpose.msra.mxu0 0
  %292 = vmatprep.subr.bf16.mxu0 0
  %293 = vmatpush1.bf16.xpose.msra.mxu0 0
  %294 = vmatprep.mubr.bf16.mxu0 0
  %295 = vmatmul.mubr.bf16.gmra.mrb[0].mxu0 %v257
  %v296 = vpop.f32.mrb[0].mxu0
  %v297 = vadd.f32 0.0, %v296
  %v298 = vpop.f32.mrb[0].mxu0
  %v299 = vpop.f32.mrb[0].mxu0
  %v300 = vpop.f32.mrb[0].mxu0
  %301 = vdwg.mxu0
  %v302 = vmul.f32 %v251, 0.35355338
  %v303 = vmul.f32 %v297, 0.35355338
  %v304 = vadd.f32 %v302, %v208
  %v305 = vadd.f32 %v303, %v208
  %v306 = vsel %vm209, %v304, -inf
  %307 = vmax.xlane.f32.xlu0 %v306
  %v308 = vpop.xlane.xlu0 %307
  %v309 = vsel %vm209, %v305, -inf
  %310 = vmax.xlane.f32.xlu0 %v309
  %v311 = vpop.xlane.xlu0 %310
  %v312 = vsub.f32 %v304, %v308
  %v313 = vsub.f32 %v305, %v311
  %v314 = vmul.f32 %v312, 1.442695
  %v315 = vpow.pop %v314
  %v316 = vmul.f32 %v313, 1.442695
  %v317 = vpow.pop %v316
  %v318 = vsel %vm209, %v315, 0.0
  %319 = vadd.xlane.f32.xlu0 %v318
  %v320 = vpop.xlane.xlu0 %319
  %v321 = vsel %vm209, %v317, 0.0
  %322 = vadd.xlane.f32.xlu0 %v321
  %v323 = vpop.xlane.xlu0 %322
  %v324 = vrcp.pop %v320
  %v325 = vrcp.pop %v323
  %v326 = vmul.f32 %v315, %v324
  %v327 = vmul.f32 %v317, %v325
  %v328 = vpack.c.bf16 %v326, %v326
  %v329 = vpack.c.bf16 %v327, %v327
  %330 = vrot.lane.b32.xlu0 %v201, 96
  %v331 = vpop.permute.xlu0 %330
  %v333 = vsel %vm209, %v328, 0
  %vm335 = vcmask 1043456
  %v337 = vsel %vm335, %v331, 0
  %339 = vmatprep.subr.bf16.mxu0 0
  %340 = vmatpush1.bf16.msra.mxu0 %v337
  %341 = vmatprep.subr.bf16.mxu0 0
  %342 = vmatpush1.bf16.msra.mxu0 0
  %343 = vmatprep.subr.bf16.mxu0 0
  %344 = vmatpush1.bf16.msra.mxu0 0
  %345 = vmatprep.subr.bf16.mxu0 0
  %346 = vmatpush1.bf16.msra.mxu0 0
  %347 = vmatprep.subr.bf16.mxu0 0
  %348 = vmatpush1.bf16.msra.mxu0 0
  %349 = vmatprep.subr.bf16.mxu0 0
  %350 = vmatpush1.bf16.msra.mxu0 0
  %351 = vmatprep.subr.bf16.mxu0 0
  %352 = vmatpush1.bf16.msra.mxu0 0
  %353 = vmatprep.subr.bf16.mxu0 0
  %354 = vmatpush1.bf16.msra.mxu0 0
  %355 = vmatprep.subr.bf16.mxu0 0
  %356 = vmatpush1.bf16.msra.mxu0 0
  %357 = vmatprep.subr.bf16.mxu0 0
  %358 = vmatpush1.bf16.msra.mxu0 0
  %359 = vmatprep.subr.bf16.mxu0 0
  %360 = vmatpush1.bf16.msra.mxu0 0
  %361 = vmatprep.subr.bf16.mxu0 0
  %362 = vmatpush1.bf16.msra.mxu0 0
  %363 = vmatprep.subr.bf16.mxu0 0
  %364 = vmatpush1.bf16.msra.mxu0 0
  %365 = vmatprep.subr.bf16.mxu0 0
  %366 = vmatpush1.bf16.msra.mxu0 0
  %367 = vmatprep.subr.bf16.mxu0 0
  %368 = vmatpush1.bf16.msra.mxu0 0
  %369 = vmatprep.subr.bf16.mxu0 0
  %370 = vmatpush1.bf16.msra.mxu0 0
  %371 = vmatprep.mubr.bf16.mxu0 0
  %372 = vmatmul.mubr.bf16.gmra.mrb[0].mxu0 %v333
  %v373 = vpop.f32.mrb[0].mxu0
  %v374 = vadd.f32 0.0, %v373
  %v375 = vpop.f32.mrb[0].mxu0
  %v376 = vpop.f32.mrb[0].mxu0
  %v377 = vpop.f32.mrb[0].mxu0
  %378 = vdwg.mxu0
  %379 = vrot.lane.b32.xlu0 %v202, 96
  %v380 = vpop.permute.xlu0 %379
  %v382 = vsel %vm209, %v329, 0
  %v385 = vsel %vm335, %v380, 0
  %387 = vmatprep.subr.bf16.mxu0 0
  %388 = vmatpush1.bf16.msra.mxu0 %v385
  %389 = vmatprep.subr.bf16.mxu0 0
  %390 = vmatpush1.bf16.msra.mxu0 0
  %391 = vmatprep.subr.bf16.mxu0 0
  %392 = vmatpush1.bf16.msra.mxu0 0
  %393 = vmatprep.subr.bf16.mxu0 0
  %394 = vmatpush1.bf16.msra.mxu0 0
  %395 = vmatprep.subr.bf16.mxu0 0
  %396 = vmatpush1.bf16.msra.mxu0 0
  %397 = vmatprep.subr.bf16.mxu0 0
  %398 = vmatpush1.bf16.msra.mxu0 0
  %399 = vmatprep.subr.bf16.mxu0 0
  %400 = vmatpush1.bf16.msra.mxu0 0
  %401 = vmatprep.subr.bf16.mxu0 0
  %402 = vmatpush1.bf16.msra.mxu0 0
  %403 = vmatprep.subr.bf16.mxu0 0
  %404 = vmatpush1.bf16.msra.mxu0 0
  %405 = vmatprep.subr.bf16.mxu0 0
  %406 = vmatpush1.bf16.msra.mxu0 0
  %407 = vmatprep.subr.bf16.mxu0 0
  %408 = vmatpush1.bf16.msra.mxu0 0
  %409 = vmatprep.subr.bf16.mxu0 0
  %410 = vmatpush1.bf16.msra.mxu0 0
  %411 = vmatprep.subr.bf16.mxu0 0
  %412 = vmatpush1.bf16.msra.mxu0 0
  %413 = vmatprep.subr.bf16.mxu0 0
  %414 = vmatpush1.bf16.msra.mxu0 0
  %415 = vmatprep.subr.bf16.mxu0 0
  %416 = vmatpush1.bf16.msra.mxu0 0
  %417 = vmatprep.subr.bf16.mxu0 0
  %418 = vmatpush1.bf16.msra.mxu0 0
  %419 = vmatprep.mubr.bf16.mxu0 0
  %420 = vmatmul.mubr.bf16.gmra.mrb[0].mxu0 %v382
  %v421 = vpop.f32.mrb[0].mxu0
  %v422 = vadd.f32 0.0, %v421
  %v423 = vpop.f32.mrb[0].mxu0
  %v424 = vpop.f32.mrb[0].mxu0
  %v425 = vpop.f32.mrb[0].mxu0
  %426 = vdwg.mxu0
  %427 = vrot.lane.b32.xlu0 %v195, 120
  %v428 = vpop.permute.xlu0 %427
  %429 = vrot.lane.b32.xlu0 %v201, 120
  %v430 = vpop.permute.xlu0 %429
  %v432 = vsel %vm209, %v428, 0
  %v435 = vsel %vm209, %v430, 0
  %437 = vmatprep.subr.bf16.mxu0 0
  %438 = vmatpush1.bf16.xpose.msra.mxu0 %v435
  %439 = vmatprep.subr.bf16.mxu0 0
  %440 = vmatpush1.bf16.xpose.msra.mxu0 0
  %441 = vmatprep.subr.bf16.mxu0 0
  %442 = vmatpush1.bf16.xpose.msra.mxu0 0
  %443 = vmatprep.subr.bf16.mxu0 0
  %444 = vmatpush1.bf16.xpose.msra.mxu0 0
  %445 = vmatprep.subr.bf16.mxu0 0
  %446 = vmatpush1.bf16.xpose.msra.mxu0 0
  %447 = vmatprep.subr.bf16.mxu0 0
  %448 = vmatpush1.bf16.xpose.msra.mxu0 0
  %449 = vmatprep.subr.bf16.mxu0 0
  %450 = vmatpush1.bf16.xpose.msra.mxu0 0
  %451 = vmatprep.subr.bf16.mxu0 0
  %452 = vmatpush1.bf16.xpose.msra.mxu0 0
  %453 = vmatprep.subr.bf16.mxu0 0
  %454 = vmatpush1.bf16.xpose.msra.mxu0 0
  %455 = vmatprep.subr.bf16.mxu0 0
  %456 = vmatpush1.bf16.xpose.msra.mxu0 0
  %457 = vmatprep.subr.bf16.mxu0 0
  %458 = vmatpush1.bf16.xpose.msra.mxu0 0
  %459 = vmatprep.subr.bf16.mxu0 0
  %460 = vmatpush1.bf16.xpose.msra.mxu0 0
  %461 = vmatprep.subr.bf16.mxu0 0
  %462 = vmatpush1.bf16.xpose.msra.mxu0 0
  %463 = vmatprep.subr.bf16.mxu0 0
  %464 = vmatpush1.bf16.xpose.msra.mxu0 0
  %465 = vmatprep.subr.bf16.mxu0 0
  %466 = vmatpush1.bf16.xpose.msra.mxu0 0
  %467 = vmatprep.subr.bf16.mxu0 0
  %468 = vmatpush1.bf16.xpose.msra.mxu0 0
  %469 = vmatprep.mubr.bf16.mxu0 0
  %470 = vmatmul.mubr.bf16.gmra.mrb[0].mxu0 %v432
  %v471 = vpop.f32.mrb[0].mxu0
  %v472 = vadd.f32 0.0, %v471
  %v473 = vpop.f32.mrb[0].mxu0
  %v474 = vpop.f32.mrb[0].mxu0
  %v475 = vpop.f32.mrb[0].mxu0
  %476 = vdwg.mxu0
  %477 = vrot.lane.b32.xlu0 %v196, 120
  %v478 = vpop.permute.xlu0 %477
  %479 = vrot.lane.b32.xlu0 %v202, 120
  %v480 = vpop.permute.xlu0 %479
  %v482 = vsel %vm209, %v478, 0
  %v485 = vsel %vm209, %v480, 0
  %487 = vmatprep.subr.bf16.mxu0 0
  %488 = vmatpush1.bf16.xpose.msra.mxu0 %v485
  %489 = vmatprep.subr.bf16.mxu0 0
  %490 = vmatpush1.bf16.xpose.msra.mxu0 0
  %491 = vmatprep.subr.bf16.mxu0 0
  %492 = vmatpush1.bf16.xpose.msra.mxu0 0
  %493 = vmatprep.subr.bf16.mxu0 0
  %494 = vmatpush1.bf16.xpose.msra.mxu0 0
  %495 = vmatprep.subr.bf16.mxu0 0
  %496 = vmatpush1.bf16.xpose.msra.mxu0 0
  %497 = vmatprep.subr.bf16.mxu0 0
  %498 = vmatpush1.bf16.xpose.msra.mxu0 0
  %499 = vmatprep.subr.bf16.mxu0 0
  %500 = vmatpush1.bf16.xpose.msra.mxu0 0
  %501 = vmatprep.subr.bf16.mxu0 0
  %502 = vmatpush1.bf16.xpose.msra.mxu0 0
  %503 = vmatprep.subr.bf16.mxu0 0
  %504 = vmatpush1.bf16.xpose.msra.mxu0 0
  %505 = vmatprep.subr.bf16.mxu0 0
  %506 = vmatpush1.bf16.xpose.msra.mxu0 0
  %507 = vmatprep.subr.bf16.mxu0 0
  %508 = vmatpush1.bf16.xpose.msra.mxu0 0
  %509 = vmatprep.subr.bf16.mxu0 0
  %510 = vmatpush1.bf16.xpose.msra.mxu0 0
  %511 = vmatprep.subr.bf16.mxu0 0
  %512 = vmatpush1.bf16.xpose.msra.mxu0 0
  %513 = vmatprep.subr.bf16.mxu0 0
  %514 = vmatpush1.bf16.xpose.msra.mxu0 0
  %515 = vmatprep.subr.bf16.mxu0 0
  %516 = vmatpush1.bf16.xpose.msra.mxu0 0
  %517 = vmatprep.subr.bf16.mxu0 0
  %518 = vmatpush1.bf16.xpose.msra.mxu0 0
  %519 = vmatprep.mubr.bf16.mxu0 0
  %520 = vmatmul.mubr.bf16.gmra.mrb[0].mxu0 %v482
  %v521 = vpop.f32.mrb[0].mxu0
  %v522 = vadd.f32 0.0, %v521
  %v523 = vpop.f32.mrb[0].mxu0
  %v524 = vpop.f32.mrb[0].mxu0
  %v525 = vpop.f32.mrb[0].mxu0
  %526 = vdwg.mxu0
  %v527 = vmul.f32 %v472, 0.35355338
  %v528 = vmul.f32 %v522, 0.35355338
  %v529 = vadd.f32 %v527, %v208
  %v530 = vadd.f32 %v528, %v208
  %v531 = vsel %vm209, %v529, -inf
  %532 = vmax.xlane.f32.xlu0 %v531
  %v533 = vpop.xlane.xlu0 %532
  %v534 = vsel %vm209, %v530, -inf
  %535 = vmax.xlane.f32.xlu0 %v534
  %v536 = vpop.xlane.xlu0 %535
  %v537 = vsub.f32 %v529, %v533
  %v538 = vsub.f32 %v530, %v536
  %v539 = vmul.f32 %v537, 1.442695
  %v540 = vpow.pop %v539
  %v541 = vmul.f32 %v538, 1.442695
  %v542 = vpow.pop %v541
  %v543 = vsel %vm209, %v540, 0.0
  %544 = vadd.xlane.f32.xlu0 %v543
  %v545 = vpop.xlane.xlu0 %544
  %v546 = vsel %vm209, %v542, 0.0
  %547 = vadd.xlane.f32.xlu0 %v546
  %v548 = vpop.xlane.xlu0 %547
  %v549 = vrcp.pop %v545
  %v550 = vrcp.pop %v548
  %v551 = vmul.f32 %v540, %v549
  %v552 = vmul.f32 %v542, %v550
  %v553 = vpack.c.bf16 %v551, %v551
  %v554 = vpack.c.bf16 %v552, %v552
  %555 = vrot.lane.b32.xlu0 %v201, 88
  %v556 = vpop.permute.xlu0 %555
  %v558 = vsel %vm209, %v553, 0
  %v561 = vsel %vm335, %v556, 0
  %563 = vmatprep.subr.bf16.mxu0 0
  %564 = vmatpush1.bf16.msra.mxu0 %v561
  %565 = vmatprep.subr.bf16.mxu0 0
  %566 = vmatpush1.bf16.msra.mxu0 0
  %567 = vmatprep.subr.bf16.mxu0 0
  %568 = vmatpush1.bf16.msra.mxu0 0
  %569 = vmatprep.subr.bf16.mxu0 0
  %570 = vmatpush1.bf16.msra.mxu0 0
  %571 = vmatprep.subr.bf16.mxu0 0
  %572 = vmatpush1.bf16.msra.mxu0 0
  %573 = vmatprep.subr.bf16.mxu0 0
  %574 = vmatpush1.bf16.msra.mxu0 0
  %575 = vmatprep.subr.bf16.mxu0 0
  %576 = vmatpush1.bf16.msra.mxu0 0
  %577 = vmatprep.subr.bf16.mxu0 0
  %578 = vmatpush1.bf16.msra.mxu0 0
  %579 = vmatprep.subr.bf16.mxu0 0
  %580 = vmatpush1.bf16.msra.mxu0 0
  %581 = vmatprep.subr.bf16.mxu0 0
  %582 = vmatpush1.bf16.msra.mxu0 0
  %583 = vmatprep.subr.bf16.mxu0 0
  %584 = vmatpush1.bf16.msra.mxu0 0
  %585 = vmatprep.subr.bf16.mxu0 0
  %586 = vmatpush1.bf16.msra.mxu0 0
  %587 = vmatprep.subr.bf16.mxu0 0
  %588 = vmatpush1.bf16.msra.mxu0 0
  %589 = vmatprep.subr.bf16.mxu0 0
  %590 = vmatpush1.bf16.msra.mxu0 0
  %591 = vmatprep.subr.bf16.mxu0 0
  %592 = vmatpush1.bf16.msra.mxu0 0
  %593 = vmatprep.subr.bf16.mxu0 0
  %594 = vmatpush1.bf16.msra.mxu0 0
  %595 = vmatprep.mubr.bf16.mxu0 0
  %596 = vmatmul.mubr.bf16.gmra.mrb[0].mxu0 %v558
  %v597 = vpop.f32.mrb[0].mxu0
  %v598 = vadd.f32 0.0, %v597
  %v599 = vpop.f32.mrb[0].mxu0
  %v600 = vpop.f32.mrb[0].mxu0
  %v601 = vpop.f32.mrb[0].mxu0
  %602 = vdwg.mxu0
  %603 = vrot.lane.b32.xlu0 %v202, 88
  %v604 = vpop.permute.xlu0 %603
  %v606 = vsel %vm209, %v554, 0
  %v609 = vsel %vm335, %v604, 0
  %611 = vmatprep.subr.bf16.mxu0 0
  %612 = vmatpush1.bf16.msra.mxu0 %v609
  %613 = vmatprep.subr.bf16.mxu0 0
  %614 = vmatpush1.bf16.msra.mxu0 0
  %615 = vmatprep.subr.bf16.mxu0 0
  %616 = vmatpush1.bf16.msra.mxu0 0
  %617 = vmatprep.subr.bf16.mxu0 0
  %618 = vmatpush1.bf16.msra.mxu0 0
  %619 = vmatprep.subr.bf16.mxu0 0
  %620 = vmatpush1.bf16.msra.mxu0 0
  %621 = vmatprep.subr.bf16.mxu0 0
  %622 = vmatpush1.bf16.msra.mxu0 0
  %623 = vmatprep.subr.bf16.mxu0 0
  %624 = vmatpush1.bf16.msra.mxu0 0
  %625 = vmatprep.subr.bf16.mxu0 0
  %626 = vmatpush1.bf16.msra.mxu0 0
  %627 = vmatprep.subr.bf16.mxu0 0
  %628 = vmatpush1.bf16.msra.mxu0 0
  %629 = vmatprep.subr.bf16.mxu0 0
  %630 = vmatpush1.bf16.msra.mxu0 0
  %631 = vmatprep.subr.bf16.mxu0 0
  %632 = vmatpush1.bf16.msra.mxu0 0
  %633 = vmatprep.subr.bf16.mxu0 0
  %634 = vmatpush1.bf16.msra.mxu0 0
  %635 = vmatprep.subr.bf16.mxu0 0
  %636 = vmatpush1.bf16.msra.mxu0 0
  %637 = vmatprep.subr.bf16.mxu0 0
  %638 = vmatpush1.bf16.msra.mxu0 0
  %639 = vmatprep.subr.bf16.mxu0 0
  %640 = vmatpush1.bf16.msra.mxu0 0
  %641 = vmatprep.subr.bf16.mxu0 0
  %642 = vmatpush1.bf16.msra.mxu0 0
  %643 = vmatprep.mubr.bf16.mxu0 0
  %644 = vmatmul.mubr.bf16.gmra.mrb[0].mxu0 %v606
  %v645 = vpop.f32.mrb[0].mxu0
  %v646 = vadd.f32 0.0, %v645
  %v647 = vpop.f32.mrb[0].mxu0
  %v648 = vpop.f32.mrb[0].mxu0
  %v649 = vpop.f32.mrb[0].mxu0
  %650 = vdwg.mxu0
  %651 = vrot.lane.b32.xlu0 %v195, 112
  %v652 = vpop.permute.xlu0 %651
  %653 = vrot.lane.b32.xlu0 %v201, 112
  %v654 = vpop.permute.xlu0 %653
  %v656 = vsel %vm209, %v652, 0
  %v659 = vsel %vm209, %v654, 0
  %661 = vmatprep.subr.bf16.mxu0 0
  %662 = vmatpush1.bf16.xpose.msra.mxu0 %v659
  %663 = vmatprep.subr.bf16.mxu0 0
  %664 = vmatpush1.bf16.xpose.msra.mxu0 0
  %665 = vmatprep.subr.bf16.mxu0 0
  %666 = vmatpush1.bf16.xpose.msra.mxu0 0
  %667 = vmatprep.subr.bf16.mxu0 0
  %668 = vmatpush1.bf16.xpose.msra.mxu0 0
  %669 = vmatprep.subr.bf16.mxu0 0
  %670 = vmatpush1.bf16.xpose.msra.mxu0 0
  %671 = vmatprep.subr.bf16.mxu0 0
  %672 = vmatpush1.bf16.xpose.msra.mxu0 0
  %673 = vmatprep.subr.bf16.mxu0 0
  %674 = vmatpush1.bf16.xpose.msra.mxu0 0
  %675 = vmatprep.subr.bf16.mxu0 0
  %676 = vmatpush1.bf16.xpose.msra.mxu0 0
  %677 = vmatprep.subr.bf16.mxu0 0
  %678 = vmatpush1.bf16.xpose.msra.mxu0 0
  %679 = vmatprep.subr.bf16.mxu0 0
  %680 = vmatpush1.bf16.xpose.msra.mxu0 0
  %681 = vmatprep.subr.bf16.mxu0 0
  %682 = vmatpush1.bf16.xpose.msra.mxu0 0
  %683 = vmatprep.subr.bf16.mxu0 0
  %684 = vmatpush1.bf16.xpose.msra.mxu0 0
  %685 = vmatprep.subr.bf16.mxu0 0
  %686 = vmatpush1.bf16.xpose.msra.mxu0 0
  %687 = vmatprep.subr.bf16.mxu0 0
  %688 = vmatpush1.bf16.xpose.msra.mxu0 0
  %689 = vmatprep.subr.bf16.mxu0 0
  %690 = vmatpush1.bf16.xpose.msra.mxu0 0
  %691 = vmatprep.subr.bf16.mxu0 0
  %692 = vmatpush1.bf16.xpose.msra.mxu0 0
  %693 = vmatprep.mubr.bf16.mxu0 0
  %694 = vmatmul.mubr.bf16.gmra.mrb[0].mxu0 %v656
  %v695 = vpop.f32.mrb[0].mxu0
  %v696 = vadd.f32 0.0, %v695
  %v697 = vpop.f32.mrb[0].mxu0
  %v698 = vpop.f32.mrb[0].mxu0
  %v699 = vpop.f32.mrb[0].mxu0
  %700 = vdwg.mxu0
  %701 = vrot.lane.b32.xlu0 %v196, 112
  %v702 = vpop.permute.xlu0 %701
  %703 = vrot.lane.b32.xlu0 %v202, 112
  %v704 = vpop.permute.xlu0 %703
  %v706 = vsel %vm209, %v702, 0
  %v709 = vsel %vm209, %v704, 0
  %711 = vmatprep.subr.bf16.mxu0 0
  %712 = vmatpush1.bf16.xpose.msra.mxu0 %v709
  %713 = vmatprep.subr.bf16.mxu0 0
  %714 = vmatpush1.bf16.xpose.msra.mxu0 0
  %715 = vmatprep.subr.bf16.mxu0 0
  %716 = vmatpush1.bf16.xpose.msra.mxu0 0
  %717 = vmatprep.subr.bf16.mxu0 0
  %718 = vmatpush1.bf16.xpose.msra.mxu0 0
  %719 = vmatprep.subr.bf16.mxu0 0
  %720 = vmatpush1.bf16.xpose.msra.mxu0 0
  %721 = vmatprep.subr.bf16.mxu0 0
  %722 = vmatpush1.bf16.xpose.msra.mxu0 0
  %723 = vmatprep.subr.bf16.mxu0 0
  %724 = vmatpush1.bf16.xpose.msra.mxu0 0
  %725 = vmatprep.subr.bf16.mxu0 0
  %726 = vmatpush1.bf16.xpose.msra.mxu0 0
  %727 = vmatprep.subr.bf16.mxu0 0
  %728 = vmatpush1.bf16.xpose.msra.mxu0 0
  %729 = vmatprep.subr.bf16.mxu0 0
  %730 = vmatpush1.bf16.xpose.msra.mxu0 0
  %731 = vmatprep.subr.bf16.mxu0 0
  %732 = vmatpush1.bf16.xpose.msra.mxu0 0
  %733 = vmatprep.subr.bf16.mxu0 0
  %734 = vmatpush1.bf16.xpose.msra.mxu0 0
  %735 = vmatprep.subr.bf16.mxu0 0
  %736 = vmatpush1.bf16.xpose.msra.mxu0 0
  %737 = vmatprep.subr.bf16.mxu0 0
  %738 = vmatpush1.bf16.xpose.msra.mxu0 0
  %739 = vmatprep.subr.bf16.mxu0 0
  %740 = vmatpush1.bf16.xpose.msra.mxu0 0
  %741 = vmatprep.subr.bf16.mxu0 0
  %742 = vmatpush1.bf16.xpose.msra.mxu0 0
  %743 = vmatprep.mubr.bf16.mxu0 0
  %744 = vmatmul.mubr.bf16.gmra.mrb[0].mxu0 %v706
  %v745 = vpop.f32.mrb[0].mxu0
  %v746 = vadd.f32 0.0, %v745
  %v747 = vpop.f32.mrb[0].mxu0
  %v748 = vpop.f32.mrb[0].mxu0
  %v749 = vpop.f32.mrb[0].mxu0
  %750 = vdwg.mxu0
  %v751 = vmul.f32 %v696, 0.35355338
  %v752 = vmul.f32 %v746, 0.35355338
  %v753 = vadd.f32 %v751, %v208
  %v754 = vadd.f32 %v752, %v208
  %v755 = vsel %vm209, %v753, -inf
  %756 = vmax.xlane.f32.xlu0 %v755
  %v757 = vpop.xlane.xlu0 %756
  %v758 = vsel %vm209, %v754, -inf
  %759 = vmax.xlane.f32.xlu0 %v758
  %v760 = vpop.xlane.xlu0 %759
  %v761 = vsub.f32 %v753, %v757
  %v762 = vsub.f32 %v754, %v760
  %v763 = vmul.f32 %v761, 1.442695
  %v764 = vpow.pop %v763
  %v765 = vmul.f32 %v762, 1.442695
  %v766 = vpow.pop %v765
  %v767 = vsel %vm209, %v764, 0.0
  %768 = vadd.xlane.f32.xlu0 %v767
  %v769 = vpop.xlane.xlu0 %768
  %v770 = vsel %vm209, %v766, 0.0
  %771 = vadd.xlane.f32.xlu0 %v770
  %v772 = vpop.xlane.xlu0 %771
  %v773 = vrcp.pop %v769
  %v774 = vrcp.pop %v772
  %v775 = vmul.f32 %v764, %v773
  %v776 = vmul.f32 %v766, %v774
  %v777 = vpack.c.bf16 %v775, %v775
  %v778 = vpack.c.bf16 %v776, %v776
  %779 = vrot.lane.b32.xlu0 %v201, 80
  %v780 = vpop.permute.xlu0 %779
  %v782 = vsel %vm209, %v777, 0
  %v785 = vsel %vm335, %v780, 0
  %787 = vmatprep.subr.bf16.mxu0 0
  %788 = vmatpush1.bf16.msra.mxu0 %v785
  %789 = vmatprep.subr.bf16.mxu0 0
  %790 = vmatpush1.bf16.msra.mxu0 0
  %791 = vmatprep.subr.bf16.mxu0 0
  %792 = vmatpush1.bf16.msra.mxu0 0
  %793 = vmatprep.subr.bf16.mxu0 0
  %794 = vmatpush1.bf16.msra.mxu0 0
  %795 = vmatprep.subr.bf16.mxu0 0
  %796 = vmatpush1.bf16.msra.mxu0 0
  %797 = vmatprep.subr.bf16.mxu0 0
  %798 = vmatpush1.bf16.msra.mxu0 0
  %799 = vmatprep.subr.bf16.mxu0 0
  %800 = vmatpush1.bf16.msra.mxu0 0
  %801 = vmatprep.subr.bf16.mxu0 0
  %802 = vmatpush1.bf16.msra.mxu0 0
  %803 = vmatprep.subr.bf16.mxu0 0
  %804 = vmatpush1.bf16.msra.mxu0 0
  %805 = vmatprep.subr.bf16.mxu0 0
  %806 = vmatpush1.bf16.msra.mxu0 0
  %807 = vmatprep.subr.bf16.mxu0 0
  %808 = vmatpush1.bf16.msra.mxu0 0
  %809 = vmatprep.subr.bf16.mxu0 0
  %810 = vmatpush1.bf16.msra.mxu0 0
  %811 = vmatprep.subr.bf16.mxu0 0
  %812 = vmatpush1.bf16.msra.mxu0 0
  %813 = vmatprep.subr.bf16.mxu0 0
  %814 = vmatpush1.bf16.msra.mxu0 0
  %815 = vmatprep.subr.bf16.mxu0 0
  %816 = vmatpush1.bf16.msra.mxu0 0
  %817 = vmatprep.subr.bf16.mxu0 0
  %818 = vmatpush1.bf16.msra.mxu0 0
  %819 = vmatprep.mubr.bf16.mxu0 0
  %820 = vmatmul.mubr.bf16.gmra.mrb[0].mxu0 %v782
  %v821 = vpop.f32.mrb[0].mxu0
  %v822 = vadd.f32 0.0, %v821
  %v823 = vpop.f32.mrb[0].mxu0
  %v824 = vpop.f32.mrb[0].mxu0
  %v825 = vpop.f32.mrb[0].mxu0
  %826 = vdwg.mxu0
  %827 = vrot.lane.b32.xlu0 %v202, 80
  %v828 = vpop.permute.xlu0 %827
  %v830 = vsel %vm209, %v778, 0
  %v833 = vsel %vm335, %v828, 0
  %835 = vmatprep.subr.bf16.mxu0 0
  %836 = vmatpush1.bf16.msra.mxu0 %v833
  %837 = vmatprep.subr.bf16.mxu0 0
  %838 = vmatpush1.bf16.msra.mxu0 0
  %839 = vmatprep.subr.bf16.mxu0 0
  %840 = vmatpush1.bf16.msra.mxu0 0
  %841 = vmatprep.subr.bf16.mxu0 0
  %842 = vmatpush1.bf16.msra.mxu0 0
  %843 = vmatprep.subr.bf16.mxu0 0
  %844 = vmatpush1.bf16.msra.mxu0 0
  %845 = vmatprep.subr.bf16.mxu0 0
  %846 = vmatpush1.bf16.msra.mxu0 0
  %847 = vmatprep.subr.bf16.mxu0 0
  %848 = vmatpush1.bf16.msra.mxu0 0
  %849 = vmatprep.subr.bf16.mxu0 0
  %850 = vmatpush1.bf16.msra.mxu0 0
  %851 = vmatprep.subr.bf16.mxu0 0
  %852 = vmatpush1.bf16.msra.mxu0 0
  %853 = vmatprep.subr.bf16.mxu0 0
  %854 = vmatpush1.bf16.msra.mxu0 0
  %855 = vmatprep.subr.bf16.mxu0 0
  %856 = vmatpush1.bf16.msra.mxu0 0
  %857 = vmatprep.subr.bf16.mxu0 0
  %858 = vmatpush1.bf16.msra.mxu0 0
  %859 = vmatprep.subr.bf16.mxu0 0
  %860 = vmatpush1.bf16.msra.mxu0 0
  %861 = vmatprep.subr.bf16.mxu0 0
  %862 = vmatpush1.bf16.msra.mxu0 0
  %863 = vmatprep.subr.bf16.mxu0 0
  %864 = vmatpush1.bf16.msra.mxu0 0
  %865 = vmatprep.subr.bf16.mxu0 0
  %866 = vmatpush1.bf16.msra.mxu0 0
  %867 = vmatprep.mubr.bf16.mxu0 0
  %868 = vmatmul.mubr.bf16.gmra.mrb[0].mxu0 %v830
  %v869 = vpop.f32.mrb[0].mxu0
  %v870 = vadd.f32 0.0, %v869
  %v871 = vpop.f32.mrb[0].mxu0
  %v872 = vpop.f32.mrb[0].mxu0
  %v873 = vpop.f32.mrb[0].mxu0
  %874 = vdwg.mxu0
  %875 = vrot.lane.b32.xlu0 %v195, 104
  %v876 = vpop.permute.xlu0 %875
  %877 = vrot.lane.b32.xlu0 %v201, 104
  %v878 = vpop.permute.xlu0 %877
  %v880 = vsel %vm209, %v876, 0
  %v883 = vsel %vm209, %v878, 0
  %885 = vmatprep.subr.bf16.mxu0 0
  %886 = vmatpush1.bf16.xpose.msra.mxu0 %v883
  %887 = vmatprep.subr.bf16.mxu0 0
  %888 = vmatpush1.bf16.xpose.msra.mxu0 0
  %889 = vmatprep.subr.bf16.mxu0 0
  %890 = vmatpush1.bf16.xpose.msra.mxu0 0
  %891 = vmatprep.subr.bf16.mxu0 0
  %892 = vmatpush1.bf16.xpose.msra.mxu0 0
  %893 = vmatprep.subr.bf16.mxu0 0
  %894 = vmatpush1.bf16.xpose.msra.mxu0 0
  %895 = vmatprep.subr.bf16.mxu0 0
  %896 = vmatpush1.bf16.xpose.msra.mxu0 0
  %897 = vmatprep.subr.bf16.mxu0 0
  %898 = vmatpush1.bf16.xpose.msra.mxu0 0
  %899 = vmatprep.subr.bf16.mxu0 0
  %900 = vmatpush1.bf16.xpose.msra.mxu0 0
  %901 = vmatprep.subr.bf16.mxu0 0
  %902 = vmatpush1.bf16.xpose.msra.mxu0 0
  %903 = vmatprep.subr.bf16.mxu0 0
  %904 = vmatpush1.bf16.xpose.msra.mxu0 0
  %905 = vmatprep.subr.bf16.mxu0 0
  %906 = vmatpush1.bf16.xpose.msra.mxu0 0
  %907 = vmatprep.subr.bf16.mxu0 0
  %908 = vmatpush1.bf16.xpose.msra.mxu0 0
  %909 = vmatprep.subr.bf16.mxu0 0
  %910 = vmatpush1.bf16.xpose.msra.mxu0 0
  %911 = vmatprep.subr.bf16.mxu0 0
  %912 = vmatpush1.bf16.xpose.msra.mxu0 0
  %913 = vmatprep.subr.bf16.mxu0 0
  %914 = vmatpush1.bf16.xpose.msra.mxu0 0
  %915 = vmatprep.subr.bf16.mxu0 0
  %916 = vmatpush1.bf16.xpose.msra.mxu0 0
  %917 = vmatprep.mubr.bf16.mxu0 0
  %918 = vmatmul.mubr.bf16.gmra.mrb[0].mxu0 %v880
  %v919 = vpop.f32.mrb[0].mxu0
  %v920 = vadd.f32 0.0, %v919
  %v921 = vpop.f32.mrb[0].mxu0
  %v922 = vpop.f32.mrb[0].mxu0
  %v923 = vpop.f32.mrb[0].mxu0
  %924 = vdwg.mxu0
  %925 = vrot.lane.b32.xlu0 %v196, 104
  %v926 = vpop.permute.xlu0 %925
  %927 = vrot.lane.b32.xlu0 %v202, 104
  %v928 = vpop.permute.xlu0 %927
  %v930 = vsel %vm209, %v926, 0
  %v933 = vsel %vm209, %v928, 0
  %935 = vmatprep.subr.bf16.mxu0 0
  %936 = vmatpush1.bf16.xpose.msra.mxu0 %v933
  %937 = vmatprep.subr.bf16.mxu0 0
  %938 = vmatpush1.bf16.xpose.msra.mxu0 0
  %939 = vmatprep.subr.bf16.mxu0 0
  %940 = vmatpush1.bf16.xpose.msra.mxu0 0
  %941 = vmatprep.subr.bf16.mxu0 0
  %942 = vmatpush1.bf16.xpose.msra.mxu0 0
  %943 = vmatprep.subr.bf16.mxu0 0
  %944 = vmatpush1.bf16.xpose.msra.mxu0 0
  %945 = vmatprep.subr.bf16.mxu0 0
  %946 = vmatpush1.bf16.xpose.msra.mxu0 0
  %947 = vmatprep.subr.bf16.mxu0 0
  %948 = vmatpush1.bf16.xpose.msra.mxu0 0
  %949 = vmatprep.subr.bf16.mxu0 0
  %950 = vmatpush1.bf16.xpose.msra.mxu0 0
  %951 = vmatprep.subr.bf16.mxu0 0
  %952 = vmatpush1.bf16.xpose.msra.mxu0 0
  %953 = vmatprep.subr.bf16.mxu0 0
  %954 = vmatpush1.bf16.xpose.msra.mxu0 0
  %955 = vmatprep.subr.bf16.mxu0 0
  %956 = vmatpush1.bf16.xpose.msra.mxu0 0
  %957 = vmatprep.subr.bf16.mxu0 0
  %958 = vmatpush1.bf16.xpose.msra.mxu0 0
  %959 = vmatprep.subr.bf16.mxu0 0
  %960 = vmatpush1.bf16.xpose.msra.mxu0 0
  %961 = vmatprep.subr.bf16.mxu0 0
  %962 = vmatpush1.bf16.xpose.msra.mxu0 0
  %963 = vmatprep.subr.bf16.mxu0 0
  %964 = vmatpush1.bf16.xpose.msra.mxu0 0
  %965 = vmatprep.subr.bf16.mxu0 0
  %966 = vmatpush1.bf16.xpose.msra.mxu0 0
  %967 = vmatprep.mubr.bf16.mxu0 0
  %968 = vmatmul.mubr.bf16.gmra.mrb[0].mxu0 %v930
  %v969 = vpop.f32.mrb[0].mxu0
  %v970 = vadd.f32 0.0, %v969
  %v971 = vpop.f32.mrb[0].mxu0
  %v972 = vpop.f32.mrb[0].mxu0
  %v973 = vpop.f32.mrb[0].mxu0
  %974 = vdwg.mxu0
  %v975 = vmul.f32 %v920, 0.35355338
  %v976 = vmul.f32 %v970, 0.35355338
  %v977 = vadd.f32 %v975, %v208
  %v978 = vadd.f32 %v976, %v208
  %v979 = vsel %vm209, %v977, -inf
  %980 = vmax.xlane.f32.xlu0 %v979
  %v981 = vpop.xlane.xlu0 %980
  %v982 = vsel %vm209, %v978, -inf
  %983 = vmax.xlane.f32.xlu0 %v982
  %v984 = vpop.xlane.xlu0 %983
  %v985 = vsub.f32 %v977, %v981
  %v986 = vsub.f32 %v978, %v984
  %v987 = vmul.f32 %v985, 1.442695
  %v988 = vpow.pop %v987
  %v989 = vmul.f32 %v986, 1.442695
  %v990 = vpow.pop %v989
  %v991 = vsel %vm209, %v988, 0.0
  %992 = vadd.xlane.f32.xlu0 %v991
  %v993 = vpop.xlane.xlu0 %992
  %v994 = vsel %vm209, %v990, 0.0
  %995 = vadd.xlane.f32.xlu0 %v994
  %v996 = vpop.xlane.xlu0 %995
  %v997 = vrcp.pop %v993
  %v998 = vrcp.pop %v996
  %v999 = vmul.f32 %v988, %v997
  %v1000 = vmul.f32 %v990, %v998
  %v1001 = vpack.c.bf16 %v999, %v999
  %v1002 = vpack.c.bf16 %v1000, %v1000
  %1003 = vrot.lane.b32.xlu0 %v201, 72
  %v1004 = vpop.permute.xlu0 %1003
  %v1006 = vsel %vm209, %v1001, 0
  %v1009 = vsel %vm335, %v1004, 0
  %1011 = vmatprep.subr.bf16.mxu0 0
  %1012 = vmatpush1.bf16.msra.mxu0 %v1009
  %1013 = vmatprep.subr.bf16.mxu0 0
  %1014 = vmatpush1.bf16.msra.mxu0 0
  %1015 = vmatprep.subr.bf16.mxu0 0
  %1016 = vmatpush1.bf16.msra.mxu0 0
  %1017 = vmatprep.subr.bf16.mxu0 0
  %1018 = vmatpush1.bf16.msra.mxu0 0
  %1019 = vmatprep.subr.bf16.mxu0 0
  %1020 = vmatpush1.bf16.msra.mxu0 0
  %1021 = vmatprep.subr.bf16.mxu0 0
  %1022 = vmatpush1.bf16.msra.mxu0 0
  %1023 = vmatprep.subr.bf16.mxu0 0
  %1024 = vmatpush1.bf16.msra.mxu0 0
  %1025 = vmatprep.subr.bf16.mxu0 0
  %1026 = vmatpush1.bf16.msra.mxu0 0
  %1027 = vmatprep.subr.bf16.mxu0 0
  %1028 = vmatpush1.bf16.msra.mxu0 0
  %1029 = vmatprep.subr.bf16.mxu0 0
  %1030 = vmatpush1.bf16.msra.mxu0 0
  %1031 = vmatprep.subr.bf16.mxu0 0
  %1032 = vmatpush1.bf16.msra.mxu0 0
  %1033 = vmatprep.subr.bf16.mxu0 0
  %1034 = vmatpush1.bf16.msra.mxu0 0
  %1035 = vmatprep.subr.bf16.mxu0 0
  %1036 = vmatpush1.bf16.msra.mxu0 0
  %1037 = vmatprep.subr.bf16.mxu0 0
  %1038 = vmatpush1.bf16.msra.mxu0 0
  %1039 = vmatprep.subr.bf16.mxu0 0
  %1040 = vmatpush1.bf16.msra.mxu0 0
  %1041 = vmatprep.subr.bf16.mxu0 0
  %1042 = vmatpush1.bf16.msra.mxu0 0
  %1043 = vmatprep.mubr.bf16.mxu0 0
  %1044 = vmatmul.mubr.bf16.gmra.mrb[0].mxu0 %v1006
  %v1045 = vpop.f32.mrb[0].mxu0
  %v1046 = vadd.f32 0.0, %v1045
  %v1047 = vpop.f32.mrb[0].mxu0
  %v1048 = vpop.f32.mrb[0].mxu0
  %v1049 = vpop.f32.mrb[0].mxu0
  %1050 = vdwg.mxu0
  %1051 = vrot.lane.b32.xlu0 %v202, 72
  %v1052 = vpop.permute.xlu0 %1051
  %v1054 = vsel %vm209, %v1002, 0
  %v1057 = vsel %vm335, %v1052, 0
  %1059 = vmatprep.subr.bf16.mxu0 0
  %1060 = vmatpush1.bf16.msra.mxu0 %v1057
  %1061 = vmatprep.subr.bf16.mxu0 0
  %1062 = vmatpush1.bf16.msra.mxu0 0
  %1063 = vmatprep.subr.bf16.mxu0 0
  %1064 = vmatpush1.bf16.msra.mxu0 0
  %1065 = vmatprep.subr.bf16.mxu0 0
  %1066 = vmatpush1.bf16.msra.mxu0 0
  %1067 = vmatprep.subr.bf16.mxu0 0
  %1068 = vmatpush1.bf16.msra.mxu0 0
  %1069 = vmatprep.subr.bf16.mxu0 0
  %1070 = vmatpush1.bf16.msra.mxu0 0
  %1071 = vmatprep.subr.bf16.mxu0 0
  %1072 = vmatpush1.bf16.msra.mxu0 0
  %1073 = vmatprep.subr.bf16.mxu0 0
  %1074 = vmatpush1.bf16.msra.mxu0 0
  %1075 = vmatprep.subr.bf16.mxu0 0
  %1076 = vmatpush1.bf16.msra.mxu0 0
  %1077 = vmatprep.subr.bf16.mxu0 0
  %1078 = vmatpush1.bf16.msra.mxu0 0
  %1079 = vmatprep.subr.bf16.mxu0 0
  %1080 = vmatpush1.bf16.msra.mxu0 0
  %1081 = vmatprep.subr.bf16.mxu0 0
  %1082 = vmatpush1.bf16.msra.mxu0 0
  %1083 = vmatprep.subr.bf16.mxu0 0
  %1084 = vmatpush1.bf16.msra.mxu0 0
  %1085 = vmatprep.subr.bf16.mxu0 0
  %1086 = vmatpush1.bf16.msra.mxu0 0
  %1087 = vmatprep.subr.bf16.mxu0 0
  %1088 = vmatpush1.bf16.msra.mxu0 0
  %1089 = vmatprep.subr.bf16.mxu0 0
  %1090 = vmatpush1.bf16.msra.mxu0 0
  %1091 = vmatprep.mubr.bf16.mxu0 0
  %1092 = vmatmul.mubr.bf16.gmra.mrb[0].mxu0 %v1054
  %v1093 = vpop.f32.mrb[0].mxu0
  %v1094 = vadd.f32 0.0, %v1093
  %v1095 = vpop.f32.mrb[0].mxu0
  %v1096 = vpop.f32.mrb[0].mxu0
  %v1097 = vpop.f32.mrb[0].mxu0
  %1098 = vdwg.mxu0
  %1101 = vrot.lane.b32.xlu0 %v598, 8
  %v1102 = vpop.permute.xlu0 %1101
  %1103 = vrot.lane.b32.xlu0 %v646, 8
  %v1104 = vpop.permute.xlu0 %1103
  %1109 = vrot.lane.b32.xlu0 %v822, 16
  %v1110 = vpop.permute.xlu0 %1109
  %1111 = vrot.lane.b32.xlu0 %v870, 16
  %v1112 = vpop.permute.xlu0 %1111
  %1117 = vrot.lane.b32.xlu0 %v1046, 24
  %v1118 = vpop.permute.xlu0 %1117
  %1119 = vrot.lane.b32.xlu0 %v1094, 24
  %v1120 = vpop.permute.xlu0 %1119
  %v1123 = vsel %vm209, %v374, %v1102
  %v1124 = vsel %vm209, %v422, %v1104
  %vm1125 = vcmask 130048
  %v1126 = vsel %vm1125, %v1123, %v1110
  %v1127 = vsel %vm1125, %v1124, %v1112
  %vm1128 = vcmask 195584
  %v1129 = vsel %vm1128, %v1126, %v1118
  %v1130 = vsel %vm1128, %v1127, %v1120
  %v1131 = vpack.c.bf16 %v1130, %v1129
  %v1133 = vlaneseq
  %v1134 = vshrl.u32 %v1133, 7
  %v1135 = vsub.s32 0, %v1134
  %v1136 = vrot.slane %v67, %v1135
  %v1142 = vunpack.c.l.b16 %v63
  %v1143 = vunpack.c.l.b16 %v64
  %v1144 = vunpack.c.l.b16 %v65
  %v1145 = vunpack.c.l.b16 %v66
  %v1146 = vpack.c.b16 %v1143, %v1142
  %v1147 = vpack.c.b16 %v1145, %v1144
  %v1151 = vsel %vm87, %v1131, 0
  %1153 = vmatprep.subr.bf16.mxu0 0
  %1154 = vmatpush1.bf16.msra.mxu0 %v1146
  %1155 = vmatprep.subr.bf16.mxu0 0
  %1156 = vmatpush1.bf16.msra.mxu0 %v1147
  %1157 = vmatprep.subr.bf16.mxu0 0
  %1158 = vmatpush1.bf16.msra.mxu0 0
  %1159 = vmatprep.subr.bf16.mxu0 0
  %1160 = vmatpush1.bf16.msra.mxu0 0
  %1161 = vmatprep.subr.bf16.mxu0 0
  %1162 = vmatpush1.bf16.msra.mxu0 0
  %1163 = vmatprep.subr.bf16.mxu0 0
  %1164 = vmatpush1.bf16.msra.mxu0 0
  %1165 = vmatprep.subr.bf16.mxu0 0
  %1166 = vmatpush1.bf16.msra.mxu0 0
  %1167 = vmatprep.subr.bf16.mxu0 0
  %1168 = vmatpush1.bf16.msra.mxu0 0
  %1169 = vmatprep.subr.bf16.mxu0 0
  %1170 = vmatpush1.bf16.msra.mxu0 0
  %1171 = vmatprep.subr.bf16.mxu0 0
  %1172 = vmatpush1.bf16.msra.mxu0 0
  %1173 = vmatprep.subr.bf16.mxu0 0
  %1174 = vmatpush1.bf16.msra.mxu0 0
  %1175 = vmatprep.subr.bf16.mxu0 0
  %1176 = vmatpush1.bf16.msra.mxu0 0
  %1177 = vmatprep.subr.bf16.mxu0 0
  %1178 = vmatpush1.bf16.msra.mxu0 0
  %1179 = vmatprep.subr.bf16.mxu0 0
  %1180 = vmatpush1.bf16.msra.mxu0 0
  %1181 = vmatprep.subr.bf16.mxu0 0
  %1182 = vmatpush1.bf16.msra.mxu0 0
  %1183 = vmatprep.subr.bf16.mxu0 0
  %1184 = vmatpush1.bf16.msra.mxu0 0
  %1185 = vmatprep.mubr.bf16.mxu0 0
  %1186 = vmatmul.mubr.bf16.gmra.mrb[0].mxu0 %v1151
  %v1187 = vpop.f32.mrb[0].mxu0
  %v1188 = vadd.f32 %v1136, %v1187
  %v1189 = vpop.f32.mrb[0].mxu0
  %v1190 = vpop.f32.mrb[0].mxu0
  %v1191 = vadd.f32 %v1136, %v1190
  %v1192 = vpop.f32.mrb[0].mxu0
  %1193 = vdwg.mxu0
  %v1194 = vadd.f32 %v51, %v1188
  %v1195 = vadd.f32 %v52, %v1191
  %v1196 = vld [vmem:[%s7] sm:$0x1]
  %v1197 = vld [vmem:[%s8] sm:$0x1]
  %v1198 = vsel %vm87, %v1194, 0.0
  %1199 = vadd.xlane.f32.xlu0 %v1198
  %v1200 = vpop.xlane.xlu0 %1199
  %v1201 = vsel %vm87, %v1195, 0.0
  %1202 = vadd.xlane.f32.xlu0 %v1201
  %v1203 = vpop.xlane.xlu0 %1202
  %v1204 = vrcp.pop 32.0
  %v1205 = vmul.f32 %v1200, %v1204
  %v1206 = vmul.f32 %v1203, %v1204
  %v1207 = vsub.f32 %v1194, %v1205
  %v1208 = vsub.f32 %v1195, %v1206
  %v1209 = vmul.f32 %v1207, %v1207
  %v1210 = vmul.f32 %v1208, %v1208
  %v1211 = vsel %vm87, %v1209, 0.0
  %1212 = vadd.xlane.f32.xlu0 %v1211
  %v1213 = vpop.xlane.xlu0 %1212
  %v1214 = vsel %vm87, %v1210, 0.0
  %1215 = vadd.xlane.f32.xlu0 %v1214
  %v1216 = vpop.xlane.xlu0 %1215
  %v1217 = vmul.f32 %v1213, %v1204
  %v1218 = vmul.f32 %v1216, %v1204
  %v1219 = vadd.f32 %v1217, 1e-05
  %v1220 = vadd.f32 %v1218, 1e-05
  %v1221 = vrsqrt.pop %v1219
  %v1222 = vrsqrt.pop %v1220
  %v1223 = vmul.f32 %v1207, %v1221
  %v1224 = vmul.f32 %v1208, %v1222
  %v1226 = vlaneseq
  %v1227 = vshrl.u32 %v1226, 7
  %v1228 = vsub.s32 0, %v1227
  %v1229 = vrot.slane %v1196, %v1228
  %v1231 = vmul.f32 %v1223, %v1229
  %v1232 = vmul.f32 %v1224, %v1229
  %v1234 = vlaneseq
  %v1235 = vshrl.u32 %v1234, 7
  %v1236 = vsub.s32 0, %v1235
  %v1237 = vrot.slane %v1197, %v1236
  %v1239 = vadd.f32 %v1231, %v1237
  %v1240 = vadd.f32 %v1232, %v1237
  %v1241 = vld [vmem:[%s9] sm:$0xf]
  %v1242 = vld [vmem:[%s9 + $0x4] sm:$0xf]
  %v1243 = vld [vmem:[%s9 + $0x8] sm:$0xf]
  %v1244 = vld [vmem:[%s9 + $0xc] sm:$0xf]
  %v1245 = vld [vmem:[%s10] sm:$0x1]
  %v1246 = vld [vmem:[%s11] sm:$0xf]
  %v1247 = vld [vmem:[%s11 + $0x4] sm:$0xf]
  %v1248 = vld [vmem:[%s11 + $0x8] sm:$0xf]
  %v1249 = vld [vmem:[%s11 + $0xc] sm:$0xf]
  %v1250 = vld [vmem:[%s11 + $0x10] sm:$0xf]
  %v1251 = vld [vmem:[%s11 + $0x14] sm:$0xf]
  %v1252 = vld [vmem:[%s11 + $0x18] sm:$0xf]
  %v1253 = vld [vmem:[%s11 + $0x1c] sm:$0xf]
  %v1254 = vld [vmem:[%s12] sm:$0x1]
  %v1255 = vpack.c.bf16 %v1240, %v1239
  %v1257 = vlaneseq
  %v1258 = vshrl.u32 %v1257, 7
  %v1259 = vsub.s32 0, %v1258
  %v1260 = vrot.slane %v1245, %v1259
  %v1266 = vunpack.c.l.b16 %v1241
  %v1267 = vunpack.c.l.b16 %v1242
  %v1268 = vunpack.c.l.b16 %v1243
  %v1269 = vunpack.c.l.b16 %v1244
  %v1270 = vpack.c.b16 %v1267, %v1266
  %v1271 = vpack.c.b16 %v1269, %v1268
  %v1275 = vsel %vm87, %v1255, 0
  %1277 = vmatprep.subr.bf16.mxu0 0
  %1278 = vmatpush1.bf16.msra.mxu0 %v1270
  %1279 = vmatprep.subr.bf16.mxu0 0
  %1280 = vmatpush1.bf16.msra.mxu0 %v1271
  %1281 = vmatprep.subr.bf16.mxu0 0
  %1282 = vmatpush1.bf16.msra.mxu0 0
  %1283 = vmatprep.subr.bf16.mxu0 0
  %1284 = vmatpush1.bf16.msra.mxu0 0
  %1285 = vmatprep.subr.bf16.mxu0 0
  %1286 = vmatpush1.bf16.msra.mxu0 0
  %1287 = vmatprep.subr.bf16.mxu0 0
  %1288 = vmatpush1.bf16.msra.mxu0 0
  %1289 = vmatprep.subr.bf16.mxu0 0
  %1290 = vmatpush1.bf16.msra.mxu0 0
  %1291 = vmatprep.subr.bf16.mxu0 0
  %1292 = vmatpush1.bf16.msra.mxu0 0
  %1293 = vmatprep.subr.bf16.mxu0 0
  %1294 = vmatpush1.bf16.msra.mxu0 0
  %1295 = vmatprep.subr.bf16.mxu0 0
  %1296 = vmatpush1.bf16.msra.mxu0 0
  %1297 = vmatprep.subr.bf16.mxu0 0
  %1298 = vmatpush1.bf16.msra.mxu0 0
  %1299 = vmatprep.subr.bf16.mxu0 0
  %1300 = vmatpush1.bf16.msra.mxu0 0
  %1301 = vmatprep.subr.bf16.mxu0 0
  %1302 = vmatpush1.bf16.msra.mxu0 0
  %1303 = vmatprep.subr.bf16.mxu0 0
  %1304 = vmatpush1.bf16.msra.mxu0 0
  %1305 = vmatprep.subr.bf16.mxu0 0
  %1306 = vmatpush1.bf16.msra.mxu0 0
  %1307 = vmatprep.subr.bf16.mxu0 0
  %1308 = vmatpush1.bf16.msra.mxu0 0
  %1309 = vmatprep.mubr.bf16.mxu0 0
  %1310 = vmatmul.mubr.bf16.gmra.mrb[0].mxu0 %v1275
  %v1311 = vpop.f32.mrb[0].mxu0
  %v1312 = vadd.f32 %v1260, %v1311
  %v1313 = vpop.f32.mrb[0].mxu0
  %v1314 = vpop.f32.mrb[0].mxu0
  %v1315 = vadd.f32 %v1260, %v1314
  %v1316 = vpop.f32.mrb[0].mxu0
  %1317 = vdwg.mxu0
  %v1318 = vmax.f32 %v1312, 0.0
  %v1319 = vmax.f32 %v1315, 0.0
  %v1320 = vpack.c.bf16 %v1319, %v1318
  %v1322 = vlaneseq
  %v1323 = vshrl.u32 %v1322, 7
  %v1324 = vsub.s32 0, %v1323
  %v1325 = vrot.slane %v1254, %v1324
  %v1335 = vunpack.c.l.b16 %v1246
  %v1336 = vunpack.c.l.b16 %v1247
  %v1337 = vunpack.c.l.b16 %v1248
  %v1338 = vunpack.c.l.b16 %v1249
  %v1339 = vunpack.c.l.b16 %v1250
  %v1340 = vunpack.c.l.b16 %v1251
  %v1341 = vunpack.c.l.b16 %v1252
  %v1342 = vunpack.c.l.b16 %v1253
  %v1343 = vpack.c.b16 %v1336, %v1335
  %v1344 = vpack.c.b16 %v1338, %v1337
  %v1345 = vpack.c.b16 %v1340, %v1339
  %v1346 = vpack.c.b16 %v1342, %v1341
  %vm1351 = vcmask 523264
  %v1353 = vsel %vm1351, %v1320, 0
  %1355 = vmatprep.subr.bf16.mxu0 0
  %1356 = vmatpush1.bf16.msra.mxu0 %v1343
  %1357 = vmatprep.subr.bf16.mxu0 0
  %1358 = vmatpush1.bf16.msra.mxu0 %v1344
  %1359 = vmatprep.subr.bf16.mxu0 0
  %1360 = vmatpush1.bf16.msra.mxu0 %v1345
  %1361 = vmatprep.subr.bf16.mxu0 0
  %1362 = vmatpush1.bf16.msra.mxu0 %v1346
  %1363 = vmatprep.subr.bf16.mxu0 0
  %1364 = vmatpush1.bf16.msra.mxu0 0
  %1365 = vmatprep.subr.bf16.mxu0 0
  %1366 = vmatpush1.bf16.msra.mxu0 0
  %1367 = vmatprep.subr.bf16.mxu0 0
  %1368 = vmatpush1.bf16.msra.mxu0 0
  %1369 = vmatprep.subr.bf16.mxu0 0
  %1370 = vmatpush1.bf16.msra.mxu0 0
  %1371 = vmatprep.subr.bf16.mxu0 0
  %1372 = vmatpush1.bf16.msra.mxu0 0
  %1373 = vmatprep.subr.bf16.mxu0 0
  %1374 = vmatpush1.bf16.msra.mxu0 0
  %1375 = vmatprep.subr.bf16.mxu0 0
  %1376 = vmatpush1.bf16.msra.mxu0 0
  %1377 = vmatprep.subr.bf16.mxu0 0
  %1378 = vmatpush1.bf16.msra.mxu0 0
  %1379 = vmatprep.subr.bf16.mxu0 0
  %1380 = vmatpush1.bf16.msra.mxu0 0
  %1381 = vmatprep.subr.bf16.mxu0 0
  %1382 = vmatpush1.bf16.msra.mxu0 0
  %1383 = vmatprep.subr.bf16.mxu0 0
  %1384 = vmatpush1.bf16.msra.mxu0 0
  %1385 = vmatprep.subr.bf16.mxu0 0
  %1386 = vmatpush1.bf16.msra.mxu0 0
  %1387 = vmatprep.mubr.bf16.mxu0 0
  %1388 = vmatmul.mubr.bf16.gmra.mrb[0].mxu0 %v1353
  %v1389 = vpop.f32.mrb[0].mxu0
  %v1390 = vadd.f32 %v1325, %v1389
  %v1391 = vpop.f32.mrb[0].mxu0
  %v1392 = vpop.f32.mrb[0].mxu0
  %v1393 = vadd.f32 %v1325, %v1392
  %v1394 = vpop.f32.mrb[0].mxu0
  %1395 = vdwg.mxu0
  %v1396 = vadd.f32 %v1239, %v1390
  %v1397 = vadd.f32 %v1240, %v1393
  %v1398 = vld [vmem:[%s13] sm:$0x1]
  %v1399 = vld [vmem:[%s14] sm:$0x1]
  %v1400 = vsel %vm87, %v1396, 0.0
  %1401 = vadd.xlane.f32.xlu0 %v1400
  %v1402 = vpop.xlane.xlu0 %1401
  %v1403 = vsel %vm87, %v1397, 0.0
  %1404 = vadd.xlane.f32.xlu0 %v1403
  %v1405 = vpop.xlane.xlu0 %1404
  %v1406 = vmul.f32 %v1402, %v1204
  %v1407 = vmul.f32 %v1405, %v1204
  %v1408 = vsub.f32 %v1396, %v1406
  %v1409 = vsub.f32 %v1397, %v1407
  %v1410 = vmul.f32 %v1408, %v1408
  %v1411 = vmul.f32 %v1409, %v1409
  %v1412 = vsel %vm87, %v1410, 0.0
  %1413 = vadd.xlane.f32.xlu0 %v1412
  %v1414 = vpop.xlane.xlu0 %1413
  %v1415 = vsel %vm87, %v1411, 0.0
  %1416 = vadd.xlane.f32.xlu0 %v1415
  %v1417 = vpop.xlane.xlu0 %1416
  %v1418 = vmul.f32 %v1414, %v1204
  %v1419 = vmul.f32 %v1417, %v1204
  %v1420 = vadd.f32 %v1418, 1e-05
  %v1421 = vadd.f32 %v1419, 1e-05
  %v1422 = vrsqrt.pop %v1420
  %v1423 = vrsqrt.pop %v1421
  %v1424 = vmul.f32 %v1408, %v1422
  %v1425 = vmul.f32 %v1409, %v1423
  %v1427 = vlaneseq
  %v1428 = vshrl.u32 %v1427, 7
  %v1429 = vsub.s32 0, %v1428
  %v1430 = vrot.slane %v1398, %v1429
  %v1432 = vmul.f32 %v1424, %v1430
  %v1433 = vmul.f32 %v1425, %v1430
  %v1435 = vlaneseq
  %v1436 = vshrl.u32 %v1435, 7
  %v1437 = vsub.s32 0, %v1436
  %v1438 = vrot.slane %v1399, %v1437
  %v1440 = vadd.f32 %v1432, %v1438
  %v1441 = vadd.f32 %v1433, %v1438
  %1442 = vst.msk [vmem:[%s15] sm:$0xff] %vm87, %v1440
  %1443 = vst.msk [vmem:[%s15 + $0x8] sm:$0xff] %vm87, %v1441
  // Predicated region
  $region62: #{transformer_block_forward.3} parent=0 // pred_check
    _
  $region63: #{transformer_block_forward.3} parent=0 // pred_check_branch
    %1445 = sbr.rel (0) target = $region65
  $region64: #{transformer_block_forward.3} parent=0 // pred_region
    _
  $region65: #{transformer_block_forward.3} parent=0 // pred_fallthru
    _
  // Predicated region
  $region66: #{transformer_block_forward.3} parent=0 // pred_check
    _
  $region67: #{transformer_block_forward.3} parent=0 // pred_check_branch
    %1447 = sbr.rel (0) target = $region69
  $region68: #{transformer_block_forward.3} parent=0 // pred_region
    _
  $region69: #{transformer_block_forward.3} parent=0 // pred_fallthru
    _

// kernel: transformer_block_forward.4
$region0: #{transformer_block_forward.4}
  #allocation0 [shape = 'u32[]', space=smem, size = 0x4, offset = 0x4, fixed_abs, tag = 'smem constant byte address 0x4 - core index']
  #allocation1 [shape = 'u32[144,128]{1,0:T(1,128)}', space=vmem, size = 0x12000, scoped, tag = 'internal scratch']
  %s0 = inlined_call_operand.vmem [shape: f32[2,8,32], index: 0, kind: input, shape index: {}, may-alias: {0,1}]
  %s1 = inlined_call_operand.vmem [shape: f32[2,8,32], index: 1, kind: input, shape index: {}, may-alias: {0,1}]
  %s2 = inlined_call_operand.vmem [shape: bf16[32,32], index: 2, kind: input, shape index: {}]
  %s3 = inlined_call_operand.vmem [shape: f32[1,32], index: 3, kind: input, shape index: {}]
  %s4 = inlined_call_operand.vmem [shape: bf16[32,64], index: 4, kind: input, shape index: {}]
  %s5 = inlined_call_operand.vmem [shape: f32[1,64], index: 5, kind: input, shape index: {}]
  %s6 = inlined_call_operand.vmem [shape: bf16[32,32], index: 6, kind: input, shape index: {}]
  %s7 = inlined_call_operand.vmem [shape: f32[1,32], index: 7, kind: input, shape index: {}]
  %s8 = inlined_call_operand.vmem [shape: f32[1,32], index: 8, kind: input, shape index: {}]
  %s9 = inlined_call_operand.vmem [shape: f32[1,32], index: 9, kind: input, shape index: {}]
  %s10 = inlined_call_operand.vmem [shape: bf16[32,32], index: 10, kind: input, shape index: {}]
  %s11 = inlined_call_operand.vmem [shape: f32[1,32], index: 11, kind: input, shape index: {}]
  %s12 = inlined_call_operand.vmem [shape: bf16[32,64], index: 12, kind: input, shape index: {}]
  %s13 = inlined_call_operand.vmem [shape: f32[1,64], index: 13, kind: input, shape index: {}]
  %s14 = inlined_call_operand.vmem [shape: bf16[32,32], index: 14, kind: input, shape index: {}]
  %s15 = inlined_call_operand.vmem [shape: f32[1,32], index: 15, kind: input, shape index: {}]
  %s16 = inlined_call_operand.vmem [shape: f32[1,32], index: 16, kind: input, shape index: {}]
  %s17 = inlined_call_operand.vmem [shape: f32[1,32], index: 17, kind: input, shape index: {}]
  %s18 = inlined_call_operand.vmem [shape: bf16[32,64], index: 18, kind: input, shape index: {}]
  %s19 = inlined_call_operand.vmem [shape: f32[1,64], index: 19, kind: input, shape index: {}]
  %s20 = inlined_call_operand.vmem [shape: bf16[64,32], index: 20, kind: input, shape index: {}]
  %s21 = inlined_call_operand.vmem [shape: f32[1,32], index: 21, kind: input, shape index: {}]
  %s22 = inlined_call_operand.hbm [shape: f32[1,32], index: 22, kind: input, shape index: {}]
  %s23 = inlined_call_operand.hbm [shape: f32[1,32], index: 23, kind: input, shape index: {}]
  %s24 = inlined_call_operand.vmem [shape: f32[2,8,32], index: 24, kind: output, shape index: {}]
  %s25 = sld [smem:[#allocation0]]
  $region114: #{transformer_block_forward.4} parent=0
    _
  %s27 = ssub.s32 1, %s25
  %s28 = scalar_select 0, %s27, %s25
  $region1: #{transformer_block_forward.4} parent=0
    #allocation2 [shape = 'u8[512]{0}', space=vmem, size = 0x400, scoped, tag = 'input window, operand 22, single buffered']
    #allocation3 [shape = 's32[1]{0}', space=sflag, size = 0x4, scoped, tag = 'scoped memory for transformer_block_forward.4']
    #allocation4 [shape = 'u8[512]{0}', space=vmem, size = 0x400, scoped, tag = 'input window, operand 23, single buffered']
    #allocation5 [shape = 's32[1]{0}', space=sflag, size = 0x4, scoped, tag = 'scoped memory for transformer_block_forward.4']
    %29 = vsyncpa [#allocation3], 0
    %30 = vsyncpa [#allocation5], 0
    // Predicated region
    $region2: #{transformer_block_forward.4} parent=1 // pred_check
      _
    $region3: #{transformer_block_forward.4} parent=1 // pred_check_branch
      %32 = sbr.rel (0) target = $region5
    $region4: #{transformer_block_forward.4} parent=1 // pred_region
      _
    $region5: #{transformer_block_forward.4} parent=1 // pred_fallthru
      _
    // Predicated region
    $region6: #{transformer_block_forward.4} parent=1 // pred_check
      _
    $region7: #{transformer_block_forward.4} parent=1 // pred_check_branch
      %34 = sbr.rel (0) target = $region9
    $region8: #{transformer_block_forward.4} parent=1 // pred_region
      _
    $region9: #{transformer_block_forward.4} parent=1 // pred_fallthru
      _
    // Predicated region
    $region10: #{transformer_block_forward.4} parent=1 // pred_check
      _
    $region11: #{transformer_block_forward.4} parent=1 // pred_check_branch
      %36 = sbr.rel (0) target = $region13
    $region12: #{transformer_block_forward.4} parent=1 // pred_region
      _
    $region13: #{transformer_block_forward.4} parent=1 // pred_fallthru
      _
    // Predicated region
    $region14: #{transformer_block_forward.4} parent=1 // pred_check
      _
    $region15: #{transformer_block_forward.4} parent=1 // pred_check_branch
      %38 = sbr.rel (0) target = $region17
    $region16: #{transformer_block_forward.4} parent=1 // pred_region
      _
    $region17: #{transformer_block_forward.4} parent=1 // pred_fallthru
      _
    // Predicated region
    $region18: #{transformer_block_forward.4} parent=1 // pred_check
      _
    $region19: #{transformer_block_forward.4} parent=1 // pred_check_branch
      %40 = sbr.rel (0) target = $region21
    $region20: #{transformer_block_forward.4} parent=1 // pred_region
      _
    $region21: #{transformer_block_forward.4} parent=1 // pred_fallthru
      _
    // Predicated region
    $region22: #{transformer_block_forward.4} parent=1 // pred_check
      _
    $region23: #{transformer_block_forward.4} parent=1 // pred_check_branch
      %42 = sbr.rel (0) target = $region25
    $region24: #{transformer_block_forward.4} parent=1 // pred_region
      _
    $region25: #{transformer_block_forward.4} parent=1 // pred_fallthru
      _
    // Predicated region
    $region26: #{transformer_block_forward.4} parent=1 // pred_check
      _
    $region27: #{transformer_block_forward.4} parent=1 // pred_check_branch
      %44 = sbr.rel (0) target = $region29
    $region28: #{transformer_block_forward.4} parent=1 // pred_region
      _
    $region29: #{transformer_block_forward.4} parent=1 // pred_fallthru
      _
    // Predicated region
    $region30: #{transformer_block_forward.4} parent=1 // pred_check
      _
    $region31: #{transformer_block_forward.4} parent=1 // pred_check_branch
      %46 = sbr.rel (0) target = $region33
    $region32: #{transformer_block_forward.4} parent=1 // pred_region
      _
    $region33: #{transformer_block_forward.4} parent=1 // pred_fallthru
      _
    // Predicated region
    $region34: #{transformer_block_forward.4} parent=1 // pred_check
      _
    $region35: #{transformer_block_forward.4} parent=1 // pred_check_branch
      %48 = sbr.rel (0) target = $region37
    $region36: #{transformer_block_forward.4} parent=1 // pred_region
      _
    $region37: #{transformer_block_forward.4} parent=1 // pred_fallthru
      _
    // Predicated region
    $region38: #{transformer_block_forward.4} parent=1 // pred_check
      _
    $region39: #{transformer_block_forward.4} parent=1 // pred_check_branch
      %50 = sbr.rel (0) target = $region41
    $region40: #{transformer_block_forward.4} parent=1 // pred_region
      _
    $region41: #{transformer_block_forward.4} parent=1 // pred_fallthru
      _
    // Predicated region
    $region42: #{transformer_block_forward.4} parent=1 // pred_check
      _
    $region43: #{transformer_block_forward.4} parent=1 // pred_check_branch
      %52 = sbr.rel (0) target = $region45
    $region44: #{transformer_block_forward.4} parent=1 // pred_region
      _
    $region45: #{transformer_block_forward.4} parent=1 // pred_fallthru
      _
    // Predicated region
    $region46: #{transformer_block_forward.4} parent=1 // pred_check
      _
    $region47: #{transformer_block_forward.4} parent=1 // pred_check_branch
      %54 = sbr.rel (0) target = $region49
    $region48: #{transformer_block_forward.4} parent=1 // pred_region
      _
    $region49: #{transformer_block_forward.4} parent=1 // pred_fallthru
      _
    // Predicated region
    $region50: #{transformer_block_forward.4} parent=1 // pred_check
      _
    $region51: #{transformer_block_forward.4} parent=1 // pred_check_branch
      %56 = sbr.rel (0) target = $region53
    $region52: #{transformer_block_forward.4} parent=1 // pred_region
      _
    $region53: #{transformer_block_forward.4} parent=1 // pred_fallthru
      _
    // Predicated region
    $region54: #{transformer_block_forward.4} parent=1 // pred_check
      _
    $region55: #{transformer_block_forward.4} parent=1 // pred_check_branch
      %58 = sbr.rel (0) target = $region57
    $region56: #{transformer_block_forward.4} parent=1 // pred_region
      _
    $region57: #{transformer_block_forward.4} parent=1 // pred_fallthru
      _
    // Predicated region
    $region58: #{transformer_block_forward.4} parent=1 // pred_check
      _
    $region59: #{transformer_block_forward.4} parent=1 // pred_check_branch
      %60 = sbr.rel (0) target = $region61
    $region60: #{transformer_block_forward.4} parent=1 // pred_region
      _
    $region61: #{transformer_block_forward.4} parent=1 // pred_fallthru
      _
    // Predicated region
    $region62: #{transformer_block_forward.4} parent=1 // pred_check
      _
    $region63: #{transformer_block_forward.4} parent=1 // pred_check_branch
      %62 = sbr.rel (0) target = $region65
    $region64: #{transformer_block_forward.4} parent=1 // pred_region
      _
    $region65: #{transformer_block_forward.4} parent=1 // pred_fallthru
      _
    // Predicated region
    $region66: #{transformer_block_forward.4} parent=1 // pred_check
      _
    $region67: #{transformer_block_forward.4} parent=1 // pred_check_branch
      %64 = sbr.rel (0) target = $region69
    $region68: #{transformer_block_forward.4} parent=1 // pred_region
      _
    $region69: #{transformer_block_forward.4} parent=1 // pred_fallthru
      _
    // Predicated region
    $region70: #{transformer_block_forward.4} parent=1 // pred_check
      _
    $region71: #{transformer_block_forward.4} parent=1 // pred_check_branch
      %66 = sbr.rel (0) target = $region73
    $region72: #{transformer_block_forward.4} parent=1 // pred_region
      _
    $region73: #{transformer_block_forward.4} parent=1 // pred_fallthru
      _
    // Predicated region
    $region74: #{transformer_block_forward.4} parent=1 // pred_check
      _
    $region75: #{transformer_block_forward.4} parent=1 // pred_check_branch
      %68 = sbr.rel (0) target = $region77
    $region76: #{transformer_block_forward.4} parent=1 // pred_region
      _
    $region77: #{transformer_block_forward.4} parent=1 // pred_fallthru
      _
    // Predicated region
    $region78: #{transformer_block_forward.4} parent=1 // pred_check
      _
    $region79: #{transformer_block_forward.4} parent=1 // pred_check_branch
      %70 = sbr.rel (0) target = $region81
    $region80: #{transformer_block_forward.4} parent=1 // pred_region
      _
    $region81: #{transformer_block_forward.4} parent=1 // pred_fallthru
      _
    // Predicated region
    $region82: #{transformer_block_forward.4} parent=1 // pred_check
      _
    $region83: #{transformer_block_forward.4} parent=1 // pred_check_branch
      %72 = sbr.rel (0) target = $region85
    $region84: #{transformer_block_forward.4} parent=1 // pred_region
      _
    $region85: #{transformer_block_forward.4} parent=1 // pred_fallthru
      _
    // Predicated region
    $region86: #{transformer_block_forward.4} parent=1 // pred_check
      _
    $region87: #{transformer_block_forward.4} parent=1 // pred_check_branch
      %74 = sbr.rel (0) target = $region89
    $region88: #{transformer_block_forward.4} parent=1 // pred_region
      _
    $region89: #{transformer_block_forward.4} parent=1 // pred_fallthru
      _
    // Predicated region
    $region90: #{transformer_block_forward.4} parent=1 // pred_check
      _
    $region91: #{transformer_block_forward.4} parent=1 // pred_check_branch
      %76 = sbr.rel (0) target = $region93
    $region92: #{transformer_block_forward.4} parent=1 // pred_region
      %s78 = ssub.s32 16, 16
      %79 = vsyncadd [#allocation3], %s78
      %s81 = sshll.u32 [#allocation2], 4
      %s82 = int_to_ptr.vmem [resolvable:$true] %s81
      %84 = dma.hbm_to_vmem [thread:$0]  %s22, 16, %s82, [#allocation3]
    $region93: #{transformer_block_forward.4} parent=1 // pred_fallthru
      _
    // Predicated region
    $region94: #{transformer_block_forward.4} parent=1 // pred_check
      _
    $region95: #{transformer_block_forward.4} parent=1 // pred_check_branch
      %86 = sbr.rel (0) target = $region97
    $region96: #{transformer_block_forward.4} parent=1 // pred_region
      %s88 = ssub.s32 16, 16
      %89 = vsyncadd [#allocation5], %s88
      %s91 = sshll.u32 [#allocation4], 4
      %s92 = int_to_ptr.vmem [resolvable:$true] %s91
      %94 = dma.hbm_to_vmem [thread:$0]  %s23, 16, %s92, [#allocation5]
    $region97: #{transformer_block_forward.4} parent=1 // pred_fallthru
      _
    // Predicated region
    $region98: #{transformer_block_forward.4} parent=1 // pred_check
      _
    $region99: #{transformer_block_forward.4} parent=1 // pred_check_branch
      %96 = sbr.rel (0) target = $region101
    $region100: #{transformer_block_forward.4} parent=1 // pred_region
      %97 = dma.done [#allocation3], 16
    $region101: #{transformer_block_forward.4} parent=1 // pred_fallthru
      _
    // Predicated region
    $region102: #{transformer_block_forward.4} parent=1 // pred_check
      _
    $region103: #{transformer_block_forward.4} parent=1 // pred_check_branch
      %99 = sbr.rel (0) target = $region105
    $region104: #{transformer_block_forward.4} parent=1 // pred_region
      %100 = dma.done [#allocation5], 16
    $region105: #{transformer_block_forward.4} parent=1 // pred_fallthru
      _
    %v102 = vld [vmem:[%s0] sm:$0xff]
    %v103 = vld [vmem:[%s0 + $0x8] sm:$0xff]
    %v104 = vld [vmem:[%s1] sm:$0xff]
    %v105 = vld [vmem:[%s1 + $0x8] sm:$0xff]
    %v106 = vld [vmem:[%s2] sm:$0xf]
    %v107 = vld [vmem:[%s2 + $0x4] sm:$0xf]
    %v108 = vld [vmem:[%s2 + $0x8] sm:$0xf]
    %v109 = vld [vmem:[%s2 + $0xc] sm:$0xf]
    %v110 = vld [vmem:[%s3] sm:$0x1]
    %v111 = vld [vmem:[%s4] sm:$0xf]
    %v112 = vld [vmem:[%s4 + $0x4] sm:$0xf]
    %v113 = vld [vmem:[%s4 + $0x8] sm:$0xf]
    %v114 = vld [vmem:[%s4 + $0xc] sm:$0xf]
    %v115 = vld [vmem:[%s5] sm:$0x1]
    %v116 = vld [vmem:[%s6] sm:$0xf]
    %v117 = vld [vmem:[%s6 + $0x4] sm:$0xf]
    %v118 = vld [vmem:[%s6 + $0x8] sm:$0xf]
    %v119 = vld [vmem:[%s6 + $0xc] sm:$0xf]
    %v120 = vld [vmem:[%s7] sm:$0x1]
    %v121 = vpack.c.bf16 %v103, %v102
    %v123 = vlaneseq
    %v124 = vshrl.u32 %v123, 7
    %v125 = vsub.s32 0, %v124
    %v126 = vrot.slane %v110, %v125
    %v132 = vunpack.c.l.b16 %v106
    %v133 = vunpack.c.l.b16 %v107
    %v134 = vunpack.c.l.b16 %v108
    %v135 = vunpack.c.l.b16 %v109
    %v136 = vpack.c.b16 %v133, %v132
    %v137 = vpack.c.b16 %v135, %v134
    %vm140 = vcmask 261120
    %v142 = vsel %vm140, %v121, 0
    %144 = vmatprep.subr.bf16.mxu0 0
    %145 = vmatpush1.bf16.msra.mxu0 %v136
    %146 = vmatprep.subr.bf16.mxu0 0
    %147 = vmatpush1.bf16.msra.mxu0 %v137
    %148 = vmatprep.subr.bf16.mxu0 0
    %149 = vmatpush1.bf16.msra.mxu0 0
    %150 = vmatprep.subr.bf16.mxu0 0
    %151 = vmatpush1.bf16.msra.mxu0 0
    %152 = vmatprep.subr.bf16.mxu0 0
    %153 = vmatpush1.bf16.msra.mxu0 0
    %154 = vmatprep.subr.bf16.mxu0 0
    %155 = vmatpush1.bf16.msra.mxu0 0
    %156 = vmatprep.subr.bf16.mxu0 0
    %157 = vmatpush1.bf16.msra.mxu0 0
    %158 = vmatprep.subr.bf16.mxu0 0
    %159 = vmatpush1.bf16.msra.mxu0 0
    %160 = vmatprep.subr.bf16.mxu0 0
    %161 = vmatpush1.bf16.msra.mxu0 0
    %162 = vmatprep.subr.bf16.mxu0 0
    %163 = vmatpush1.bf16.msra.mxu0 0
    %164 = vmatprep.subr.bf16.mxu0 0
    %165 = vmatpush1.bf16.msra.mxu0 0
    %166 = vmatprep.subr.bf16.mxu0 0
    %167 = vmatpush1.bf16.msra.mxu0 0
    %168 = vmatprep.subr.bf16.mxu0 0
    %169 = vmatpush1.bf16.msra.mxu0 0
    %170 = vmatprep.subr.bf16.mxu0 0
    %171 = vmatpush1.bf16.msra.mxu0 0
    %172 = vmatprep.subr.bf16.mxu0 0
    %173 = vmatpush1.bf16.msra.mxu0 0
    %174 = vmatprep.subr.bf16.mxu0 0
    %175 = vmatpush1.bf16.msra.mxu0 0
    %176 = vmatprep.mubr.bf16.mxu0 0
    %177 = vmatmul.mubr.bf16.gmra.mrb[0].mxu0 %v142
    %v178 = vpop.f32.mrb[0].mxu0
    %v179 = vadd.f32 %v126, %v178
    %v180 = vpop.f32.mrb[0].mxu0
    %v181 = vpop.f32.mrb[0].mxu0
    %v182 = vadd.f32 %v126, %v181
    %v183 = vpop.f32.mrb[0].mxu0
    %184 = vdwg.mxu0
    %v186 = vlaneseq
    %v187 = vshrl.u32 %v186, 7
    %v188 = vsub.s32 0, %v187
    %v189 = vrot.slane %v115, %v188
    %v195 = vunpack.c.l.b16 %v111
    %v196 = vunpack.c.l.b16 %v112
    %v197 = vunpack.c.l.b16 %v113
    %v198 = vunpack.c.l.b16 %v114
    %v199 = vpack.c.b16 %v196, %v195
    %v200 = vpack.c.b16 %v198, %v197
    %203 = vmatprep.subr.bf16.mxu0 0
    %204 = vmatpush1.bf16.msra.mxu0 %v199
    %205 = vmatprep.subr.bf16.mxu0 0
    %206 = vmatpush1.bf16.msra.mxu0 %v200
    %207 = vmatprep.subr.bf16.mxu0 0
    %208 = vmatpush1.bf16.msra.mxu0 0
    %209 = vmatprep.subr.bf16.mxu0 0
    %210 = vmatpush1.bf16.msra.mxu0 0
    %211 = vmatprep.subr.bf16.mxu0 0
    %212 = vmatpush1.bf16.msra.mxu0 0
    %213 = vmatprep.subr.bf16.mxu0 0
    %214 = vmatpush1.bf16.msra.mxu0 0
    %215 = vmatprep.subr.bf16.mxu0 0
    %216 = vmatpush1.bf16.msra.mxu0 0
    %217 = vmatprep.subr.bf16.mxu0 0
    %218 = vmatpush1.bf16.msra.mxu0 0
    %219 = vmatprep.subr.bf16.mxu0 0
    %220 = vmatpush1.bf16.msra.mxu0 0
    %221 = vmatprep.subr.bf16.mxu0 0
    %222 = vmatpush1.bf16.msra.mxu0 0
    %223 = vmatprep.subr.bf16.mxu0 0
    %224 = vmatpush1.bf16.msra.mxu0 0
    %225 = vmatprep.subr.bf16.mxu0 0
    %226 = vmatpush1.bf16.msra.mxu0 0
    %227 = vmatprep.subr.bf16.mxu0 0
    %228 = vmatpush1.bf16.msra.mxu0 0
    %229 = vmatprep.subr.bf16.mxu0 0
    %230 = vmatpush1.bf16.msra.mxu0 0
    %231 = vmatprep.subr.bf16.mxu0 0
    %232 = vmatpush1.bf16.msra.mxu0 0
    %233 = vmatprep.subr.bf16.mxu0 0
    %234 = vmatpush1.bf16.msra.mxu0 0
    %235 = vmatprep.mubr.bf16.mxu0 0
    %236 = vmatmul.mubr.bf16.gmra.mrb[0].mxu0 %v142
    %v237 = vpop.f32.mrb[0].mxu0
    %v238 = vadd.f32 %v189, %v237
    %v239 = vpop.f32.mrb[0].mxu0
    %v240 = vpop.f32.mrb[0].mxu0
    %v241 = vadd.f32 %v189, %v240
    %v242 = vpop.f32.mrb[0].mxu0
    %243 = vdwg.mxu0
    %v244 = vpack.c.bf16 %v182, %v179
    %v246 = vunpack.c.l.b16 %v244
    %v247 = vunpack.c.h.b16 %v244
    %v248 = vpack.c.b16 %v246, %v246
    %v249 = vpack.c.b16 %v247, %v247
    %v250 = vpack.c.bf16 %v241, %v238
    %v252 = vunpack.c.l.b16 %v250
    %v253 = vunpack.c.h.b16 %v250
    %v254 = vpack.c.b16 %v252, %v252
    %v255 = vpack.c.b16 %v253, %v253
    %v256 = vlaneseq
    %v257 = vshrl.u32 %v256, 7
    %v258 = vlaneseq
    %v259 = vand.u32 %v258, 127
    %vm260 = vcmp.le.s32.totalorder %v259, %v257
    %v261 = vsel %vm260, 0.0, -1e+09
    %vm262 = vcmask 64512
    %v264 = vsel %vm262, %v248, 0
    %v267 = vsel %vm262, %v254, 0
    %269 = vmatprep.subr.bf16.mxu0 0
    %270 = vmatpush1.bf16.xpose.msra.mxu0 %v267
    %271 = vmatprep.subr.bf16.mxu0 0
    %272 = vmatpush1.bf16.xpose.msra.mxu0 0
    %273 = vmatprep.subr.bf16.mxu0 0
    %274 = vmatpush1.bf16.xpose.msra.mxu0 0
    %275 = vmatprep.subr.bf16.mxu0 0
    %276 = vmatpush1.bf16.xpose.msra.mxu0 0
    %277 = vmatprep.subr.bf16.mxu0 0
    %278 = vmatpush1.bf16.xpose.msra.mxu0 0
    %279 = vmatprep.subr.bf16.mxu0 0
    %280 = vmatpush1.bf16.xpose.msra.mxu0 0
    %281 = vmatprep.subr.bf16.mxu0 0
    %282 = vmatpush1.bf16.xpose.msra.mxu0 0
    %283 = vmatprep.subr.bf16.mxu0 0
    %284 = vmatpush1.bf16.xpose.msra.mxu0 0
    %285 = vmatprep.subr.bf16.mxu0 0
    %286 = vmatpush1.bf16.xpose.msra.mxu0 0
    %287 = vmatprep.subr.bf16.mxu0 0
    %288 = vmatpush1.bf16.xpose.msra.mxu0 0
    %289 = vmatprep.subr.bf16.mxu0 0
    %290 = vmatpush1.bf16.xpose.msra.mxu0 0
    %291 = vmatprep.subr.bf16.mxu0 0
    %292 = vmatpush1.bf16.xpose.msra.mxu0 0
    %293 = vmatprep.subr.bf16.mxu0 0
    %294 = vmatpush1.bf16.xpose.msra.mxu0 0
    %295 = vmatprep.subr.bf16.mxu0 0
    %296 = vmatpush1.bf16.xpose.msra.mxu0 0
    %297 = vmatprep.subr.bf16.mxu0 0
    %298 = vmatpush1.bf16.xpose.msra.mxu0 0
    %299 = vmatprep.subr.bf16.mxu0 0
    %300 = vmatpush1.bf16.xpose.msra.mxu0 0
    %301 = vmatprep.mubr.bf16.mxu0 0
    %302 = vmatmul.mubr.bf16.gmra.mrb[0].mxu0 %v264
    %v303 = vpop.f32.mrb[0].mxu0
    %v304 = vadd.f32 0.0, %v303
    %v305 = vpop.f32.mrb[0].mxu0
    %v306 = vpop.f32.mrb[0].mxu0
    %v307 = vpop.f32.mrb[0].mxu0
    %308 = vdwg.mxu0
    %v310 = vsel %vm262, %v249, 0
    %v313 = vsel %vm262, %v255, 0
    %315 = vmatprep.subr.bf16.mxu0 0
    %316 = vmatpush1.bf16.xpose.msra.mxu0 %v313
    %317 = vmatprep.subr.bf16.mxu0 0
    %318 = vmatpush1.bf16.xpose.msra.mxu0 0
    %319 = vmatprep.subr.bf16.mxu0 0
    %320 = vmatpush1.bf16.xpose.msra.mxu0 0
    %321 = vmatprep.subr.bf16.mxu0 0
    %322 = vmatpush1.bf16.xpose.msra.mxu0 0
    %323 = vmatprep.subr.bf16.mxu0 0
    %324 = vmatpush1.bf16.xpose.msra.mxu0 0
    %325 = vmatprep.subr.bf16.mxu0 0
    %326 = vmatpush1.bf16.xpose.msra.mxu0 0
    %327 = vmatprep.subr.bf16.mxu0 0
    %328 = vmatpush1.bf16.xpose.msra.mxu0 0
    %329 = vmatprep.subr.bf16.mxu0 0
    %330 = vmatpush1.bf16.xpose.msra.mxu0 0
    %331 = vmatprep.subr.bf16.mxu0 0
    %332 = vmatpush1.bf16.xpose.msra.mxu0 0
    %333 = vmatprep.subr.bf16.mxu0 0
    %334 = vmatpush1.bf16.xpose.msra.mxu0 0
    %335 = vmatprep.subr.bf16.mxu0 0
    %336 = vmatpush1.bf16.xpose.msra.mxu0 0
    %337 = vmatprep.subr.bf16.mxu0 0
    %338 = vmatpush1.bf16.xpose.msra.mxu0 0
    %339 = vmatprep.subr.bf16.mxu0 0
    %340 = vmatpush1.bf16.xpose.msra.mxu0 0
    %341 = vmatprep.subr.bf16.mxu0 0
    %342 = vmatpush1.bf16.xpose.msra.mxu0 0
    %343 = vmatprep.subr.bf16.mxu0 0
    %344 = vmatpush1.bf16.xpose.msra.mxu0 0
    %345 = vmatprep.subr.bf16.mxu0 0
    %346 = vmatpush1.bf16.xpose.msra.mxu0 0
    %347 = vmatprep.mubr.bf16.mxu0 0
    %348 = vmatmul.mubr.bf16.gmra.mrb[0].mxu0 %v310
    %v349 = vpop.f32.mrb[0].mxu0
    %v350 = vadd.f32 0.0, %v349
    %v351 = vpop.f32.mrb[0].mxu0
    %v352 = vpop.f32.mrb[0].mxu0
    %v353 = vpop.f32.mrb[0].mxu0
    %354 = vdwg.mxu0
    %v355 = vmul.f32 %v304, 0.35355338
    %v356 = vmul.f32 %v350, 0.35355338
    %v357 = vadd.f32 %v355, %v261
    %v358 = vadd.f32 %v356, %v261
    %v359 = vsel %vm262, %v357, -inf
    %360 = vmax.xlane.f32.xlu0 %v359
    %v361 = vpop.xlane.xlu0 %360
    %v362 = vsel %vm262, %v358, -inf
    %363 = vmax.xlane.f32.xlu0 %v362
    %v364 = vpop.xlane.xlu0 %363
    %v365 = vsub.f32 %v357, %v361
    %v366 = vsub.f32 %v358, %v364
    %v367 = vmul.f32 %v365, 1.442695
    %v368 = vpow.pop %v367
    %v369 = vmul.f32 %v366, 1.442695
    %v370 = vpow.pop %v369
    %v371 = vsel %vm262, %v368, 0.0
    %372 = vadd.xlane.f32.xlu0 %v371
    %v373 = vpop.xlane.xlu0 %372
    %v374 = vsel %vm262, %v370, 0.0
    %375 = vadd.xlane.f32.xlu0 %v374
    %v376 = vpop.xlane.xlu0 %375
    %v377 = vrcp.pop %v373
    %v378 = vrcp.pop %v376
    %v379 = vmul.f32 %v368, %v377
    %v380 = vmul.f32 %v370, %v378
    %v381 = vpack.c.bf16 %v379, %v379
    %v382 = vpack.c.bf16 %v380, %v380
    %383 = vrot.lane.b32.xlu0 %v254, 96
    %v384 = vpop.permute.xlu0 %383
    %v386 = vsel %vm262, %v381, 0
    %vm388 = vcmask 1043456
    %v390 = vsel %vm388, %v384, 0
    %392 = vmatprep.subr.bf16.mxu0 0
    %393 = vmatpush1.bf16.msra.mxu0 %v390
    %394 = vmatprep.subr.bf16.mxu0 0
    %395 = vmatpush1.bf16.msra.mxu0 0
    %396 = vmatprep.subr.bf16.mxu0 0
    %397 = vmatpush1.bf16.msra.mxu0 0
    %398 = vmatprep.subr.bf16.mxu0 0
    %399 = vmatpush1.bf16.msra.mxu0 0
    %400 = vmatprep.subr.bf16.mxu0 0
    %401 = vmatpush1.bf16.msra.mxu0 0
    %402 = vmatprep.subr.bf16.mxu0 0
    %403 = vmatpush1.bf16.msra.mxu0 0
    %404 = vmatprep.subr.bf16.mxu0 0
    %405 = vmatpush1.bf16.msra.mxu0 0
    %406 = vmatprep.subr.bf16.mxu0 0
    %407 = vmatpush1.bf16.msra.mxu0 0
    %408 = vmatprep.subr.bf16.mxu0 0
    %409 = vmatpush1.bf16.msra.mxu0 0
    %410 = vmatprep.subr.bf16.mxu0 0
    %411 = vmatpush1.bf16.msra.mxu0 0
    %412 = vmatprep.subr.bf16.mxu0 0
    %413 = vmatpush1.bf16.msra.mxu0 0
    %414 = vmatprep.subr.bf16.mxu0 0
    %415 = vmatpush1.bf16.msra.mxu0 0
    %416 = vmatprep.subr.bf16.mxu0 0
    %417 = vmatpush1.bf16.msra.mxu0 0
    %418 = vmatprep.subr.bf16.mxu0 0
    %419 = vmatpush1.bf16.msra.mxu0 0
    %420 = vmatprep.subr.bf16.mxu0 0
    %421 = vmatpush1.bf16.msra.mxu0 0
    %422 = vmatprep.subr.bf16.mxu0 0
    %423 = vmatpush1.bf16.msra.mxu0 0
    %424 = vmatprep.mubr.bf16.mxu0 0
    %425 = vmatmul.mubr.bf16.gmra.mrb[0].mxu0 %v386
    %v426 = vpop.f32.mrb[0].mxu0
    %v427 = vadd.f32 0.0, %v426
    %v428 = vpop.f32.mrb[0].mxu0
    %v429 = vpop.f32.mrb[0].mxu0
    %v430 = vpop.f32.mrb[0].mxu0
    %431 = vdwg.mxu0
    %432 = vrot.lane.b32.xlu0 %v255, 96
    %v433 = vpop.permute.xlu0 %432
    %v435 = vsel %vm262, %v382, 0
    %v438 = vsel %vm388, %v433, 0
    %440 = vmatprep.subr.bf16.mxu0 0
    %441 = vmatpush1.bf16.msra.mxu0 %v438
    %442 = vmatprep.subr.bf16.mxu0 0
    %443 = vmatpush1.bf16.msra.mxu0 0
    %444 = vmatprep.subr.bf16.mxu0 0
    %445 = vmatpush1.bf16.msra.mxu0 0
    %446 = vmatprep.subr.bf16.mxu0 0
    %447 = vmatpush1.bf16.msra.mxu0 0
    %448 = vmatprep.subr.bf16.mxu0 0
    %449 = vmatpush1.bf16.msra.mxu0 0
    %450 = vmatprep.subr.bf16.mxu0 0
    %451 = vmatpush1.bf16.msra.mxu0 0
    %452 = vmatprep.subr.bf16.mxu0 0
    %453 = vmatpush1.bf16.msra.mxu0 0
    %454 = vmatprep.subr.bf16.mxu0 0
    %455 = vmatpush1.bf16.msra.mxu0 0
    %456 = vmatprep.subr.bf16.mxu0 0
    %457 = vmatpush1.bf16.msra.mxu0 0
    %458 = vmatprep.subr.bf16.mxu0 0
    %459 = vmatpush1.bf16.msra.mxu0 0
    %460 = vmatprep.subr.bf16.mxu0 0
    %461 = vmatpush1.bf16.msra.mxu0 0
    %462 = vmatprep.subr.bf16.mxu0 0
    %463 = vmatpush1.bf16.msra.mxu0 0
    %464 = vmatprep.subr.bf16.mxu0 0
    %465 = vmatpush1.bf16.msra.mxu0 0
    %466 = vmatprep.subr.bf16.mxu0 0
    %467 = vmatpush1.bf16.msra.mxu0 0
    %468 = vmatprep.subr.bf16.mxu0 0
    %469 = vmatpush1.bf16.msra.mxu0 0
    %470 = vmatprep.subr.bf16.mxu0 0
    %471 = vmatpush1.bf16.msra.mxu0 0
    %472 = vmatprep.mubr.bf16.mxu0 0
    %473 = vmatmul.mubr.bf16.gmra.mrb[0].mxu0 %v435
    %v474 = vpop.f32.mrb[0].mxu0
    %v475 = vadd.f32 0.0, %v474
    %v476 = vpop.f32.mrb[0].mxu0
    %v477 = vpop.f32.mrb[0].mxu0
    %v478 = vpop.f32.mrb[0].mxu0
    %479 = vdwg.mxu0
    %480 = vrot.lane.b32.xlu0 %v248, 120
    %v481 = vpop.permute.xlu0 %480
    %482 = vrot.lane.b32.xlu0 %v254, 120
    %v483 = vpop.permute.xlu0 %482
    %v485 = vsel %vm262, %v481, 0
    %v488 = vsel %vm262, %v483, 0
    %490 = vmatprep.subr.bf16.mxu0 0
    %491 = vmatpush1.bf16.xpose.msra.mxu0 %v488
    %492 = vmatprep.subr.bf16.mxu0 0
    %493 = vmatpush1.bf16.xpose.msra.mxu0 0
    %494 = vmatprep.subr.bf16.mxu0 0
    %495 = vmatpush1.bf16.xpose.msra.mxu0 0
    %496 = vmatprep.subr.bf16.mxu0 0
    %497 = vmatpush1.bf16.xpose.msra.mxu0 0
    %498 = vmatprep.subr.bf16.mxu0 0
    %499 = vmatpush1.bf16.xpose.msra.mxu0 0
    %500 = vmatprep.subr.bf16.mxu0 0
    %501 = vmatpush1.bf16.xpose.msra.mxu0 0
    %502 = vmatprep.subr.bf16.mxu0 0
    %503 = vmatpush1.bf16.xpose.msra.mxu0 0
    %504 = vmatprep.subr.bf16.mxu0 0
    %505 = vmatpush1.bf16.xpose.msra.mxu0 0
    %506 = vmatprep.subr.bf16.mxu0 0
    %507 = vmatpush1.bf16.xpose.msra.mxu0 0
    %508 = vmatprep.subr.bf16.mxu0 0
    %509 = vmatpush1.bf16.xpose.msra.mxu0 0
    %510 = vmatprep.subr.bf16.mxu0 0
    %511 = vmatpush1.bf16.xpose.msra.mxu0 0
    %512 = vmatprep.subr.bf16.mxu0 0
    %513 = vmatpush1.bf16.xpose.msra.mxu0 0
    %514 = vmatprep.subr.bf16.mxu0 0
    %515 = vmatpush1.bf16.xpose.msra.mxu0 0
    %516 = vmatprep.subr.bf16.mxu0 0
    %517 = vmatpush1.bf16.xpose.msra.mxu0 0
    %518 = vmatprep.subr.bf16.mxu0 0
    %519 = vmatpush1.bf16.xpose.msra.mxu0 0
    %520 = vmatprep.subr.bf16.mxu0 0
    %521 = vmatpush1.bf16.xpose.msra.mxu0 0
    %522 = vmatprep.mubr.bf16.mxu0 0
    %523 = vmatmul.mubr.bf16.gmra.mrb[0].mxu0 %v485
    %v524 = vpop.f32.mrb[0].mxu0
    %v525 = vadd.f32 0.0, %v524
    %v526 = vpop.f32.mrb[0].mxu0
    %v527 = vpop.f32.mrb[0].mxu0
    %v528 = vpop.f32.mrb[0].mxu0
    %529 = vdwg.mxu0
    %530 = vrot.lane.b32.xlu0 %v249, 120
    %v531 = vpop.permute.xlu0 %530
    %532 = vrot.lane.b32.xlu0 %v255, 120
    %v533 = vpop.permute.xlu0 %532
    %v535 = vsel %vm262, %v531, 0
    %v538 = vsel %vm262, %v533, 0
    %540 = vmatprep.subr.bf16.mxu0 0
    %541 = vmatpush1.bf16.xpose.msra.mxu0 %v538
    %542 = vmatprep.subr.bf16.mxu0 0
    %543 = vmatpush1.bf16.xpose.msra.mxu0 0
    %544 = vmatprep.subr.bf16.mxu0 0
    %545 = vmatpush1.bf16.xpose.msra.mxu0 0
    %546 = vmatprep.subr.bf16.mxu0 0
    %547 = vmatpush1.bf16.xpose.msra.mxu0 0
    %548 = vmatprep.subr.bf16.mxu0 0
    %549 = vmatpush1.bf16.xpose.msra.mxu0 0
    %550 = vmatprep.subr.bf16.mxu0 0
    %551 = vmatpush1.bf16.xpose.msra.mxu0 0
    %552 = vmatprep.subr.bf16.mxu0 0
    %553 = vmatpush1.bf16.xpose.msra.mxu0 0
    %554 = vmatprep.subr.bf16.mxu0 0
    %555 = vmatpush1.bf16.xpose.msra.mxu0 0
    %556 = vmatprep.subr.bf16.mxu0 0
    %557 = vmatpush1.bf16.xpose.msra.mxu0 0
    %558 = vmatprep.subr.bf16.mxu0 0
    %559 = vmatpush1.bf16.xpose.msra.mxu0 0
    %560 = vmatprep.subr.bf16.mxu0 0
    %561 = vmatpush1.bf16.xpose.msra.mxu0 0
    %562 = vmatprep.subr.bf16.mxu0 0
    %563 = vmatpush1.bf16.xpose.msra.mxu0 0
    %564 = vmatprep.subr.bf16.mxu0 0
    %565 = vmatpush1.bf16.xpose.msra.mxu0 0
    %566 = vmatprep.subr.bf16.mxu0 0
    %567 = vmatpush1.bf16.xpose.msra.mxu0 0
    %568 = vmatprep.subr.bf16.mxu0 0
    %569 = vmatpush1.bf16.xpose.msra.mxu0 0
    %570 = vmatprep.subr.bf16.mxu0 0
    %571 = vmatpush1.bf16.xpose.msra.mxu0 0
    %572 = vmatprep.mubr.bf16.mxu0 0
    %573 = vmatmul.mubr.bf16.gmra.mrb[0].mxu0 %v535
    %v574 = vpop.f32.mrb[0].mxu0
    %v575 = vadd.f32 0.0, %v574
    %v576 = vpop.f32.mrb[0].mxu0
    %v577 = vpop.f32.mrb[0].mxu0
    %v578 = vpop.f32.mrb[0].mxu0
    %579 = vdwg.mxu0
    %v580 = vmul.f32 %v525, 0.35355338
    %v581 = vmul.f32 %v575, 0.35355338
    %v582 = vadd.f32 %v580, %v261
    %v583 = vadd.f32 %v581, %v261
    %v584 = vsel %vm262, %v582, -inf
    %585 = vmax.xlane.f32.xlu0 %v584
    %v586 = vpop.xlane.xlu0 %585
    %v587 = vsel %vm262, %v583, -inf
    %588 = vmax.xlane.f32.xlu0 %v587
    %v589 = vpop.xlane.xlu0 %588
    %v590 = vsub.f32 %v582, %v586
    %v591 = vsub.f32 %v583, %v589
    %v592 = vmul.f32 %v590, 1.442695
    %v593 = vpow.pop %v592
    %v594 = vmul.f32 %v591, 1.442695
    %v595 = vpow.pop %v594
    %v596 = vsel %vm262, %v593, 0.0
    %597 = vadd.xlane.f32.xlu0 %v596
    %v598 = vpop.xlane.xlu0 %597
    %v599 = vsel %vm262, %v595, 0.0
    %600 = vadd.xlane.f32.xlu0 %v599
    %v601 = vpop.xlane.xlu0 %600
    %v602 = vrcp.pop %v598
    %v603 = vrcp.pop %v601
    %v604 = vmul.f32 %v593, %v602
    %v605 = vmul.f32 %v595, %v603
    %v606 = vpack.c.bf16 %v604, %v604
    %v607 = vpack.c.bf16 %v605, %v605
    %608 = vrot.lane.b32.xlu0 %v254, 88
    %v609 = vpop.permute.xlu0 %608
    %v611 = vsel %vm262, %v606, 0
    %v614 = vsel %vm388, %v609, 0
    %616 = vmatprep.subr.bf16.mxu0 0
    %617 = vmatpush1.bf16.msra.mxu0 %v614
    %618 = vmatprep.subr.bf16.mxu0 0
    %619 = vmatpush1.bf16.msra.mxu0 0
    %620 = vmatprep.subr.bf16.mxu0 0
    %621 = vmatpush1.bf16.msra.mxu0 0
    %622 = vmatprep.subr.bf16.mxu0 0
    %623 = vmatpush1.bf16.msra.mxu0 0
    %624 = vmatprep.subr.bf16.mxu0 0
    %625 = vmatpush1.bf16.msra.mxu0 0
    %626 = vmatprep.subr.bf16.mxu0 0
    %627 = vmatpush1.bf16.msra.mxu0 0
    %628 = vmatprep.subr.bf16.mxu0 0
    %629 = vmatpush1.bf16.msra.mxu0 0
    %630 = vmatprep.subr.bf16.mxu0 0
    %631 = vmatpush1.bf16.msra.mxu0 0
    %632 = vmatprep.subr.bf16.mxu0 0
    %633 = vmatpush1.bf16.msra.mxu0 0
    %634 = vmatprep.subr.bf16.mxu0 0
    %635 = vmatpush1.bf16.msra.mxu0 0
    %636 = vmatprep.subr.bf16.mxu0 0
    %637 = vmatpush1.bf16.msra.mxu0 0
    %638 = vmatprep.subr.bf16.mxu0 0
    %639 = vmatpush1.bf16.msra.mxu0 0
    %640 = vmatprep.subr.bf16.mxu0 0
    %641 = vmatpush1.bf16.msra.mxu0 0
    %642 = vmatprep.subr.bf16.mxu0 0
    %643 = vmatpush1.bf16.msra.mxu0 0
    %644 = vmatprep.subr.bf16.mxu0 0
    %645 = vmatpush1.bf16.msra.mxu0 0
    %646 = vmatprep.subr.bf16.mxu0 0
    %647 = vmatpush1.bf16.msra.mxu0 0
    %648 = vmatprep.mubr.bf16.mxu0 0
    %649 = vmatmul.mubr.bf16.gmra.mrb[0].mxu0 %v611
    %v650 = vpop.f32.mrb[0].mxu0
    %v651 = vadd.f32 0.0, %v650
    %v652 = vpop.f32.mrb[0].mxu0
    %v653 = vpop.f32.mrb[0].mxu0
    %v654 = vpop.f32.mrb[0].mxu0
    %655 = vdwg.mxu0
    %656 = vrot.lane.b32.xlu0 %v255, 88
    %v657 = vpop.permute.xlu0 %656
    %v659 = vsel %vm262, %v607, 0
    %v662 = vsel %vm388, %v657, 0
    %664 = vmatprep.subr.bf16.mxu0 0
    %665 = vmatpush1.bf16.msra.mxu0 %v662
    %666 = vmatprep.subr.bf16.mxu0 0
    %667 = vmatpush1.bf16.msra.mxu0 0
    %668 = vmatprep.subr.bf16.mxu0 0
    %669 = vmatpush1.bf16.msra.mxu0 0
    %670 = vmatprep.subr.bf16.mxu0 0
    %671 = vmatpush1.bf16.msra.mxu0 0
    %672 = vmatprep.subr.bf16.mxu0 0
    %673 = vmatpush1.bf16.msra.mxu0 0
    %674 = vmatprep.subr.bf16.mxu0 0
    %675 = vmatpush1.bf16.msra.mxu0 0
    %676 = vmatprep.subr.bf16.mxu0 0
    %677 = vmatpush1.bf16.msra.mxu0 0
    %678 = vmatprep.subr.bf16.mxu0 0
    %679 = vmatpush1.bf16.msra.mxu0 0
    %680 = vmatprep.subr.bf16.mxu0 0
    %681 = vmatpush1.bf16.msra.mxu0 0
    %682 = vmatprep.subr.bf16.mxu0 0
    %683 = vmatpush1.bf16.msra.mxu0 0
    %684 = vmatprep.subr.bf16.mxu0 0
    %685 = vmatpush1.bf16.msra.mxu0 0
    %686 = vmatprep.subr.bf16.mxu0 0
    %687 = vmatpush1.bf16.msra.mxu0 0
    %688 = vmatprep.subr.bf16.mxu0 0
    %689 = vmatpush1.bf16.msra.mxu0 0
    %690 = vmatprep.subr.bf16.mxu0 0
    %691 = vmatpush1.bf16.msra.mxu0 0
    %692 = vmatprep.subr.bf16.mxu0 0
    %693 = vmatpush1.bf16.msra.mxu0 0
    %694 = vmatprep.subr.bf16.mxu0 0
    %695 = vmatpush1.bf16.msra.mxu0 0
    %696 = vmatprep.mubr.bf16.mxu0 0
    %697 = vmatmul.mubr.bf16.gmra.mrb[0].mxu0 %v659
    %v698 = vpop.f32.mrb[0].mxu0
    %v699 = vadd.f32 0.0, %v698
    %v700 = vpop.f32.mrb[0].mxu0
    %v701 = vpop.f32.mrb[0].mxu0
    %v702 = vpop.f32.mrb[0].mxu0
    %703 = vdwg.mxu0
    %704 = vrot.lane.b32.xlu0 %v248, 112
    %v705 = vpop.permute.xlu0 %704
    %706 = vrot.lane.b32.xlu0 %v254, 112
    %v707 = vpop.permute.xlu0 %706
    %v709 = vsel %vm262, %v705, 0
    %v712 = vsel %vm262, %v707, 0
    %714 = vmatprep.subr.bf16.mxu0 0
    %715 = vmatpush1.bf16.xpose.msra.mxu0 %v712
    %716 = vmatprep.subr.bf16.mxu0 0
    %717 = vmatpush1.bf16.xpose.msra.mxu0 0
    %718 = vmatprep.subr.bf16.mxu0 0
    %719 = vmatpush1.bf16.xpose.msra.mxu0 0
    %720 = vmatprep.subr.bf16.mxu0 0
    %721 = vmatpush1.bf16.xpose.msra.mxu0 0
    %722 = vmatprep.subr.bf16.mxu0 0
    %723 = vmatpush1.bf16.xpose.msra.mxu0 0
    %724 = vmatprep.subr.bf16.mxu0 0
    %725 = vmatpush1.bf16.xpose.msra.mxu0 0
    %726 = vmatprep.subr.bf16.mxu0 0
    %727 = vmatpush1.bf16.xpose.msra.mxu0 0
    %728 = vmatprep.subr.bf16.mxu0 0
    %729 = vmatpush1.bf16.xpose.msra.mxu0 0
    %730 = vmatprep.subr.bf16.mxu0 0
    %731 = vmatpush1.bf16.xpose.msra.mxu0 0
    %732 = vmatprep.subr.bf16.mxu0 0
    %733 = vmatpush1.bf16.xpose.msra.mxu0 0
    %734 = vmatprep.subr.bf16.mxu0 0
    %735 = vmatpush1.bf16.xpose.msra.mxu0 0
    %736 = vmatprep.subr.bf16.mxu0 0
    %737 = vmatpush1.bf16.xpose.msra.mxu0 0
    %738 = vmatprep.subr.bf16.mxu0 0
    %739 = vmatpush1.bf16.xpose.msra.mxu0 0
    %740 = vmatprep.subr.bf16.mxu0 0
    %741 = vmatpush1.bf16.xpose.msra.mxu0 0
    %742 = vmatprep.subr.bf16.mxu0 0
    %743 = vmatpush1.bf16.xpose.msra.mxu0 0
    %744 = vmatprep.subr.bf16.mxu0 0
    %745 = vmatpush1.bf16.xpose.msra.mxu0 0
    %746 = vmatprep.mubr.bf16.mxu0 0
    %747 = vmatmul.mubr.bf16.gmra.mrb[0].mxu0 %v709
    %v748 = vpop.f32.mrb[0].mxu0
    %v749 = vadd.f32 0.0, %v748
    %v750 = vpop.f32.mrb[0].mxu0
    %v751 = vpop.f32.mrb[0].mxu0
    %v752 = vpop.f32.mrb[0].mxu0
    %753 = vdwg.mxu0
    %754 = vrot.lane.b32.xlu0 %v249, 112
    %v755 = vpop.permute.xlu0 %754
    %756 = vrot.lane.b32.xlu0 %v255, 112
    %v757 = vpop.permute.xlu0 %756
    %v759 = vsel %vm262, %v755, 0
    %v762 = vsel %vm262, %v757, 0
    %764 = vmatprep.subr.bf16.mxu0 0
    %765 = vmatpush1.bf16.xpose.msra.mxu0 %v762
    %766 = vmatprep.subr.bf16.mxu0 0
    %767 = vmatpush1.bf16.xpose.msra.mxu0 0
    %768 = vmatprep.subr.bf16.mxu0 0
    %769 = vmatpush1.bf16.xpose.msra.mxu0 0
    %770 = vmatprep.subr.bf16.mxu0 0
    %771 = vmatpush1.bf16.xpose.msra.mxu0 0
    %772 = vmatprep.subr.bf16.mxu0 0
    %773 = vmatpush1.bf16.xpose.msra.mxu0 0
    %774 = vmatprep.subr.bf16.mxu0 0
    %775 = vmatpush1.bf16.xpose.msra.mxu0 0
    %776 = vmatprep.subr.bf16.mxu0 0
    %777 = vmatpush1.bf16.xpose.msra.mxu0 0
    %778 = vmatprep.subr.bf16.mxu0 0
    %779 = vmatpush1.bf16.xpose.msra.mxu0 0
    %780 = vmatprep.subr.bf16.mxu0 0
    %781 = vmatpush1.bf16.xpose.msra.mxu0 0
    %782 = vmatprep.subr.bf16.mxu0 0
    %783 = vmatpush1.bf16.xpose.msra.mxu0 0
    %784 = vmatprep.subr.bf16.mxu0 0
    %785 = vmatpush1.bf16.xpose.msra.mxu0 0
    %786 = vmatprep.subr.bf16.mxu0 0
    %787 = vmatpush1.bf16.xpose.msra.mxu0 0
    %788 = vmatprep.subr.bf16.mxu0 0
    %789 = vmatpush1.bf16.xpose.msra.mxu0 0
    %790 = vmatprep.subr.bf16.mxu0 0
    %791 = vmatpush1.bf16.xpose.msra.mxu0 0
    %792 = vmatprep.subr.bf16.mxu0 0
    %793 = vmatpush1.bf16.xpose.msra.mxu0 0
    %794 = vmatprep.subr.bf16.mxu0 0
    %795 = vmatpush1.bf16.xpose.msra.mxu0 0
    %796 = vmatprep.mubr.bf16.mxu0 0
    %797 = vmatmul.mubr.bf16.gmra.mrb[0].mxu0 %v759
    %v798 = vpop.f32.mrb[0].mxu0
    %v799 = vadd.f32 0.0, %v798
    %v800 = vpop.f32.mrb[0].mxu0
    %v801 = vpop.f32.mrb[0].mxu0
    %v802 = vpop.f32.mrb[0].mxu0
    %803 = vdwg.mxu0
    %v804 = vmul.f32 %v749, 0.35355338
    %v805 = vmul.f32 %v799, 0.35355338
    %v806 = vadd.f32 %v804, %v261
    %v807 = vadd.f32 %v805, %v261
    %v808 = vsel %vm262, %v806, -inf
    %809 = vmax.xlane.f32.xlu0 %v808
    %v810 = vpop.xlane.xlu0 %809
    %v811 = vsel %vm262, %v807, -inf
    %812 = vmax.xlane.f32.xlu0 %v811
    %v813 = vpop.xlane.xlu0 %812
    %v814 = vsub.f32 %v806, %v810
    %v815 = vsub.f32 %v807, %v813
    %v816 = vmul.f32 %v814, 1.442695
    %v817 = vpow.pop %v816
    %v818 = vmul.f32 %v815, 1.442695
    %v819 = vpow.pop %v818
    %v820 = vsel %vm262, %v817, 0.0
    %821 = vadd.xlane.f32.xlu0 %v820
    %v822 = vpop.xlane.xlu0 %821
    %v823 = vsel %vm262, %v819, 0.0
    %824 = vadd.xlane.f32.xlu0 %v823
    %v825 = vpop.xlane.xlu0 %824
    %v826 = vrcp.pop %v822
    %v827 = vrcp.pop %v825
    %v828 = vmul.f32 %v817, %v826
    %v829 = vmul.f32 %v819, %v827
    %v830 = vpack.c.bf16 %v828, %v828
    %v831 = vpack.c.bf16 %v829, %v829
    %832 = vrot.lane.b32.xlu0 %v254, 80
    %v833 = vpop.permute.xlu0 %832
    %v835 = vsel %vm262, %v830, 0
    %v838 = vsel %vm388, %v833, 0
    %840 = vmatprep.subr.bf16.mxu0 0
    %841 = vmatpush1.bf16.msra.mxu0 %v838
    %842 = vmatprep.subr.bf16.mxu0 0
    %843 = vmatpush1.bf16.msra.mxu0 0
    %844 = vmatprep.subr.bf16.mxu0 0
    %845 = vmatpush1.bf16.msra.mxu0 0
    %846 = vmatprep.subr.bf16.mxu0 0
    %847 = vmatpush1.bf16.msra.mxu0 0
    %848 = vmatprep.subr.bf16.mxu0 0
    %849 = vmatpush1.bf16.msra.mxu0 0
    %850 = vmatprep.subr.bf16.mxu0 0
    %851 = vmatpush1.bf16.msra.mxu0 0
    %852 = vmatprep.subr.bf16.mxu0 0
    %853 = vmatpush1.bf16.msra.mxu0 0
    %854 = vmatprep.subr.bf16.mxu0 0
    %855 = vmatpush1.bf16.msra.mxu0 0
    %856 = vmatprep.subr.bf16.mxu0 0
    %857 = vmatpush1.bf16.msra.mxu0 0
    %858 = vmatprep.subr.bf16.mxu0 0
    %859 = vmatpush1.bf16.msra.mxu0 0
    %860 = vmatprep.subr.bf16.mxu0 0
    %861 = vmatpush1.bf16.msra.mxu0 0
    %862 = vmatprep.subr.bf16.mxu0 0
    %863 = vmatpush1.bf16.msra.mxu0 0
    %864 = vmatprep.subr.bf16.mxu0 0
    %865 = vmatpush1.bf16.msra.mxu0 0
    %866 = vmatprep.subr.bf16.mxu0 0
    %867 = vmatpush1.bf16.msra.mxu0 0
    %868 = vmatprep.subr.bf16.mxu0 0
    %869 = vmatpush1.bf16.msra.mxu0 0
    %870 = vmatprep.subr.bf16.mxu0 0
    %871 = vmatpush1.bf16.msra.mxu0 0
    %872 = vmatprep.mubr.bf16.mxu0 0
    %873 = vmatmul.mubr.bf16.gmra.mrb[0].mxu0 %v835
    %v874 = vpop.f32.mrb[0].mxu0
    %v875 = vadd.f32 0.0, %v874
    %v876 = vpop.f32.mrb[0].mxu0
    %v877 = vpop.f32.mrb[0].mxu0
    %v878 = vpop.f32.mrb[0].mxu0
    %879 = vdwg.mxu0
    %880 = vrot.lane.b32.xlu0 %v255, 80
    %v881 = vpop.permute.xlu0 %880
    %v883 = vsel %vm262, %v831, 0
    %v886 = vsel %vm388, %v881, 0
    %888 = vmatprep.subr.bf16.mxu0 0
    %889 = vmatpush1.bf16.msra.mxu0 %v886
    %890 = vmatprep.subr.bf16.mxu0 0
    %891 = vmatpush1.bf16.msra.mxu0 0
    %892 = vmatprep.subr.bf16.mxu0 0
    %893 = vmatpush1.bf16.msra.mxu0 0
    %894 = vmatprep.subr.bf16.mxu0 0
    %895 = vmatpush1.bf16.msra.mxu0 0
    %896 = vmatprep.subr.bf16.mxu0 0
    %897 = vmatpush1.bf16.msra.mxu0 0
    %898 = vmatprep.subr.bf16.mxu0 0
    %899 = vmatpush1.bf16.msra.mxu0 0
    %900 = vmatprep.subr.bf16.mxu0 0
    %901 = vmatpush1.bf16.msra.mxu0 0
    %902 = vmatprep.subr.bf16.mxu0 0
    %903 = vmatpush1.bf16.msra.mxu0 0
    %904 = vmatprep.subr.bf16.mxu0 0
    %905 = vmatpush1.bf16.msra.mxu0 0
    %906 = vmatprep.subr.bf16.mxu0 0
    %907 = vmatpush1.bf16.msra.mxu0 0
    %908 = vmatprep.subr.bf16.mxu0 0
    %909 = vmatpush1.bf16.msra.mxu0 0
    %910 = vmatprep.subr.bf16.mxu0 0
    %911 = vmatpush1.bf16.msra.mxu0 0
    %912 = vmatprep.subr.bf16.mxu0 0
    %913 = vmatpush1.bf16.msra.mxu0 0
    %914 = vmatprep.subr.bf16.mxu0 0
    %915 = vmatpush1.bf16.msra.mxu0 0
    %916 = vmatprep.subr.bf16.mxu0 0
    %917 = vmatpush1.bf16.msra.mxu0 0
    %918 = vmatprep.subr.bf16.mxu0 0
    %919 = vmatpush1.bf16.msra.mxu0 0
    %920 = vmatprep.mubr.bf16.mxu0 0
    %921 = vmatmul.mubr.bf16.gmra.mrb[0].mxu0 %v883
    %v922 = vpop.f32.mrb[0].mxu0
    %v923 = vadd.f32 0.0, %v922
    %v924 = vpop.f32.mrb[0].mxu0
    %v925 = vpop.f32.mrb[0].mxu0
    %v926 = vpop.f32.mrb[0].mxu0
    %927 = vdwg.mxu0
    %928 = vrot.lane.b32.xlu0 %v248, 104
    %v929 = vpop.permute.xlu0 %928
    %930 = vrot.lane.b32.xlu0 %v254, 104
    %v931 = vpop.permute.xlu0 %930
    %v933 = vsel %vm262, %v929, 0
    %v936 = vsel %vm262, %v931, 0
    %938 = vmatprep.subr.bf16.mxu0 0
    %939 = vmatpush1.bf16.xpose.msra.mxu0 %v936
    %940 = vmatprep.subr.bf16.mxu0 0
    %941 = vmatpush1.bf16.xpose.msra.mxu0 0
    %942 = vmatprep.subr.bf16.mxu0 0
    %943 = vmatpush1.bf16.xpose.msra.mxu0 0
    %944 = vmatprep.subr.bf16.mxu0 0
    %945 = vmatpush1.bf16.xpose.msra.mxu0 0
    %946 = vmatprep.subr.bf16.mxu0 0
    %947 = vmatpush1.bf16.xpose.msra.mxu0 0
    %948 = vmatprep.subr.bf16.mxu0 0
    %949 = vmatpush1.bf16.xpose.msra.mxu0 0
    %950 = vmatprep.subr.bf16.mxu0 0
    %951 = vmatpush1.bf16.xpose.msra.mxu0 0
    %952 = vmatprep.subr.bf16.mxu0 0
    %953 = vmatpush1.bf16.xpose.msra.mxu0 0
    %954 = vmatprep.subr.bf16.mxu0 0
    %955 = vmatpush1.bf16.xpose.msra.mxu0 0
    %956 = vmatprep.subr.bf16.mxu0 0
    %957 = vmatpush1.bf16.xpose.msra.mxu0 0
    %958 = vmatprep.subr.bf16.mxu0 0
    %959 = vmatpush1.bf16.xpose.msra.mxu0 0
    %960 = vmatprep.subr.bf16.mxu0 0
    %961 = vmatpush1.bf16.xpose.msra.mxu0 0
    %962 = vmatprep.subr.bf16.mxu0 0
    %963 = vmatpush1.bf16.xpose.msra.mxu0 0
    %964 = vmatprep.subr.bf16.mxu0 0
    %965 = vmatpush1.bf16.xpose.msra.mxu0 0
    %966 = vmatprep.subr.bf16.mxu0 0
    %967 = vmatpush1.bf16.xpose.msra.mxu0 0
    %968 = vmatprep.subr.bf16.mxu0 0
    %969 = vmatpush1.bf16.xpose.msra.mxu0 0
    %970 = vmatprep.mubr.bf16.mxu0 0
    %971 = vmatmul.mubr.bf16.gmra.mrb[0].mxu0 %v933
    %v972 = vpop.f32.mrb[0].mxu0
    %v973 = vadd.f32 0.0, %v972
    %v974 = vpop.f32.mrb[0].mxu0
    %v975 = vpop.f32.mrb[0].mxu0
    %v976 = vpop.f32.mrb[0].mxu0
    %977 = vdwg.mxu0
    %978 = vrot.lane.b32.xlu0 %v249, 104
    %v979 = vpop.permute.xlu0 %978
    %980 = vrot.lane.b32.xlu0 %v255, 104
    %v981 = vpop.permute.xlu0 %980
    %v983 = vsel %vm262, %v979, 0
    %v986 = vsel %vm262, %v981, 0
    %988 = vmatprep.subr.bf16.mxu0 0
    %989 = vmatpush1.bf16.xpose.msra.mxu0 %v986
    %990 = vmatprep.subr.bf16.mxu0 0
    %991 = vmatpush1.bf16.xpose.msra.mxu0 0
    %992 = vmatprep.subr.bf16.mxu0 0
    %993 = vmatpush1.bf16.xpose.msra.mxu0 0
    %994 = vmatprep.subr.bf16.mxu0 0
    %995 = vmatpush1.bf16.xpose.msra.mxu0 0
    %996 = vmatprep.subr.bf16.mxu0 0
    %997 = vmatpush1.bf16.xpose.msra.mxu0 0
    %998 = vmatprep.subr.bf16.mxu0 0
    %999 = vmatpush1.bf16.xpose.msra.mxu0 0
    %1000 = vmatprep.subr.bf16.mxu0 0
    %1001 = vmatpush1.bf16.xpose.msra.mxu0 0
    %1002 = vmatprep.subr.bf16.mxu0 0
    %1003 = vmatpush1.bf16.xpose.msra.mxu0 0
    %1004 = vmatprep.subr.bf16.mxu0 0
    %1005 = vmatpush1.bf16.xpose.msra.mxu0 0
    %1006 = vmatprep.subr.bf16.mxu0 0
    %1007 = vmatpush1.bf16.xpose.msra.mxu0 0
    %1008 = vmatprep.subr.bf16.mxu0 0
    %1009 = vmatpush1.bf16.xpose.msra.mxu0 0
    %1010 = vmatprep.subr.bf16.mxu0 0
    %1011 = vmatpush1.bf16.xpose.msra.mxu0 0
    %1012 = vmatprep.subr.bf16.mxu0 0
    %1013 = vmatpush1.bf16.xpose.msra.mxu0 0
    %1014 = vmatprep.subr.bf16.mxu0 0
    %1015 = vmatpush1.bf16.xpose.msra.mxu0 0
    %1016 = vmatprep.subr.bf16.mxu0 0
    %1017 = vmatpush1.bf16.xpose.msra.mxu0 0
    %1018 = vmatprep.subr.bf16.mxu0 0
    %1019 = vmatpush1.bf16.xpose.msra.mxu0 0
    %1020 = vmatprep.mubr.bf16.mxu0 0
    %1021 = vmatmul.mubr.bf16.gmra.mrb[0].mxu0 %v983
    %v1022 = vpop.f32.mrb[0].mxu0
    %v1023 = vadd.f32 0.0, %v1022
    %v1024 = vpop.f32.mrb[0].mxu0
    %v1025 = vpop.f32.mrb[0].mxu0
    %v1026 = vpop.f32.mrb[0].mxu0
    %1027 = vdwg.mxu0
    %v1028 = vmul.f32 %v973, 0.35355338
    %v1029 = vmul.f32 %v1023, 0.35355338
    %v1030 = vadd.f32 %v1028, %v261
    %v1031 = vadd.f32 %v1029, %v261
    %v1032 = vsel %vm262, %v1030, -inf
    %1033 = vmax.xlane.f32.xlu0 %v1032
    %v1034 = vpop.xlane.xlu0 %1033
    %v1035 = vsel %vm262, %v1031, -inf
    %1036 = vmax.xlane.f32.xlu0 %v1035
    %v1037 = vpop.xlane.xlu0 %1036
    %v1038 = vsub.f32 %v1030, %v1034
    %v1039 = vsub.f32 %v1031, %v1037
    %v1040 = vmul.f32 %v1038, 1.442695
    %v1041 = vpow.pop %v1040
    %v1042 = vmul.f32 %v1039, 1.442695
    %v1043 = vpow.pop %v1042
    %v1044 = vsel %vm262, %v1041, 0.0
    %1045 = vadd.xlane.f32.xlu0 %v1044
    %v1046 = vpop.xlane.xlu0 %1045
    %v1047 = vsel %vm262, %v1043, 0.0
    %1048 = vadd.xlane.f32.xlu0 %v1047
    %v1049 = vpop.xlane.xlu0 %1048
    %v1050 = vrcp.pop %v1046
    %v1051 = vrcp.pop %v1049
    %v1052 = vmul.f32 %v1041, %v1050
    %v1053 = vmul.f32 %v1043, %v1051
    %v1054 = vpack.c.bf16 %v1052, %v1052
    %v1055 = vpack.c.bf16 %v1053, %v1053
    %1056 = vrot.lane.b32.xlu0 %v254, 72
    %v1057 = vpop.permute.xlu0 %1056
    %v1059 = vsel %vm262, %v1054, 0
    %v1062 = vsel %vm388, %v1057, 0
    %1064 = vmatprep.subr.bf16.mxu0 0
    %1065 = vmatpush1.bf16.msra.mxu0 %v1062
    %1066 = vmatprep.subr.bf16.mxu0 0
    %1067 = vmatpush1.bf16.msra.mxu0 0
    %1068 = vmatprep.subr.bf16.mxu0 0
    %1069 = vmatpush1.bf16.msra.mxu0 0
    %1070 = vmatprep.subr.bf16.mxu0 0
    %1071 = vmatpush1.bf16.msra.mxu0 0
    %1072 = vmatprep.subr.bf16.mxu0 0
    %1073 = vmatpush1.bf16.msra.mxu0 0
    %1074 = vmatprep.subr.bf16.mxu0 0
    %1075 = vmatpush1.bf16.msra.mxu0 0
    %1076 = vmatprep.subr.bf16.mxu0 0
    %1077 = vmatpush1.bf16.msra.mxu0 0
    %1078 = vmatprep.subr.bf16.mxu0 0
    %1079 = vmatpush1.bf16.msra.mxu0 0
    %1080 = vmatprep.subr.bf16.mxu0 0
    %1081 = vmatpush1.bf16.msra.mxu0 0
    %1082 = vmatprep.subr.bf16.mxu0 0
    %1083 = vmatpush1.bf16.msra.mxu0 0
    %1084 = vmatprep.subr.bf16.mxu0 0
    %1085 = vmatpush1.bf16.msra.mxu0 0
    %1086 = vmatprep.subr.bf16.mxu0 0
    %1087 = vmatpush1.bf16.msra.mxu0 0
    %1088 = vmatprep.subr.bf16.mxu0 0
    %1089 = vmatpush1.bf16.msra.mxu0 0
    %1090 = vmatprep.subr.bf16.mxu0 0
    %1091 = vmatpush1.bf16.msra.mxu0 0
    %1092 = vmatprep.subr.bf16.mxu0 0
    %1093 = vmatpush1.bf16.msra.mxu0 0
    %1094 = vmatprep.subr.bf16.mxu0 0
    %1095 = vmatpush1.bf16.msra.mxu0 0
    %1096 = vmatprep.mubr.bf16.mxu0 0
    %1097 = vmatmul.mubr.bf16.gmra.mrb[0].mxu0 %v1059
    %v1098 = vpop.f32.mrb[0].mxu0
    %v1099 = vadd.f32 0.0, %v1098
    %v1100 = vpop.f32.mrb[0].mxu0
    %v1101 = vpop.f32.mrb[0].mxu0
    %v1102 = vpop.f32.mrb[0].mxu0
    %1103 = vdwg.mxu0
    %1104 = vrot.lane.b32.xlu0 %v255, 72
    %v1105 = vpop.permute.xlu0 %1104
    %v1107 = vsel %vm262, %v1055, 0
    %v1110 = vsel %vm388, %v1105, 0
    %1112 = vmatprep.subr.bf16.mxu0 0
    %1113 = vmatpush1.bf16.msra.mxu0 %v1110
    %1114 = vmatprep.subr.bf16.mxu0 0
    %1115 = vmatpush1.bf16.msra.mxu0 0
    %1116 = vmatprep.subr.bf16.mxu0 0
    %1117 = vmatpush1.bf16.msra.mxu0 0
    %1118 = vmatprep.subr.bf16.mxu0 0
    %1119 = vmatpush1.bf16.msra.mxu0 0
    %1120 = vmatprep.subr.bf16.mxu0 0
    %1121 = vmatpush1.bf16.msra.mxu0 0
    %1122 = vmatprep.subr.bf16.mxu0 0
    %1123 = vmatpush1.bf16.msra.mxu0 0
    %1124 = vmatprep.subr.bf16.mxu0 0
    %1125 = vmatpush1.bf16.msra.mxu0 0
    %1126 = vmatprep.subr.bf16.mxu0 0
    %1127 = vmatpush1.bf16.msra.mxu0 0
    %1128 = vmatprep.subr.bf16.mxu0 0
    %1129 = vmatpush1.bf16.msra.mxu0 0
    %1130 = vmatprep.subr.bf16.mxu0 0
    %1131 = vmatpush1.bf16.msra.mxu0 0
    %1132 = vmatprep.subr.bf16.mxu0 0
    %1133 = vmatpush1.bf16.msra.mxu0 0
    %1134 = vmatprep.subr.bf16.mxu0 0
    %1135 = vmatpush1.bf16.msra.mxu0 0
    %1136 = vmatprep.subr.bf16.mxu0 0
    %1137 = vmatpush1.bf16.msra.mxu0 0
    %1138 = vmatprep.subr.bf16.mxu0 0
    %1139 = vmatpush1.bf16.msra.mxu0 0
    %1140 = vmatprep.subr.bf16.mxu0 0
    %1141 = vmatpush1.bf16.msra.mxu0 0
    %1142 = vmatprep.subr.bf16.mxu0 0
    %1143 = vmatpush1.bf16.msra.mxu0 0
    %1144 = vmatprep.mubr.bf16.mxu0 0
    %1145 = vmatmul.mubr.bf16.gmra.mrb[0].mxu0 %v1107
    %v1146 = vpop.f32.mrb[0].mxu0
    %v1147 = vadd.f32 0.0, %v1146
    %v1148 = vpop.f32.mrb[0].mxu0
    %v1149 = vpop.f32.mrb[0].mxu0
    %v1150 = vpop.f32.mrb[0].mxu0
    %1151 = vdwg.mxu0
    %1154 = vrot.lane.b32.xlu0 %v651, 8
    %v1155 = vpop.permute.xlu0 %1154
    %1156 = vrot.lane.b32.xlu0 %v699, 8
    %v1157 = vpop.permute.xlu0 %1156
    %1162 = vrot.lane.b32.xlu0 %v875, 16
    %v1163 = vpop.permute.xlu0 %1162
    %1164 = vrot.lane.b32.xlu0 %v923, 16
    %v1165 = vpop.permute.xlu0 %1164
    %1170 = vrot.lane.b32.xlu0 %v1099, 24
    %v1171 = vpop.permute.xlu0 %1170
    %1172 = vrot.lane.b32.xlu0 %v1147, 24
    %v1173 = vpop.permute.xlu0 %1172
    %v1176 = vsel %vm262, %v427, %v1155
    %v1177 = vsel %vm262, %v475, %v1157
    %vm1178 = vcmask 130048
    %v1179 = vsel %vm1178, %v1176, %v1163
    %v1180 = vsel %vm1178, %v1177, %v1165
    %vm1181 = vcmask 195584
    %v1182 = vsel %vm1181, %v1179, %v1171
    %v1183 = vsel %vm1181, %v1180, %v1173
    %v1184 = vpack.c.bf16 %v1183, %v1182
    %v1186 = vlaneseq
    %v1187 = vshrl.u32 %v1186, 7
    %v1188 = vsub.s32 0, %v1187
    %v1189 = vrot.slane %v120, %v1188
    %v1195 = vunpack.c.l.b16 %v116
    %v1196 = vunpack.c.l.b16 %v117
    %v1197 = vunpack.c.l.b16 %v118
    %v1198 = vunpack.c.l.b16 %v119
    %v1199 = vpack.c.b16 %v1196, %v1195
    %v1200 = vpack.c.b16 %v1198, %v1197
    %v1204 = vsel %vm140, %v1184, 0
    %1206 = vmatprep.subr.bf16.mxu0 0
    %1207 = vmatpush1.bf16.msra.mxu0 %v1199
    %1208 = vmatprep.subr.bf16.mxu0 0
    %1209 = vmatpush1.bf16.msra.mxu0 %v1200
    %1210 = vmatprep.subr.bf16.mxu0 0
    %1211 = vmatpush1.bf16.msra.mxu0 0
    %1212 = vmatprep.subr.bf16.mxu0 0
    %1213 = vmatpush1.bf16.msra.mxu0 0
    %1214 = vmatprep.subr.bf16.mxu0 0
    %1215 = vmatpush1.bf16.msra.mxu0 0
    %1216 = vmatprep.subr.bf16.mxu0 0
    %1217 = vmatpush1.bf16.msra.mxu0 0
    %1218 = vmatprep.subr.bf16.mxu0 0
    %1219 = vmatpush1.bf16.msra.mxu0 0
    %1220 = vmatprep.subr.bf16.mxu0 0
    %1221 = vmatpush1.bf16.msra.mxu0 0
    %1222 = vmatprep.subr.bf16.mxu0 0
    %1223 = vmatpush1.bf16.msra.mxu0 0
    %1224 = vmatprep.subr.bf16.mxu0 0
    %1225 = vmatpush1.bf16.msra.mxu0 0
    %1226 = vmatprep.subr.bf16.mxu0 0
    %1227 = vmatpush1.bf16.msra.mxu0 0
    %1228 = vmatprep.subr.bf16.mxu0 0
    %1229 = vmatpush1.bf16.msra.mxu0 0
    %1230 = vmatprep.subr.bf16.mxu0 0
    %1231 = vmatpush1.bf16.msra.mxu0 0
    %1232 = vmatprep.subr.bf16.mxu0 0
    %1233 = vmatpush1.bf16.msra.mxu0 0
    %1234 = vmatprep.subr.bf16.mxu0 0
    %1235 = vmatpush1.bf16.msra.mxu0 0
    %1236 = vmatprep.subr.bf16.mxu0 0
    %1237 = vmatpush1.bf16.msra.mxu0 0
    %1238 = vmatprep.mubr.bf16.mxu0 0
    %1239 = vmatmul.mubr.bf16.gmra.mrb[0].mxu0 %v1204
    %v1240 = vpop.f32.mrb[0].mxu0
    %v1241 = vadd.f32 %v1189, %v1240
    %v1242 = vpop.f32.mrb[0].mxu0
    %v1243 = vpop.f32.mrb[0].mxu0
    %v1244 = vadd.f32 %v1189, %v1243
    %v1245 = vpop.f32.mrb[0].mxu0
    %1246 = vdwg.mxu0
    %v1247 = vadd.f32 %v102, %v1241
    %v1248 = vadd.f32 %v103, %v1244
    %v1249 = vld [vmem:[%s8] sm:$0x1]
    %v1250 = vld [vmem:[%s9] sm:$0x1]
    %v1251 = vsel %vm140, %v1247, 0.0
    %1252 = vadd.xlane.f32.xlu0 %v1251
    %v1253 = vpop.xlane.xlu0 %1252
    %v1254 = vsel %vm140, %v1248, 0.0
    %1255 = vadd.xlane.f32.xlu0 %v1254
    %v1256 = vpop.xlane.xlu0 %1255
    %v1257 = vrcp.pop 32.0
    %v1258 = vmul.f32 %v1253, %v1257
    %v1259 = vmul.f32 %v1256, %v1257
    %v1260 = vsub.f32 %v1247, %v1258
    %v1261 = vsub.f32 %v1248, %v1259
    %v1262 = vmul.f32 %v1260, %v1260
    %v1263 = vmul.f32 %v1261, %v1261
    %v1264 = vsel %vm140, %v1262, 0.0
    %1265 = vadd.xlane.f32.xlu0 %v1264
    %v1266 = vpop.xlane.xlu0 %1265
    %v1267 = vsel %vm140, %v1263, 0.0
    %1268 = vadd.xlane.f32.xlu0 %v1267
    %v1269 = vpop.xlane.xlu0 %1268
    %v1270 = vmul.f32 %v1266, %v1257
    %v1271 = vmul.f32 %v1269, %v1257
    %v1272 = vadd.f32 %v1270, 1e-05
    %v1273 = vadd.f32 %v1271, 1e-05
    %v1274 = vrsqrt.pop %v1272
    %v1275 = vrsqrt.pop %v1273
    %v1276 = vmul.f32 %v1260, %v1274
    %v1277 = vmul.f32 %v1261, %v1275
    %v1279 = vlaneseq
    %v1280 = vshrl.u32 %v1279, 7
    %v1281 = vsub.s32 0, %v1280
    %v1282 = vrot.slane %v1249, %v1281
    %v1284 = vmul.f32 %v1276, %v1282
    %v1285 = vmul.f32 %v1277, %v1282
    %v1287 = vlaneseq
    %v1288 = vshrl.u32 %v1287, 7
    %v1289 = vsub.s32 0, %v1288
    %v1290 = vrot.slane %v1250, %v1289
    %v1292 = vadd.f32 %v1284, %v1290
    %v1293 = vadd.f32 %v1285, %v1290
    %v1294 = vld [vmem:[%s10] sm:$0xf]
    %v1295 = vld [vmem:[%s10 + $0x4] sm:$0xf]
    %v1296 = vld [vmem:[%s10 + $0x8] sm:$0xf]
    %v1297 = vld [vmem:[%s10 + $0xc] sm:$0xf]
    %v1298 = vld [vmem:[%s11] sm:$0x1]
    %v1299 = vld [vmem:[%s12] sm:$0xf]
    %v1300 = vld [vmem:[%s12 + $0x4] sm:$0xf]
    %v1301 = vld [vmem:[%s12 + $0x8] sm:$0xf]
    %v1302 = vld [vmem:[%s12 + $0xc] sm:$0xf]
    %v1303 = vld [vmem:[%s13] sm:$0x1]
    %v1304 = vld [vmem:[%s14] sm:$0xf]
    %v1305 = vld [vmem:[%s14 + $0x4] sm:$0xf]
    %v1306 = vld [vmem:[%s14 + $0x8] sm:$0xf]
    %v1307 = vld [vmem:[%s14 + $0xc] sm:$0xf]
    %v1308 = vld [vmem:[%s15] sm:$0x1]
    %v1309 = vpack.c.bf16 %v1293, %v1292
    %v1311 = vlaneseq
    %v1312 = vshrl.u32 %v1311, 7
    %v1313 = vsub.s32 0, %v1312
    %v1314 = vrot.slane %v1298, %v1313
    %v1320 = vunpack.c.l.b16 %v1294
    %v1321 = vunpack.c.l.b16 %v1295
    %v1322 = vunpack.c.l.b16 %v1296
    %v1323 = vunpack.c.l.b16 %v1297
    %v1324 = vpack.c.b16 %v1321, %v1320
    %v1325 = vpack.c.b16 %v1323, %v1322
    %v1329 = vsel %vm140, %v1309, 0
    %1331 = vmatprep.subr.bf16.mxu0 0
    %1332 = vmatpush1.bf16.msra.mxu0 %v1324
    %1333 = vmatprep.subr.bf16.mxu0 0
    %1334 = vmatpush1.bf16.msra.mxu0 %v1325
    %1335 = vmatprep.subr.bf16.mxu0 0
    %1336 = vmatpush1.bf16.msra.mxu0 0
    %1337 = vmatprep.subr.bf16.mxu0 0
    %1338 = vmatpush1.bf16.msra.mxu0 0
    %1339 = vmatprep.subr.bf16.mxu0 0
    %1340 = vmatpush1.bf16.msra.mxu0 0
    %1341 = vmatprep.subr.bf16.mxu0 0
    %1342 = vmatpush1.bf16.msra.mxu0 0
    %1343 = vmatprep.subr.bf16.mxu0 0
    %1344 = vmatpush1.bf16.msra.mxu0 0
    %1345 = vmatprep.subr.bf16.mxu0 0
    %1346 = vmatpush1.bf16.msra.mxu0 0
    %1347 = vmatprep.subr.bf16.mxu0 0
    %1348 = vmatpush1.bf16.msra.mxu0 0
    %1349 = vmatprep.subr.bf16.mxu0 0
    %1350 = vmatpush1.bf16.msra.mxu0 0
    %1351 = vmatprep.subr.bf16.mxu0 0
    %1352 = vmatpush1.bf16.msra.mxu0 0
    %1353 = vmatprep.subr.bf16.mxu0 0
    %1354 = vmatpush1.bf16.msra.mxu0 0
    %1355 = vmatprep.subr.bf16.mxu0 0
    %1356 = vmatpush1.bf16.msra.mxu0 0
    %1357 = vmatprep.subr.bf16.mxu0 0
    %1358 = vmatpush1.bf16.msra.mxu0 0
    %1359 = vmatprep.subr.bf16.mxu0 0
    %1360 = vmatpush1.bf16.msra.mxu0 0
    %1361 = vmatprep.subr.bf16.mxu0 0
    %1362 = vmatpush1.bf16.msra.mxu0 0
    %1363 = vmatprep.mubr.bf16.mxu0 0
    %1364 = vmatmul.mubr.bf16.gmra.mrb[0].mxu0 %v1329
    %v1365 = vpop.f32.mrb[0].mxu0
    %v1366 = vadd.f32 %v1314, %v1365
    %v1367 = vpop.f32.mrb[0].mxu0
    %v1368 = vpop.f32.mrb[0].mxu0
    %v1369 = vadd.f32 %v1314, %v1368
    %v1370 = vpop.f32.mrb[0].mxu0
    %1371 = vdwg.mxu0
    %v1372 = vpack.c.bf16 %v105, %v104
    %v1374 = vlaneseq
    %v1375 = vshrl.u32 %v1374, 7
    %v1376 = vsub.s32 0, %v1375
    %v1377 = vrot.slane %v1303, %v1376
    %v1383 = vunpack.c.l.b16 %v1299
    %v1384 = vunpack.c.l.b16 %v1300
    %v1385 = vunpack.c.l.b16 %v1301
    %v1386 = vunpack.c.l.b16 %v1302
    %v1387 = vpack.c.b16 %v1384, %v1383
    %v1388 = vpack.c.b16 %v1386, %v1385
    %v1392 = vsel %vm140, %v1372, 0
    %1394 = vmatprep.subr.bf16.mxu0 0
    %1395 = vmatpush1.bf16.msra.mxu0 %v1387
    %1396 = vmatprep.subr.bf16.mxu0 0
    %1397 = vmatpush1.bf16.msra.mxu0 %v1388
    %1398 = vmatprep.subr.bf16.mxu0 0
    %1399 = vmatpush1.bf16.msra.mxu0 0
    %1400 = vmatprep.subr.bf16.mxu0 0
    %1401 = vmatpush1.bf16.msra.mxu0 0
    %1402 = vmatprep.subr.bf16.mxu0 0
    %1403 = vmatpush1.bf16.msra.mxu0 0
    %1404 = vmatprep.subr.bf16.mxu0 0
    %1405 = vmatpush1.bf16.msra.mxu0 0
    %1406 = vmatprep.subr.bf16.mxu0 0
    %1407 = vmatpush1.bf16.msra.mxu0 0
    %1408 = vmatprep.subr.bf16.mxu0 0
    %1409 = vmatpush1.bf16.msra.mxu0 0
    %1410 = vmatprep.subr.bf16.mxu0 0
    %1411 = vmatpush1.bf16.msra.mxu0 0
    %1412 = vmatprep.subr.bf16.mxu0 0
    %1413 = vmatpush1.bf16.msra.mxu0 0
    %1414 = vmatprep.subr.bf16.mxu0 0
    %1415 = vmatpush1.bf16.msra.mxu0 0
    %1416 = vmatprep.subr.bf16.mxu0 0
    %1417 = vmatpush1.bf16.msra.mxu0 0
    %1418 = vmatprep.subr.bf16.mxu0 0
    %1419 = vmatpush1.bf16.msra.mxu0 0
    %1420 = vmatprep.subr.bf16.mxu0 0
    %1421 = vmatpush1.bf16.msra.mxu0 0
    %1422 = vmatprep.subr.bf16.mxu0 0
    %1423 = vmatpush1.bf16.msra.mxu0 0
    %1424 = vmatprep.subr.bf16.mxu0 0
    %1425 = vmatpush1.bf16.msra.mxu0 0
    %1426 = vmatprep.mubr.bf16.mxu0 0
    %1427 = vmatmul.mubr.bf16.gmra.mrb[0].mxu0 %v1392
    %v1428 = vpop.f32.mrb[0].mxu0
    %v1429 = vadd.f32 %v1377, %v1428
    %v1430 = vpop.f32.mrb[0].mxu0
    %v1431 = vpop.f32.mrb[0].mxu0
    %v1432 = vadd.f32 %v1377, %v1431
    %v1433 = vpop.f32.mrb[0].mxu0
    %1434 = vdwg.mxu0
    %v1435 = vpack.c.bf16 %v1369, %v1366
    %v1437 = vunpack.c.l.b16 %v1435
    %v1438 = vunpack.c.h.b16 %v1435
    %v1439 = vpack.c.b16 %v1437, %v1437
    %v1440 = vpack.c.b16 %v1438, %v1438
    %v1441 = vpack.c.bf16 %v1432, %v1429
    %v1443 = vunpack.c.l.b16 %v1441
    %v1444 = vunpack.c.h.b16 %v1441
    %v1445 = vpack.c.b16 %v1443, %v1443
    %v1446 = vpack.c.b16 %v1444, %v1444
    %v1448 = vsel %vm262, %v1439, 0
    %v1451 = vsel %vm262, %v1445, 0
    %1453 = vmatprep.subr.bf16.mxu0 0
    %1454 = vmatpush1.bf16.xpose.msra.mxu0 %v1451
    %1455 = vmatprep.subr.bf16.mxu0 0
    %1456 = vmatpush1.bf16.xpose.msra.mxu0 0
    %1457 = vmatprep.subr.bf16.mxu0 0
    %1458 = vmatpush1.bf16.xpose.msra.mxu0 0
    %1459 = vmatprep.subr.bf16.mxu0 0
    %1460 = vmatpush1.bf16.xpose.msra.mxu0 0
    %1461 = vmatprep.subr.bf16.mxu0 0
    %1462 = vmatpush1.bf16.xpose.msra.mxu0 0
    %1463 = vmatprep.subr.bf16.mxu0 0
    %1464 = vmatpush1.bf16.xpose.msra.mxu0 0
    %1465 = vmatprep.subr.bf16.mxu0 0
    %1466 = vmatpush1.bf16.xpose.msra.mxu0 0
    %1467 = vmatprep.subr.bf16.mxu0 0
    %1468 = vmatpush1.bf16.xpose.msra.mxu0 0
    %1469 = vmatprep.subr.bf16.mxu0 0
    %1470 = vmatpush1.bf16.xpose.msra.mxu0 0
    %1471 = vmatprep.subr.bf16.mxu0 0
    %1472 = vmatpush1.bf16.xpose.msra.mxu0 0
    %1473 = vmatprep.subr.bf16.mxu0 0
    %1474 = vmatpush1.bf16.xpose.msra.mxu0 0
    %1475 = vmatprep.subr.bf16.mxu0 0
    %1476 = vmatpush1.bf16.xpose.msra.mxu0 0
    %1477 = vmatprep.subr.bf16.mxu0 0
    %1478 = vmatpush1.bf16.xpose.msra.mxu0 0
    %1479 = vmatprep.subr.bf16.mxu0 0
    %1480 = vmatpush1.bf16.xpose.msra.mxu0 0
    %1481 = vmatprep.subr.bf16.mxu0 0
    %1482 = vmatpush1.bf16.xpose.msra.mxu0 0
    %1483 = vmatprep.subr.bf16.mxu0 0
    %1484 = vmatpush1.bf16.xpose.msra.mxu0 0
    %1485 = vmatprep.mubr.bf16.mxu0 0
    %1486 = vmatmul.mubr.bf16.gmra.mrb[0].mxu0 %v1448
    %v1487 = vpop.f32.mrb[0].mxu0
    %v1488 = vadd.f32 0.0, %v1487
    %v1489 = vpop.f32.mrb[0].mxu0
    %v1490 = vpop.f32.mrb[0].mxu0
    %v1491 = vpop.f32.mrb[0].mxu0
    %1492 = vdwg.mxu0
    %v1494 = vsel %vm262, %v1440, 0
    %v1497 = vsel %vm262, %v1446, 0
    %1499 = vmatprep.subr.bf16.mxu0 0
    %1500 = vmatpush1.bf16.xpose.msra.mxu0 %v1497
    %1501 = vmatprep.subr.bf16.mxu0 0
    %1502 = vmatpush1.bf16.xpose.msra.mxu0 0
    %1503 = vmatprep.subr.bf16.mxu0 0
    %1504 = vmatpush1.bf16.xpose.msra.mxu0 0
    %1505 = vmatprep.subr.bf16.mxu0 0
    %1506 = vmatpush1.bf16.xpose.msra.mxu0 0
    %1507 = vmatprep.subr.bf16.mxu0 0
    %1508 = vmatpush1.bf16.xpose.msra.mxu0 0
    %1509 = vmatprep.subr.bf16.mxu0 0
    %1510 = vmatpush1.bf16.xpose.msra.mxu0 0
    %1511 = vmatprep.subr.bf16.mxu0 0
    %1512 = vmatpush1.bf16.xpose.msra.mxu0 0
    %1513 = vmatprep.subr.bf16.mxu0 0
    %1514 = vmatpush1.bf16.xpose.msra.mxu0 0
    %1515 = vmatprep.subr.bf16.mxu0 0
    %1516 = vmatpush1.bf16.xpose.msra.mxu0 0
    %1517 = vmatprep.subr.bf16.mxu0 0
    %1518 = vmatpush1.bf16.xpose.msra.mxu0 0
    %1519 = vmatprep.subr.bf16.mxu0 0
    %1520 = vmatpush1.bf16.xpose.msra.mxu0 0
    %1521 = vmatprep.subr.bf16.mxu0 0
    %1522 = vmatpush1.bf16.xpose.msra.mxu0 0
    %1523 = vmatprep.subr.bf16.mxu0 0
    %1524 = vmatpush1.bf16.xpose.msra.mxu0 0
    %1525 = vmatprep.subr.bf16.mxu0 0
    %1526 = vmatpush1.bf16.xpose.msra.mxu0 0
    %1527 = vmatprep.subr.bf16.mxu0 0
    %1528 = vmatpush1.bf16.xpose.msra.mxu0 0
    %1529 = vmatprep.subr.bf16.mxu0 0
    %1530 = vmatpush1.bf16.xpose.msra.mxu0 0
    %1531 = vmatprep.mubr.bf16.mxu0 0
    %1532 = vmatmul.mubr.bf16.gmra.mrb[0].mxu0 %v1494
    %v1533 = vpop.f32.mrb[0].mxu0
    %v1534 = vadd.f32 0.0, %v1533
    %v1535 = vpop.f32.mrb[0].mxu0
    %v1536 = vpop.f32.mrb[0].mxu0
    %v1537 = vpop.f32.mrb[0].mxu0
    %1538 = vdwg.mxu0
    %v1539 = vmul.f32 %v1488, 0.35355338
    %v1540 = vmul.f32 %v1534, 0.35355338
    %v1541 = vsel %vm262, %v1539, -inf
    %1542 = vmax.xlane.f32.xlu0 %v1541
    %v1543 = vpop.xlane.xlu0 %1542
    %v1544 = vsel %vm262, %v1540, -inf
    %1545 = vmax.xlane.f32.xlu0 %v1544
    %v1546 = vpop.xlane.xlu0 %1545
    %v1547 = vsub.f32 %v1539, %v1543
    %v1548 = vsub.f32 %v1540, %v1546
    %v1549 = vmul.f32 %v1547, 1.442695
    %v1550 = vpow.pop %v1549
    %v1551 = vmul.f32 %v1548, 1.442695
    %v1552 = vpow.pop %v1551
    %v1553 = vsel %vm262, %v1550, 0.0
    %1554 = vadd.xlane.f32.xlu0 %v1553
    %v1555 = vpop.xlane.xlu0 %1554
    %v1556 = vsel %vm262, %v1552, 0.0
    %1557 = vadd.xlane.f32.xlu0 %v1556
    %v1558 = vpop.xlane.xlu0 %1557
    %v1559 = vrcp.pop %v1555
    %v1560 = vrcp.pop %v1558
    %v1561 = vmul.f32 %v1550, %v1559
    %v1562 = vmul.f32 %v1552, %v1560
    %v1563 = vpack.c.bf16 %v1561, %v1561
    %v1564 = vpack.c.bf16 %v1562, %v1562
    %1565 = vrot.lane.b32.xlu0 %v1445, 96
    %v1566 = vpop.permute.xlu0 %1565
    %v1568 = vsel %vm262, %v1563, 0
    %v1571 = vsel %vm388, %v1566, 0
    %1573 = vmatprep.subr.bf16.mxu0 0
    %1574 = vmatpush1.bf16.msra.mxu0 %v1571
    %1575 = vmatprep.subr.bf16.mxu0 0
    %1576 = vmatpush1.bf16.msra.mxu0 0
    %1577 = vmatprep.subr.bf16.mxu0 0
    %1578 = vmatpush1.bf16.msra.mxu0 0
    %1579 = vmatprep.subr.bf16.mxu0 0
    %1580 = vmatpush1.bf16.msra.mxu0 0
    %1581 = vmatprep.subr.bf16.mxu0 0
    %1582 = vmatpush1.bf16.msra.mxu0 0
    %1583 = vmatprep.subr.bf16.mxu0 0
    %1584 = vmatpush1.bf16.msra.mxu0 0
    %1585 = vmatprep.subr.bf16.mxu0 0
    %1586 = vmatpush1.bf16.msra.mxu0 0
    %1587 = vmatprep.subr.bf16.mxu0 0
    %1588 = vmatpush1.bf16.msra.mxu0 0
    %1589 = vmatprep.subr.bf16.mxu0 0
    %1590 = vmatpush1.bf16.msra.mxu0 0
    %1591 = vmatprep.subr.bf16.mxu0 0
    %1592 = vmatpush1.bf16.msra.mxu0 0
    %1593 = vmatprep.subr.bf16.mxu0 0
    %1594 = vmatpush1.bf16.msra.mxu0 0
    %1595 = vmatprep.subr.bf16.mxu0 0
    %1596 = vmatpush1.bf16.msra.mxu0 0
    %1597 = vmatprep.subr.bf16.mxu0 0
    %1598 = vmatpush1.bf16.msra.mxu0 0
    %1599 = vmatprep.subr.bf16.mxu0 0
    %1600 = vmatpush1.bf16.msra.mxu0 0
    %1601 = vmatprep.subr.bf16.mxu0 0
    %1602 = vmatpush1.bf16.msra.mxu0 0
    %1603 = vmatprep.subr.bf16.mxu0 0
    %1604 = vmatpush1.bf16.msra.mxu0 0
    %1605 = vmatprep.mubr.bf16.mxu0 0
    %1606 = vmatmul.mubr.bf16.gmra.mrb[0].mxu0 %v1568
    %v1607 = vpop.f32.mrb[0].mxu0
    %v1608 = vadd.f32 0.0, %v1607
    %v1609 = vpop.f32.mrb[0].mxu0
    %v1610 = vpop.f32.mrb[0].mxu0
    %v1611 = vpop.f32.mrb[0].mxu0
    %1612 = vdwg.mxu0
    %1613 = vrot.lane.b32.xlu0 %v1446, 96
    %v1614 = vpop.permute.xlu0 %1613
    %v1616 = vsel %vm262, %v1564, 0
    %v1619 = vsel %vm388, %v1614, 0
    %1621 = vmatprep.subr.bf16.mxu0 0
    %1622 = vmatpush1.bf16.msra.mxu0 %v1619
    %1623 = vmatprep.subr.bf16.mxu0 0
    %1624 = vmatpush1.bf16.msra.mxu0 0
    %1625 = vmatprep.subr.bf16.mxu0 0
    %1626 = vmatpush1.bf16.msra.mxu0 0
    %1627 = vmatprep.subr.bf16.mxu0 0
    %1628 = vmatpush1.bf16.msra.mxu0 0
    %1629 = vmatprep.subr.bf16.mxu0 0
    %1630 = vmatpush1.bf16.msra.mxu0 0
    %1631 = vmatprep.subr.bf16.mxu0 0
    %1632 = vmatpush1.bf16.msra.mxu0 0
    %1633 = vmatprep.subr.bf16.mxu0 0
    %1634 = vmatpush1.bf16.msra.mxu0 0
    %1635 = vmatprep.subr.bf16.mxu0 0
    %1636 = vmatpush1.bf16.msra.mxu0 0
    %1637 = vmatprep.subr.bf16.mxu0 0
    %1638 = vmatpush1.bf16.msra.mxu0 0
    %1639 = vmatprep.subr.bf16.mxu0 0
    %1640 = vmatpush1.bf16.msra.mxu0 0
    %1641 = vmatprep.subr.bf16.mxu0 0
    %1642 = vmatpush1.bf16.msra.mxu0 0
    %1643 = vmatprep.subr.bf16.mxu0 0
    %1644 = vmatpush1.bf16.msra.mxu0 0
    %1645 = vmatprep.subr.bf16.mxu0 0
    %1646 = vmatpush1.bf16.msra.mxu0 0
    %1647 = vmatprep.subr.bf16.mxu0 0
    %1648 = vmatpush1.bf16.msra.mxu0 0
    %1649 = vmatprep.subr.bf16.mxu0 0
    %1650 = vmatpush1.bf16.msra.mxu0 0
    %1651 = vmatprep.subr.bf16.mxu0 0
    %1652 = vmatpush1.bf16.msra.mxu0 0
    %1653 = vmatprep.mubr.bf16.mxu0 0
    %1654 = vmatmul.mubr.bf16.gmra.mrb[0].mxu0 %v1616
    %v1655 = vpop.f32.mrb[0].mxu0
    %v1656 = vadd.f32 0.0, %v1655
    %v1657 = vpop.f32.mrb[0].mxu0
    %v1658 = vpop.f32.mrb[0].mxu0
    %v1659 = vpop.f32.mrb[0].mxu0
    %1660 = vdwg.mxu0
    %1661 = vrot.lane.b32.xlu0 %v1439, 120
    %v1662 = vpop.permute.xlu0 %1661
    %1663 = vrot.lane.b32.xlu0 %v1445, 120
    %v1664 = vpop.permute.xlu0 %1663
    %v1666 = vsel %vm262, %v1662, 0
    %v1669 = vsel %vm262, %v1664, 0
    %1671 = vmatprep.subr.bf16.mxu0 0
    %1672 = vmatpush1.bf16.xpose.msra.mxu0 %v1669
    %1673 = vmatprep.subr.bf16.mxu0 0
    %1674 = vmatpush1.bf16.xpose.msra.mxu0 0
    %1675 = vmatprep.subr.bf16.mxu0 0
    %1676 = vmatpush1.bf16.xpose.msra.mxu0 0
    %1677 = vmatprep.subr.bf16.mxu0 0
    %1678 = vmatpush1.bf16.xpose.msra.mxu0 0
    %1679 = vmatprep.subr.bf16.mxu0 0
    %1680 = vmatpush1.bf16.xpose.msra.mxu0 0
    %1681 = vmatprep.subr.bf16.mxu0 0
    %1682 = vmatpush1.bf16.xpose.msra.mxu0 0
    %1683 = vmatprep.subr.bf16.mxu0 0
    %1684 = vmatpush1.bf16.xpose.msra.mxu0 0
    %1685 = vmatprep.subr.bf16.mxu0 0
    %1686 = vmatpush1.bf16.xpose.msra.mxu0 0
    %1687 = vmatprep.subr.bf16.mxu0 0
    %1688 = vmatpush1.bf16.xpose.msra.mxu0 0
    %1689 = vmatprep.subr.bf16.mxu0 0
    %1690 = vmatpush1.bf16.xpose.msra.mxu0 0
    %1691 = vmatprep.subr.bf16.mxu0 0
    %1692 = vmatpush1.bf16.xpose.msra.mxu0 0
    %1693 = vmatprep.subr.bf16.mxu0 0
    %1694 = vmatpush1.bf16.xpose.msra.mxu0 0
    %1695 = vmatprep.subr.bf16.mxu0 0
    %1696 = vmatpush1.bf16.xpose.msra.mxu0 0
    %1697 = vmatprep.subr.bf16.mxu0 0
    %1698 = vmatpush1.bf16.xpose.msra.mxu0 0
    %1699 = vmatprep.subr.bf16.mxu0 0
    %1700 = vmatpush1.bf16.xpose.msra.mxu0 0
    %1701 = vmatprep.subr.bf16.mxu0 0
    %1702 = vmatpush1.bf16.xpose.msra.mxu0 0
    %1703 = vmatprep.mubr.bf16.mxu0 0
    %1704 = vmatmul.mubr.bf16.gmra.mrb[0].mxu0 %v1666
    %v1705 = vpop.f32.mrb[0].mxu0
    %v1706 = vadd.f32 0.0, %v1705
    %v1707 = vpop.f32.mrb[0].mxu0
    %v1708 = vpop.f32.mrb[0].mxu0
    %v1709 = vpop.f32.mrb[0].mxu0
    %1710 = vdwg.mxu0
    %1711 = vrot.lane.b32.xlu0 %v1440, 120
    %v1712 = vpop.permute.xlu0 %1711
    %1713 = vrot.lane.b32.xlu0 %v1446, 120
    %v1714 = vpop.permute.xlu0 %1713
    %v1716 = vsel %vm262, %v1712, 0
    %v1719 = vsel %vm262, %v1714, 0
    %1721 = vmatprep.subr.bf16.mxu0 0
    %1722 = vmatpush1.bf16.xpose.msra.mxu0 %v1719
    %1723 = vmatprep.subr.bf16.mxu0 0
    %1724 = vmatpush1.bf16.xpose.msra.mxu0 0
    %1725 = vmatprep.subr.bf16.mxu0 0
    %1726 = vmatpush1.bf16.xpose.msra.mxu0 0
    %1727 = vmatprep.subr.bf16.mxu0 0
    %1728 = vmatpush1.bf16.xpose.msra.mxu0 0
    %1729 = vmatprep.subr.bf16.mxu0 0
    %1730 = vmatpush1.bf16.xpose.msra.mxu0 0
    %1731 = vmatprep.subr.bf16.mxu0 0
    %1732 = vmatpush1.bf16.xpose.msra.mxu0 0
    %1733 = vmatprep.subr.bf16.mxu0 0
    %1734 = vmatpush1.bf16.xpose.msra.mxu0 0
    %1735 = vmatprep.subr.bf16.mxu0 0
    %1736 = vmatpush1.bf16.xpose.msra.mxu0 0
    %1737 = vmatprep.subr.bf16.mxu0 0
    %1738 = vmatpush1.bf16.xpose.msra.mxu0 0
    %1739 = vmatprep.subr.bf16.mxu0 0
    %1740 = vmatpush1.bf16.xpose.msra.mxu0 0
    %1741 = vmatprep.subr.bf16.mxu0 0
    %1742 = vmatpush1.bf16.xpose.msra.mxu0 0
    %1743 = vmatprep.subr.bf16.mxu0 0
    %1744 = vmatpush1.bf16.xpose.msra.mxu0 0
    %1745 = vmatprep.subr.bf16.mxu0 0
    %1746 = vmatpush1.bf16.xpose.msra.mxu0 0
    %1747 = vmatprep.subr.bf16.mxu0 0
    %1748 = vmatpush1.bf16.xpose.msra.mxu0 0
    %1749 = vmatprep.subr.bf16.mxu0 0
    %1750 = vmatpush1.bf16.xpose.msra.mxu0 0
    %1751 = vmatprep.subr.bf16.mxu0 0
    %1752 = vmatpush1.bf16.xpose.msra.mxu0 0
    %1753 = vmatprep.mubr.bf16.mxu0 0
    %1754 = vmatmul.mubr.bf16.gmra.mrb[0].mxu0 %v1716
    %v1755 = vpop.f32.mrb[0].mxu0
    %v1756 = vadd.f32 0.0, %v1755
    %v1757 = vpop.f32.mrb[0].mxu0
    %v1758 = vpop.f32.mrb[0].mxu0
    %v1759 = vpop.f32.mrb[0].mxu0
    %1760 = vdwg.mxu0
    %v1761 = vmul.f32 %v1706, 0.35355338
    %v1762 = vmul.f32 %v1756, 0.35355338
    %v1763 = vsel %vm262, %v1761, -inf
    %1764 = vmax.xlane.f32.xlu0 %v1763
    %v1765 = vpop.xlane.xlu0 %1764
    %v1766 = vsel %vm262, %v1762, -inf
    %1767 = vmax.xlane.f32.xlu0 %v1766
    %v1768 = vpop.xlane.xlu0 %1767
    %v1769 = vsub.f32 %v1761, %v1765
    %v1770 = vsub.f32 %v1762, %v1768
    %v1771 = vmul.f32 %v1769, 1.442695
    %v1772 = vpow.pop %v1771
    %v1773 = vmul.f32 %v1770, 1.442695
    %v1774 = vpow.pop %v1773
    %v1775 = vsel %vm262, %v1772, 0.0
    %1776 = vadd.xlane.f32.xlu0 %v1775
    %v1777 = vpop.xlane.xlu0 %1776
    %v1778 = vsel %vm262, %v1774, 0.0
    %1779 = vadd.xlane.f32.xlu0 %v1778
    %v1780 = vpop.xlane.xlu0 %1779
    %v1781 = vrcp.pop %v1777
    %v1782 = vrcp.pop %v1780
    %v1783 = vmul.f32 %v1772, %v1781
    %v1784 = vmul.f32 %v1774, %v1782
    %v1785 = vpack.c.bf16 %v1783, %v1783
    %v1786 = vpack.c.bf16 %v1784, %v1784
    %1787 = vrot.lane.b32.xlu0 %v1445, 88
    %v1788 = vpop.permute.xlu0 %1787
    %v1790 = vsel %vm262, %v1785, 0
    %v1793 = vsel %vm388, %v1788, 0
    %1795 = vmatprep.subr.bf16.mxu0 0
    %1796 = vmatpush1.bf16.msra.mxu0 %v1793
    %1797 = vmatprep.subr.bf16.mxu0 0
    %1798 = vmatpush1.bf16.msra.mxu0 0
    %1799 = vmatprep.subr.bf16.mxu0 0
    %1800 = vmatpush1.bf16.msra.mxu0 0
    %1801 = vmatprep.subr.bf16.mxu0 0
    %1802 = vmatpush1.bf16.msra.mxu0 0
    %1803 = vmatprep.subr.bf16.mxu0 0
    %1804 = vmatpush1.bf16.msra.mxu0 0
    %1805 = vmatprep.subr.bf16.mxu0 0
    %1806 = vmatpush1.bf16.msra.mxu0 0
    %1807 = vmatprep.subr.bf16.mxu0 0
    %1808 = vmatpush1.bf16.msra.mxu0 0
    %1809 = vmatprep.subr.bf16.mxu0 0
    %1810 = vmatpush1.bf16.msra.mxu0 0
    %1811 = vmatprep.subr.bf16.mxu0 0
    %1812 = vmatpush1.bf16.msra.mxu0 0
    %1813 = vmatprep.subr.bf16.mxu0 0
    %1814 = vmatpush1.bf16.msra.mxu0 0
    %1815 = vmatprep.subr.bf16.mxu0 0
    %1816 = vmatpush1.bf16.msra.mxu0 0
    %1817 = vmatprep.subr.bf16.mxu0 0
    %1818 = vmatpush1.bf16.msra.mxu0 0
    %1819 = vmatprep.subr.bf16.mxu0 0
    %1820 = vmatpush1.bf16.msra.mxu0 0
    %1821 = vmatprep.subr.bf16.mxu0 0
    %1822 = vmatpush1.bf16.msra.mxu0 0
    %1823 = vmatprep.subr.bf16.mxu0 0
    %1824 = vmatpush1.bf16.msra.mxu0 0
    %1825 = vmatprep.subr.bf16.mxu0 0
    %1826 = vmatpush1.bf16.msra.mxu0 0
    %1827 = vmatprep.mubr.bf16.mxu0 0
    %1828 = vmatmul.mubr.bf16.gmra.mrb[0].mxu0 %v1790
    %v1829 = vpop.f32.mrb[0].mxu0
    %v1830 = vadd.f32 0.0, %v1829
    %v1831 = vpop.f32.mrb[0].mxu0
    %v1832 = vpop.f32.mrb[0].mxu0
    %v1833 = vpop.f32.mrb[0].mxu0
    %1834 = vdwg.mxu0
    %1835 = vrot.lane.b32.xlu0 %v1446, 88
    %v1836 = vpop.permute.xlu0 %1835
    %v1838 = vsel %vm262, %v1786, 0
    %v1841 = vsel %vm388, %v1836, 0
    %1843 = vmatprep.subr.bf16.mxu0 0
    %1844 = vmatpush1.bf16.msra.mxu0 %v1841
    %1845 = vmatprep.subr.bf16.mxu0 0
    %1846 = vmatpush1.bf16.msra.mxu0 0
    %1847 = vmatprep.subr.bf16.mxu0 0
    %1848 = vmatpush1.bf16.msra.mxu0 0
    %1849 = vmatprep.subr.bf16.mxu0 0
    %1850 = vmatpush1.bf16.msra.mxu0 0
    %1851 = vmatprep.subr.bf16.mxu0 0
    %1852 = vmatpush1.bf16.msra.mxu0 0
    %1853 = vmatprep.subr.bf16.mxu0 0
    %1854 = vmatpush1.bf16.msra.mxu0 0
    %1855 = vmatprep.subr.bf16.mxu0 0
    %1856 = vmatpush1.bf16.msra.mxu0 0
    %1857 = vmatprep.subr.bf16.mxu0 0
    %1858 = vmatpush1.bf16.msra.mxu0 0
    %1859 = vmatprep.subr.bf16.mxu0 0
    %1860 = vmatpush1.bf16.msra.mxu0 0
    %1861 = vmatprep.subr.bf16.mxu0 0
    %1862 = vmatpush1.bf16.msra.mxu0 0
    %1863 = vmatprep.subr.bf16.mxu0 0
    %1864 = vmatpush1.bf16.msra.mxu0 0
    %1865 = vmatprep.subr.bf16.mxu0 0
    %1866 = vmatpush1.bf16.msra.mxu0 0
    %1867 = vmatprep.subr.bf16.mxu0 0
    %1868 = vmatpush1.bf16.msra.mxu0 0
    %1869 = vmatprep.subr.bf16.mxu0 0
    %1870 = vmatpush1.bf16.msra.mxu0 0
    %1871 = vmatprep.subr.bf16.mxu0 0
    %1872 = vmatpush1.bf16.msra.mxu0 0
    %1873 = vmatprep.subr.bf16.mxu0 0
    %1874 = vmatpush1.bf16.msra.mxu0 0
    %1875 = vmatprep.mubr.bf16.mxu0 0
    %1876 = vmatmul.mubr.bf16.gmra.mrb[0].mxu0 %v1838
    %v1877 = vpop.f32.mrb[0].mxu0
    %v1878 = vadd.f32 0.0, %v1877
    %v1879 = vpop.f32.mrb[0].mxu0
    %v1880 = vpop.f32.mrb[0].mxu0
    %v1881 = vpop.f32.mrb[0].mxu0
    %1882 = vdwg.mxu0
    %1883 = vrot.lane.b32.xlu0 %v1439, 112
    %v1884 = vpop.permute.xlu0 %1883
    %1885 = vrot.lane.b32.xlu0 %v1445, 112
    %v1886 = vpop.permute.xlu0 %1885
    %v1888 = vsel %vm262, %v1884, 0
    %v1891 = vsel %vm262, %v1886, 0
    %1893 = vmatprep.subr.bf16.mxu0 0
    %1894 = vmatpush1.bf16.xpose.msra.mxu0 %v1891
    %1895 = vmatprep.subr.bf16.mxu0 0
    %1896 = vmatpush1.bf16.xpose.msra.mxu0 0
    %1897 = vmatprep.subr.bf16.mxu0 0
    %1898 = vmatpush1.bf16.xpose.msra.mxu0 0
    %1899 = vmatprep.subr.bf16.mxu0 0
    %1900 = vmatpush1.bf16.xpose.msra.mxu0 0
    %1901 = vmatprep.subr.bf16.mxu0 0
    %1902 = vmatpush1.bf16.xpose.msra.mxu0 0
    %1903 = vmatprep.subr.bf16.mxu0 0
    %1904 = vmatpush1.bf16.xpose.msra.mxu0 0
    %1905 = vmatprep.subr.bf16.mxu0 0
    %1906 = vmatpush1.bf16.xpose.msra.mxu0 0
    %1907 = vmatprep.subr.bf16.mxu0 0
    %1908 = vmatpush1.bf16.xpose.msra.mxu0 0
    %1909 = vmatprep.subr.bf16.mxu0 0
    %1910 = vmatpush1.bf16.xpose.msra.mxu0 0
    %1911 = vmatprep.subr.bf16.mxu0 0
    %1912 = vmatpush1.bf16.xpose.msra.mxu0 0
    %1913 = vmatprep.subr.bf16.mxu0 0
    %1914 = vmatpush1.bf16.xpose.msra.mxu0 0
    %1915 = vmatprep.subr.bf16.mxu0 0
    %1916 = vmatpush1.bf16.xpose.msra.mxu0 0
    %1917 = vmatprep.subr.bf16.mxu0 0
    %1918 = vmatpush1.bf16.xpose.msra.mxu0 0
    %1919 = vmatprep.subr.bf16.mxu0 0
    %1920 = vmatpush1.bf16.xpose.msra.mxu0 0
    %1921 = vmatprep.subr.bf16.mxu0 0
    %1922 = vmatpush1.bf16.xpose.msra.mxu0 0
    %1923 = vmatprep.subr.bf16.mxu0 0
    %1924 = vmatpush1.bf16.xpose.msra.mxu0 0
    %1925 = vmatprep.mubr.bf16.mxu0 0
    %1926 = vmatmul.mubr.bf16.gmra.mrb[0].mxu0 %v1888
    %v1927 = vpop.f32.mrb[0].mxu0
    %v1928 = vadd.f32 0.0, %v1927
    %v1929 = vpop.f32.mrb[0].mxu0
    %v1930 = vpop.f32.mrb[0].mxu0
    %v1931 = vpop.f32.mrb[0].mxu0
    %1932 = vdwg.mxu0
    %1933 = vrot.lane.b32.xlu0 %v1440, 112
    %v1934 = vpop.permute.xlu0 %1933
    %1935 = vrot.lane.b32.xlu0 %v1446, 112
    %v1936 = vpop.permute.xlu0 %1935
    %v1938 = vsel %vm262, %v1934, 0
    %v1941 = vsel %vm262, %v1936, 0
    %1943 = vmatprep.subr.bf16.mxu0 0
    %1944 = vmatpush1.bf16.xpose.msra.mxu0 %v1941
    %1945 = vmatprep.subr.bf16.mxu0 0
    %1946 = vmatpush1.bf16.xpose.msra.mxu0 0
    %1947 = vmatprep.subr.bf16.mxu0 0
    %1948 = vmatpush1.bf16.xpose.msra.mxu0 0
    %1949 = vmatprep.subr.bf16.mxu0 0
    %1950 = vmatpush1.bf16.xpose.msra.mxu0 0
    %1951 = vmatprep.subr.bf16.mxu0 0
    %1952 = vmatpush1.bf16.xpose.msra.mxu0 0
    %1953 = vmatprep.subr.bf16.mxu0 0
    %1954 = vmatpush1.bf16.xpose.msra.mxu0 0
    %1955 = vmatprep.subr.bf16.mxu0 0
    %1956 = vmatpush1.bf16.xpose.msra.mxu0 0
    %1957 = vmatprep.subr.bf16.mxu0 0
    %1958 = vmatpush1.bf16.xpose.msra.mxu0 0
    %1959 = vmatprep.subr.bf16.mxu0 0
    %1960 = vmatpush1.bf16.xpose.msra.mxu0 0
    %1961 = vmatprep.subr.bf16.mxu0 0
    %1962 = vmatpush1.bf16.xpose.msra.mxu0 0
    %1963 = vmatprep.subr.bf16.mxu0 0
    %1964 = vmatpush1.bf16.xpose.msra.mxu0 0
    %1965 = vmatprep.subr.bf16.mxu0 0
    %1966 = vmatpush1.bf16.xpose.msra.mxu0 0
    %1967 = vmatprep.subr.bf16.mxu0 0
    %1968 = vmatpush1.bf16.xpose.msra.mxu0 0
    %1969 = vmatprep.subr.bf16.mxu0 0
    %1970 = vmatpush1.bf16.xpose.msra.mxu0 0
    %1971 = vmatprep.subr.bf16.mxu0 0
    %1972 = vmatpush1.bf16.xpose.msra.mxu0 0
    %1973 = vmatprep.subr.bf16.mxu0 0
    %1974 = vmatpush1.bf16.xpose.msra.mxu0 0
    %1975 = vmatprep.mubr.bf16.mxu0 0
    %1976 = vmatmul.mubr.bf16.gmra.mrb[0].mxu0 %v1938
    %v1977 = vpop.f32.mrb[0].mxu0
    %v1978 = vadd.f32 0.0, %v1977
    %v1979 = vpop.f32.mrb[0].mxu0
    %v1980 = vpop.f32.mrb[0].mxu0
    %v1981 = vpop.f32.mrb[0].mxu0
    %1982 = vdwg.mxu0
    %v1983 = vmul.f32 %v1928, 0.35355338
    %v1984 = vmul.f32 %v1978, 0.35355338
    %v1985 = vsel %vm262, %v1983, -inf
    %1986 = vmax.xlane.f32.xlu0 %v1985
    %v1987 = vpop.xlane.xlu0 %1986
    %v1988 = vsel %vm262, %v1984, -inf
    %1989 = vmax.xlane.f32.xlu0 %v1988
    %v1990 = vpop.xlane.xlu0 %1989
    %v1991 = vsub.f32 %v1983, %v1987
    %v1992 = vsub.f32 %v1984, %v1990
    %v1993 = vmul.f32 %v1991, 1.442695
    %v1994 = vpow.pop %v1993
    %v1995 = vmul.f32 %v1992, 1.442695
    %v1996 = vpow.pop %v1995
    %v1997 = vsel %vm262, %v1994, 0.0
    %1998 = vadd.xlane.f32.xlu0 %v1997
    %v1999 = vpop.xlane.xlu0 %1998
    %v2000 = vsel %vm262, %v1996, 0.0
    %2001 = vadd.xlane.f32.xlu0 %v2000
    %v2002 = vpop.xlane.xlu0 %2001
    %v2003 = vrcp.pop %v1999
    %v2004 = vrcp.pop %v2002
    %v2005 = vmul.f32 %v1994, %v2003
    %v2006 = vmul.f32 %v1996, %v2004
    %v2007 = vpack.c.bf16 %v2005, %v2005
    %v2008 = vpack.c.bf16 %v2006, %v2006
    %2009 = vrot.lane.b32.xlu0 %v1445, 80
    %v2010 = vpop.permute.xlu0 %2009
    %v2012 = vsel %vm262, %v2007, 0
    %v2015 = vsel %vm388, %v2010, 0
    %2017 = vmatprep.subr.bf16.mxu0 0
    %2018 = vmatpush1.bf16.msra.mxu0 %v2015
    %2019 = vmatprep.subr.bf16.mxu0 0
    %2020 = vmatpush1.bf16.msra.mxu0 0
    %2021 = vmatprep.subr.bf16.mxu0 0
    %2022 = vmatpush1.bf16.msra.mxu0 0
    %2023 = vmatprep.subr.bf16.mxu0 0
    %2024 = vmatpush1.bf16.msra.mxu0 0
    %2025 = vmatprep.subr.bf16.mxu0 0
    %2026 = vmatpush1.bf16.msra.mxu0 0
    %2027 = vmatprep.subr.bf16.mxu0 0
    %2028 = vmatpush1.bf16.msra.mxu0 0
    %2029 = vmatprep.subr.bf16.mxu0 0
    %2030 = vmatpush1.bf16.msra.mxu0 0
    %2031 = vmatprep.subr.bf16.mxu0 0
    %2032 = vmatpush1.bf16.msra.mxu0 0
    %2033 = vmatprep.subr.bf16.mxu0 0
    %2034 = vmatpush1.bf16.msra.mxu0 0
    %2035 = vmatprep.subr.bf16.mxu0 0
    %2036 = vmatpush1.bf16.msra.mxu0 0
    %2037 = vmatprep.subr.bf16.mxu0 0
    %2038 = vmatpush1.bf16.msra.mxu0 0
    %2039 = vmatprep.subr.bf16.mxu0 0
    %2040 = vmatpush1.bf16.msra.mxu0 0
    %2041 = vmatprep.subr.bf16.mxu0 0
    %2042 = vmatpush1.bf16.msra.mxu0 0
    %2043 = vmatprep.subr.bf16.mxu0 0
    %2044 = vmatpush1.bf16.msra.mxu0 0
    %2045 = vmatprep.subr.bf16.mxu0 0
    %2046 = vmatpush1.bf16.msra.mxu0 0
    %2047 = vmatprep.subr.bf16.mxu0 0
    %2048 = vmatpush1.bf16.msra.mxu0 0
    %2049 = vmatprep.mubr.bf16.mxu0 0
    %2050 = vmatmul.mubr.bf16.gmra.mrb[0].mxu0 %v2012
    %v2051 = vpop.f32.mrb[0].mxu0
    %v2052 = vadd.f32 0.0, %v2051
    %v2053 = vpop.f32.mrb[0].mxu0
    %v2054 = vpop.f32.mrb[0].mxu0
    %v2055 = vpop.f32.mrb[0].mxu0
    %2056 = vdwg.mxu0
    %2057 = vrot.lane.b32.xlu0 %v1446, 80
    %v2058 = vpop.permute.xlu0 %2057
    %v2060 = vsel %vm262, %v2008, 0
    %v2063 = vsel %vm388, %v2058, 0
    %2065 = vmatprep.subr.bf16.mxu0 0
    %2066 = vmatpush1.bf16.msra.mxu0 %v2063
    %2067 = vmatprep.subr.bf16.mxu0 0
    %2068 = vmatpush1.bf16.msra.mxu0 0
    %2069 = vmatprep.subr.bf16.mxu0 0
    %2070 = vmatpush1.bf16.msra.mxu0 0
    %2071 = vmatprep.subr.bf16.mxu0 0
    %2072 = vmatpush1.bf16.msra.mxu0 0
    %2073 = vmatprep.subr.bf16.mxu0 0
    %2074 = vmatpush1.bf16.msra.mxu0 0
    %2075 = vmatprep.subr.bf16.mxu0 0
    %2076 = vmatpush1.bf16.msra.mxu0 0
    %2077 = vmatprep.subr.bf16.mxu0 0
    %2078 = vmatpush1.bf16.msra.mxu0 0
    %2079 = vmatprep.subr.bf16.mxu0 0
    %2080 = vmatpush1.bf16.msra.mxu0 0
    %2081 = vmatprep.subr.bf16.mxu0 0
    %2082 = vmatpush1.bf16.msra.mxu0 0
    %2083 = vmatprep.subr.bf16.mxu0 0
    %2084 = vmatpush1.bf16.msra.mxu0 0
    %2085 = vmatprep.subr.bf16.mxu0 0
    %2086 = vmatpush1.bf16.msra.mxu0 0
    %2087 = vmatprep.subr.bf16.mxu0 0
    %2088 = vmatpush1.bf16.msra.mxu0 0
    %2089 = vmatprep.subr.bf16.mxu0 0
    %2090 = vmatpush1.bf16.msra.mxu0 0
    %2091 = vmatprep.subr.bf16.mxu0 0
    %2092 = vmatpush1.bf16.msra.mxu0 0
    %2093 = vmatprep.subr.bf16.mxu0 0
    %2094 = vmatpush1.bf16.msra.mxu0 0
    %2095 = vmatprep.subr.bf16.mxu0 0
    %2096 = vmatpush1.bf16.msra.mxu0 0
    %2097 = vmatprep.mubr.bf16.mxu0 0
    %2098 = vmatmul.mubr.bf16.gmra.mrb[0].mxu0 %v2060
    %v2099 = vpop.f32.mrb[0].mxu0
    %v2100 = vadd.f32 0.0, %v2099
    %v2101 = vpop.f32.mrb[0].mxu0
    %v2102 = vpop.f32.mrb[0].mxu0
    %v2103 = vpop.f32.mrb[0].mxu0
    %2104 = vdwg.mxu0
    %2105 = vrot.lane.b32.xlu0 %v1439, 104
    %v2106 = vpop.permute.xlu0 %2105
    %2107 = vrot.lane.b32.xlu0 %v1445, 104
    %v2108 = vpop.permute.xlu0 %2107
    %v2110 = vsel %vm262, %v2106, 0
    %v2113 = vsel %vm262, %v2108, 0
    %2115 = vmatprep.subr.bf16.mxu0 0
    %2116 = vmatpush1.bf16.xpose.msra.mxu0 %v2113
    %2117 = vmatprep.subr.bf16.mxu0 0
    %2118 = vmatpush1.bf16.xpose.msra.mxu0 0
    %2119 = vmatprep.subr.bf16.mxu0 0
    %2120 = vmatpush1.bf16.xpose.msra.mxu0 0
    %2121 = vmatprep.subr.bf16.mxu0 0
    %2122 = vmatpush1.bf16.xpose.msra.mxu0 0
    %2123 = vmatprep.subr.bf16.mxu0 0
    %2124 = vmatpush1.bf16.xpose.msra.mxu0 0
    %2125 = vmatprep.subr.bf16.mxu0 0
    %2126 = vmatpush1.bf16.xpose.msra.mxu0 0
    %2127 = vmatprep.subr.bf16.mxu0 0
    %2128 = vmatpush1.bf16.xpose.msra.mxu0 0
    %2129 = vmatprep.subr.bf16.mxu0 0
    %2130 = vmatpush1.bf16.xpose.msra.mxu0 0
    %2131 = vmatprep.subr.bf16.mxu0 0
    %2132 = vmatpush1.bf16.xpose.msra.mxu0 0
    %2133 = vmatprep.subr.bf16.mxu0 0
    %2134 = vmatpush1.bf16.xpose.msra.mxu0 0
    %2135 = vmatprep.subr.bf16.mxu0 0
    %2136 = vmatpush1.bf16.xpose.msra.mxu0 0
    %2137 = vmatprep.subr.bf16.mxu0 0
    %2138 = vmatpush1.bf16.xpose.msra.mxu0 0
    %2139 = vmatprep.subr.bf16.mxu0 0
    %2140 = vmatpush1.bf16.xpose.msra.mxu0 0
    %2141 = vmatprep.subr.bf16.mxu0 0
    %2142 = vmatpush1.bf16.xpose.msra.mxu0 0
    %2143 = vmatprep.subr.bf16.mxu0 0
    %2144 = vmatpush1.bf16.xpose.msra.mxu0 0
    %2145 = vmatprep.subr.bf16.mxu0 0
    %2146 = vmatpush1.bf16.xpose.msra.mxu0 0
    %2147 = vmatprep.mubr.bf16.mxu0 0
    %2148 = vmatmul.mubr.bf16.gmra.mrb[0].mxu0 %v2110
    %v2149 = vpop.f32.mrb[0].mxu0
    %v2150 = vadd.f32 0.0, %v2149
    %v2151 = vpop.f32.mrb[0].mxu0
    %v2152 = vpop.f32.mrb[0].mxu0
    %v2153 = vpop.f32.mrb[0].mxu0
    %2154 = vdwg.mxu0
    %2155 = vrot.lane.b32.xlu0 %v1440, 104
    %v2156 = vpop.permute.xlu0 %2155
    %2157 = vrot.lane.b32.xlu0 %v1446, 104
    %v2158 = vpop.permute.xlu0 %2157
    %v2160 = vsel %vm262, %v2156, 0
    %v2163 = vsel %vm262, %v2158, 0
    %2165 = vmatprep.subr.bf16.mxu0 0
    %2166 = vmatpush1.bf16.xpose.msra.mxu0 %v2163
    %2167 = vmatprep.subr.bf16.mxu0 0
    %2168 = vmatpush1.bf16.xpose.msra.mxu0 0
    %2169 = vmatprep.subr.bf16.mxu0 0
    %2170 = vmatpush1.bf16.xpose.msra.mxu0 0
    %2171 = vmatprep.subr.bf16.mxu0 0
    %2172 = vmatpush1.bf16.xpose.msra.mxu0 0
    %2173 = vmatprep.subr.bf16.mxu0 0
    %2174 = vmatpush1.bf16.xpose.msra.mxu0 0
    %2175 = vmatprep.subr.bf16.mxu0 0
    %2176 = vmatpush1.bf16.xpose.msra.mxu0 0
    %2177 = vmatprep.subr.bf16.mxu0 0
    %2178 = vmatpush1.bf16.xpose.msra.mxu0 0
    %2179 = vmatprep.subr.bf16.mxu0 0
    %2180 = vmatpush1.bf16.xpose.msra.mxu0 0
    %2181 = vmatprep.subr.bf16.mxu0 0
    %2182 = vmatpush1.bf16.xpose.msra.mxu0 0
    %2183 = vmatprep.subr.bf16.mxu0 0
    %2184 = vmatpush1.bf16.xpose.msra.mxu0 0
    %2185 = vmatprep.subr.bf16.mxu0 0
    %2186 = vmatpush1.bf16.xpose.msra.mxu0 0
    %2187 = vmatprep.subr.bf16.mxu0 0
    %2188 = vmatpush1.bf16.xpose.msra.mxu0 0
    %2189 = vmatprep.subr.bf16.mxu0 0
    %2190 = vmatpush1.bf16.xpose.msra.mxu0 0
    %2191 = vmatprep.subr.bf16.mxu0 0
    %2192 = vmatpush1.bf16.xpose.msra.mxu0 0
    %2193 = vmatprep.subr.bf16.mxu0 0
    %2194 = vmatpush1.bf16.xpose.msra.mxu0 0
    %2195 = vmatprep.subr.bf16.mxu0 0
    %2196 = vmatpush1.bf16.xpose.msra.mxu0 0
    %2197 = vmatprep.mubr.bf16.mxu0 0
    %2198 = vmatmul.mubr.bf16.gmra.mrb[0].mxu0 %v2160
    %v2199 = vpop.f32.mrb[0].mxu0
    %v2200 = vadd.f32 0.0, %v2199
    %v2201 = vpop.f32.mrb[0].mxu0
    %v2202 = vpop.f32.mrb[0].mxu0
    %v2203 = vpop.f32.mrb[0].mxu0
    %2204 = vdwg.mxu0
    %v2205 = vmul.f32 %v2150, 0.35355338
    %v2206 = vmul.f32 %v2200, 0.35355338
    %v2207 = vsel %vm262, %v2205, -inf
    %2208 = vmax.xlane.f32.xlu0 %v2207
    %v2209 = vpop.xlane.xlu0 %2208
    %v2210 = vsel %vm262, %v2206, -inf
    %2211 = vmax.xlane.f32.xlu0 %v2210
    %v2212 = vpop.xlane.xlu0 %2211
    %v2213 = vsub.f32 %v2205, %v2209
    %v2214 = vsub.f32 %v2206, %v2212
    %v2215 = vmul.f32 %v2213, 1.442695
    %v2216 = vpow.pop %v2215
    %v2217 = vmul.f32 %v2214, 1.442695
    %v2218 = vpow.pop %v2217
    %v2219 = vsel %vm262, %v2216, 0.0
    %2220 = vadd.xlane.f32.xlu0 %v2219
    %v2221 = vpop.xlane.xlu0 %2220
    %v2222 = vsel %vm262, %v2218, 0.0
    %2223 = vadd.xlane.f32.xlu0 %v2222
    %v2224 = vpop.xlane.xlu0 %2223
    %v2225 = vrcp.pop %v2221
    %v2226 = vrcp.pop %v2224
    %v2227 = vmul.f32 %v2216, %v2225
    %v2228 = vmul.f32 %v2218, %v2226
    %v2229 = vpack.c.bf16 %v2227, %v2227
    %v2230 = vpack.c.bf16 %v2228, %v2228
    %2231 = vrot.lane.b32.xlu0 %v1445, 72
    %v2232 = vpop.permute.xlu0 %2231
    %v2234 = vsel %vm262, %v2229, 0
    %v2237 = vsel %vm388, %v2232, 0
    %2239 = vmatprep.subr.bf16.mxu0 0
    %2240 = vmatpush1.bf16.msra.mxu0 %v2237
    %2241 = vmatprep.subr.bf16.mxu0 0
    %2242 = vmatpush1.bf16.msra.mxu0 0
    %2243 = vmatprep.subr.bf16.mxu0 0
    %2244 = vmatpush1.bf16.msra.mxu0 0
    %2245 = vmatprep.subr.bf16.mxu0 0
    %2246 = vmatpush1.bf16.msra.mxu0 0
    %2247 = vmatprep.subr.bf16.mxu0 0
    %2248 = vmatpush1.bf16.msra.mxu0 0
    %2249 = vmatprep.subr.bf16.mxu0 0
    %2250 = vmatpush1.bf16.msra.mxu0 0
    %2251 = vmatprep.subr.bf16.mxu0 0
    %2252 = vmatpush1.bf16.msra.mxu0 0
    %2253 = vmatprep.subr.bf16.mxu0 0
    %2254 = vmatpush1.bf16.msra.mxu0 0
    %2255 = vmatprep.subr.bf16.mxu0 0
    %2256 = vmatpush1.bf16.msra.mxu0 0
    %2257 = vmatprep.subr.bf16.mxu0 0
    %2258 = vmatpush1.bf16.msra.mxu0 0
    %2259 = vmatprep.subr.bf16.mxu0 0
    %2260 = vmatpush1.bf16.msra.mxu0 0
    %2261 = vmatprep.subr.bf16.mxu0 0
    %2262 = vmatpush1.bf16.msra.mxu0 0
    %2263 = vmatprep.subr.bf16.mxu0 0
    %2264 = vmatpush1.bf16.msra.mxu0 0
    %2265 = vmatprep.subr.bf16.mxu0 0
    %2266 = vmatpush1.bf16.msra.mxu0 0
    %2267 = vmatprep.subr.bf16.mxu0 0
    %2268 = vmatpush1.bf16.msra.mxu0 0
    %2269 = vmatprep.subr.bf16.mxu0 0
    %2270 = vmatpush1.bf16.msra.mxu0 0
    %2271 = vmatprep.mubr.bf16.mxu0 0
    %2272 = vmatmul.mubr.bf16.gmra.mrb[0].mxu0 %v2234
    %v2273 = vpop.f32.mrb[0].mxu0
    %v2274 = vadd.f32 0.0, %v2273
    %v2275 = vpop.f32.mrb[0].mxu0
    %v2276 = vpop.f32.mrb[0].mxu0
    %v2277 = vpop.f32.mrb[0].mxu0
    %2278 = vdwg.mxu0
    %2279 = vrot.lane.b32.xlu0 %v1446, 72
    %v2280 = vpop.permute.xlu0 %2279
    %v2282 = vsel %vm262, %v2230, 0
    %v2285 = vsel %vm388, %v2280, 0
    %2287 = vmatprep.subr.bf16.mxu0 0
    %2288 = vmatpush1.bf16.msra.mxu0 %v2285
    %2289 = vmatprep.subr.bf16.mxu0 0
    %2290 = vmatpush1.bf16.msra.mxu0 0
    %2291 = vmatprep.subr.bf16.mxu0 0
    %2292 = vmatpush1.bf16.msra.mxu0 0
    %2293 = vmatprep.subr.bf16.mxu0 0
    %2294 = vmatpush1.bf16.msra.mxu0 0
    %2295 = vmatprep.subr.bf16.mxu0 0
    %2296 = vmatpush1.bf16.msra.mxu0 0
    %2297 = vmatprep.subr.bf16.mxu0 0
    %2298 = vmatpush1.bf16.msra.mxu0 0
    %2299 = vmatprep.subr.bf16.mxu0 0
    %2300 = vmatpush1.bf16.msra.mxu0 0
    %2301 = vmatprep.subr.bf16.mxu0 0
    %2302 = vmatpush1.bf16.msra.mxu0 0
    %2303 = vmatprep.subr.bf16.mxu0 0
    %2304 = vmatpush1.bf16.msra.mxu0 0
    %2305 = vmatprep.subr.bf16.mxu0 0
    %2306 = vmatpush1.bf16.msra.mxu0 0
    %2307 = vmatprep.subr.bf16.mxu0 0
    %2308 = vmatpush1.bf16.msra.mxu0 0
    %2309 = vmatprep.subr.bf16.mxu0 0
    %2310 = vmatpush1.bf16.msra.mxu0 0
    %2311 = vmatprep.subr.bf16.mxu0 0
    %2312 = vmatpush1.bf16.msra.mxu0 0
    %2313 = vmatprep.subr.bf16.mxu0 0
    %2314 = vmatpush1.bf16.msra.mxu0 0
    %2315 = vmatprep.subr.bf16.mxu0 0
    %2316 = vmatpush1.bf16.msra.mxu0 0
    %2317 = vmatprep.subr.bf16.mxu0 0
    %2318 = vmatpush1.bf16.msra.mxu0 0
    %2319 = vmatprep.mubr.bf16.mxu0 0
    %2320 = vmatmul.mubr.bf16.gmra.mrb[0].mxu0 %v2282
    %v2321 = vpop.f32.mrb[0].mxu0
    %v2322 = vadd.f32 0.0, %v2321
    %v2323 = vpop.f32.mrb[0].mxu0
    %v2324 = vpop.f32.mrb[0].mxu0
    %v2325 = vpop.f32.mrb[0].mxu0
    %2326 = vdwg.mxu0
    %2329 = vrot.lane.b32.xlu0 %v1830, 8
    %v2330 = vpop.permute.xlu0 %2329
    %2331 = vrot.lane.b32.xlu0 %v1878, 8
    %v2332 = vpop.permute.xlu0 %2331
    %2337 = vrot.lane.b32.xlu0 %v2052, 16
    %v2338 = vpop.permute.xlu0 %2337
    %2339 = vrot.lane.b32.xlu0 %v2100, 16
    %v2340 = vpop.permute.xlu0 %2339
    %2345 = vrot.lane.b32.xlu0 %v2274, 24
    %v2346 = vpop.permute.xlu0 %2345
    %2347 = vrot.lane.b32.xlu0 %v2322, 24
    %v2348 = vpop.permute.xlu0 %2347
    %v2351 = vsel %vm262, %v1608, %v2330
    %v2352 = vsel %vm262, %v1656, %v2332
    %v2353 = vsel %vm1178, %v2351, %v2338
    %v2354 = vsel %vm1178, %v2352, %v2340
    %v2355 = vsel %vm1181, %v2353, %v2346
    %v2356 = vsel %vm1181, %v2354, %v2348
    %v2357 = vpack.c.bf16 %v2356, %v2355
    %v2359 = vlaneseq
    %v2360 = vshrl.u32 %v2359, 7
    %v2361 = vsub.s32 0, %v2360
    %v2362 = vrot.slane %v1308, %v2361
    %v2368 = vunpack.c.l.b16 %v1304
    %v2369 = vunpack.c.l.b16 %v1305
    %v2370 = vunpack.c.l.b16 %v1306
    %v2371 = vunpack.c.l.b16 %v1307
    %v2372 = vpack.c.b16 %v2369, %v2368
    %v2373 = vpack.c.b16 %v2371, %v2370
    %v2377 = vsel %vm140, %v2357, 0
    %2379 = vmatprep.subr.bf16.mxu0 0
    %2380 = vmatpush1.bf16.msra.mxu0 %v2372
    %2381 = vmatprep.subr.bf16.mxu0 0
    %2382 = vmatpush1.bf16.msra.mxu0 %v2373
    %2383 = vmatprep.subr.bf16.mxu0 0
    %2384 = vmatpush1.bf16.msra.mxu0 0
    %2385 = vmatprep.subr.bf16.mxu0 0
    %2386 = vmatpush1.bf16.msra.mxu0 0
    %2387 = vmatprep.subr.bf16.mxu0 0
    %2388 = vmatpush1.bf16.msra.mxu0 0
    %2389 = vmatprep.subr.bf16.mxu0 0
    %2390 = vmatpush1.bf16.msra.mxu0 0
    %2391 = vmatprep.subr.bf16.mxu0 0
    %2392 = vmatpush1.bf16.msra.mxu0 0
    %2393 = vmatprep.subr.bf16.mxu0 0
    %2394 = vmatpush1.bf16.msra.mxu0 0
    %2395 = vmatprep.subr.bf16.mxu0 0
    %2396 = vmatpush1.bf16.msra.mxu0 0
    %2397 = vmatprep.subr.bf16.mxu0 0
    %2398 = vmatpush1.bf16.msra.mxu0 0
    %2399 = vmatprep.subr.bf16.mxu0 0
    %2400 = vmatpush1.bf16.msra.mxu0 0
    %2401 = vmatprep.subr.bf16.mxu0 0
    %2402 = vmatpush1.bf16.msra.mxu0 0
    %2403 = vmatprep.subr.bf16.mxu0 0
    %2404 = vmatpush1.bf16.msra.mxu0 0
    %2405 = vmatprep.subr.bf16.mxu0 0
    %2406 = vmatpush1.bf16.msra.mxu0 0
    %2407 = vmatprep.subr.bf16.mxu0 0
    %2408 = vmatpush1.bf16.msra.mxu0 0
    %2409 = vmatprep.subr.bf16.mxu0 0
    %2410 = vmatpush1.bf16.msra.mxu0 0
    %2411 = vmatprep.mubr.bf16.mxu0 0
    %2412 = vmatmul.mubr.bf16.gmra.mrb[0].mxu0 %v2377
    %v2413 = vpop.f32.mrb[0].mxu0
    %v2414 = vadd.f32 %v2362, %v2413
    %v2415 = vpop.f32.mrb[0].mxu0
    %v2416 = vpop.f32.mrb[0].mxu0
    %v2417 = vadd.f32 %v2362, %v2416
    %v2418 = vpop.f32.mrb[0].mxu0
    %2419 = vdwg.mxu0
    %v2420 = vadd.f32 %v1292, %v2414
    %v2421 = vadd.f32 %v1293, %v2417
    %v2422 = vld [vmem:[%s16] sm:$0x1]
    %v2423 = vld [vmem:[%s17] sm:$0x1]
    %v2424 = vsel %vm140, %v2420, 0.0
    %2425 = vadd.xlane.f32.xlu0 %v2424
    %v2426 = vpop.xlane.xlu0 %2425
    %v2427 = vsel %vm140, %v2421, 0.0
    %2428 = vadd.xlane.f32.xlu0 %v2427
    %v2429 = vpop.xlane.xlu0 %2428
    %v2430 = vmul.f32 %v2426, %v1257
    %v2431 = vmul.f32 %v2429, %v1257
    %v2432 = vsub.f32 %v2420, %v2430
    %v2433 = vsub.f32 %v2421, %v2431
    %v2434 = vmul.f32 %v2432, %v2432
    %v2435 = vmul.f32 %v2433, %v2433
    %v2436 = vsel %vm140, %v2434, 0.0
    %2437 = vadd.xlane.f32.xlu0 %v2436
    %v2438 = vpop.xlane.xlu0 %2437
    %v2439 = vsel %vm140, %v2435, 0.0
    %2440 = vadd.xlane.f32.xlu0 %v2439
    %v2441 = vpop.xlane.xlu0 %2440
    %v2442 = vmul.f32 %v2438, %v1257
    %v2443 = vmul.f32 %v2441, %v1257
    %v2444 = vadd.f32 %v2442, 1e-05
    %v2445 = vadd.f32 %v2443, 1e-05
    %v2446 = vrsqrt.pop %v2444
    %v2447 = vrsqrt.pop %v2445
    %v2448 = vmul.f32 %v2432, %v2446
    %v2449 = vmul.f32 %v2433, %v2447
    %v2451 = vlaneseq
    %v2452 = vshrl.u32 %v2451, 7
    %v2453 = vsub.s32 0, %v2452
    %v2454 = vrot.slane %v2422, %v2453
    %v2456 = vmul.f32 %v2448, %v2454
    %v2457 = vmul.f32 %v2449, %v2454
    %v2459 = vlaneseq
    %v2460 = vshrl.u32 %v2459, 7
    %v2461 = vsub.s32 0, %v2460
    %v2462 = vrot.slane %v2423, %v2461
    %v2464 = vadd.f32 %v2456, %v2462
    %v2465 = vadd.f32 %v2457, %v2462
    %v2466 = vld [vmem:[%s18] sm:$0xf]
    %v2467 = vld [vmem:[%s18 + $0x4] sm:$0xf]
    %v2468 = vld [vmem:[%s18 + $0x8] sm:$0xf]
    %v2469 = vld [vmem:[%s18 + $0xc] sm:$0xf]
    %v2470 = vld [vmem:[%s19] sm:$0x1]
    %v2471 = vld [vmem:[%s20] sm:$0xf]
    %v2472 = vld [vmem:[%s20 + $0x4] sm:$0xf]
    %v2473 = vld [vmem:[%s20 + $0x8] sm:$0xf]
    %v2474 = vld [vmem:[%s20 + $0xc] sm:$0xf]
    %v2475 = vld [vmem:[%s20 + $0x10] sm:$0xf]
    %v2476 = vld [vmem:[%s20 + $0x14] sm:$0xf]
    %v2477 = vld [vmem:[%s20 + $0x18] sm:$0xf]
    %v2478 = vld [vmem:[%s20 + $0x1c] sm:$0xf]
    %v2479 = vld [vmem:[%s21] sm:$0x1]
    %v2480 = vpack.c.bf16 %v2465, %v2464
    %v2482 = vlaneseq
    %v2483 = vshrl.u32 %v2482, 7
    %v2484 = vsub.s32 0, %v2483
    %v2485 = vrot.slane %v2470, %v2484
    %v2491 = vunpack.c.l.b16 %v2466
    %v2492 = vunpack.c.l.b16 %v2467
    %v2493 = vunpack.c.l.b16 %v2468
    %v2494 = vunpack.c.l.b16 %v2469
    %v2495 = vpack.c.b16 %v2492, %v2491
    %v2496 = vpack.c.b16 %v2494, %v2493
    %v2500 = vsel %vm140, %v2480, 0
    %2502 = vmatprep.subr.bf16.mxu0 0
    %2503 = vmatpush1.bf16.msra.mxu0 %v2495
    %2504 = vmatprep.subr.bf16.mxu0 0
    %2505 = vmatpush1.bf16.msra.mxu0 %v2496
    %2506 = vmatprep.subr.bf16.mxu0 0
    %2507 = vmatpush1.bf16.msra.mxu0 0
    %2508 = vmatprep.subr.bf16.mxu0 0
    %2509 = vmatpush1.bf16.msra.mxu0 0
    %2510 = vmatprep.subr.bf16.mxu0 0
    %2511 = vmatpush1.bf16.msra.mxu0 0
    %2512 = vmatprep.subr.bf16.mxu0 0
    %2513 = vmatpush1.bf16.msra.mxu0 0
    %2514 = vmatprep.subr.bf16.mxu0 0
    %2515 = vmatpush1.bf16.msra.mxu0 0
    %2516 = vmatprep.subr.bf16.mxu0 0
    %2517 = vmatpush1.bf16.msra.mxu0 0
    %2518 = vmatprep.subr.bf16.mxu0 0
    %2519 = vmatpush1.bf16.msra.mxu0 0
    %2520 = vmatprep.subr.bf16.mxu0 0
    %2521 = vmatpush1.bf16.msra.mxu0 0
    %2522 = vmatprep.subr.bf16.mxu0 0
    %2523 = vmatpush1.bf16.msra.mxu0 0
    %2524 = vmatprep.subr.bf16.mxu0 0
    %2525 = vmatpush1.bf16.msra.mxu0 0
    %2526 = vmatprep.subr.bf16.mxu0 0
    %2527 = vmatpush1.bf16.msra.mxu0 0
    %2528 = vmatprep.subr.bf16.mxu0 0
    %2529 = vmatpush1.bf16.msra.mxu0 0
    %2530 = vmatprep.subr.bf16.mxu0 0
    %2531 = vmatpush1.bf16.msra.mxu0 0
    %2532 = vmatprep.subr.bf16.mxu0 0
    %2533 = vmatpush1.bf16.msra.mxu0 0
    %2534 = vmatprep.mubr.bf16.mxu0 0
    %2535 = vmatmul.mubr.bf16.gmra.mrb[0].mxu0 %v2500
    %v2536 = vpop.f32.mrb[0].mxu0
    %v2537 = vadd.f32 %v2485, %v2536
    %v2538 = vpop.f32.mrb[0].mxu0
    %v2539 = vpop.f32.mrb[0].mxu0
    %v2540 = vadd.f32 %v2485, %v2539
    %v2541 = vpop.f32.mrb[0].mxu0
    %2542 = vdwg.mxu0
    %v2543 = vmax.f32 %v2537, 0.0
    %v2544 = vmax.f32 %v2540, 0.0
    %v2545 = vpack.c.bf16 %v2544, %v2543
    %v2547 = vlaneseq
    %v2548 = vshrl.u32 %v2547, 7
    %v2549 = vsub.s32 0, %v2548
    %v2550 = vrot.slane %v2479, %v2549
    %v2560 = vunpack.c.l.b16 %v2471
    %v2561 = vunpack.c.l.b16 %v2472
    %v2562 = vunpack.c.l.b16 %v2473
    %v2563 = vunpack.c.l.b16 %v2474
    %v2564 = vunpack.c.l.b16 %v2475
    %v2565 = vunpack.c.l.b16 %v2476
    %v2566 = vunpack.c.l.b16 %v2477
    %v2567 = vunpack.c.l.b16 %v2478
    %v2568 = vpack.c.b16 %v2561, %v2560
    %v2569 = vpack.c.b16 %v2563, %v2562
    %v2570 = vpack.c.b16 %v2565, %v2564
    %v2571 = vpack.c.b16 %v2567, %v2566
    %vm2576 = vcmask 523264
    %v2578 = vsel %vm2576, %v2545, 0
    %2580 = vmatprep.subr.bf16.mxu0 0
    %2581 = vmatpush1.bf16.msra.mxu0 %v2568
    %2582 = vmatprep.subr.bf16.mxu0 0
    %2583 = vmatpush1.bf16.msra.mxu0 %v2569
    %2584 = vmatprep.subr.bf16.mxu0 0
    %2585 = vmatpush1.bf16.msra.mxu0 %v2570
    %2586 = vmatprep.subr.bf16.mxu0 0
    %2587 = vmatpush1.bf16.msra.mxu0 %v2571
    %2588 = vmatprep.subr.bf16.mxu0 0
    %2589 = vmatpush1.bf16.msra.mxu0 0
    %2590 = vmatprep.subr.bf16.mxu0 0
    %2591 = vmatpush1.bf16.msra.mxu0 0
    %2592 = vmatprep.subr.bf16.mxu0 0
    %2593 = vmatpush1.bf16.msra.mxu0 0
    %2594 = vmatprep.subr.bf16.mxu0 0
    %2595 = vmatpush1.bf16.msra.mxu0 0
    %2596 = vmatprep.subr.bf16.mxu0 0
    %2597 = vmatpush1.bf16.msra.mxu0 0
    %2598 = vmatprep.subr.bf16.mxu0 0
    %2599 = vmatpush1.bf16.msra.mxu0 0
    %2600 = vmatprep.subr.bf16.mxu0 0
    %2601 = vmatpush1.bf16.msra.mxu0 0
    %2602 = vmatprep.subr.bf16.mxu0 0
    %2603 = vmatpush1.bf16.msra.mxu0 0
    %2604 = vmatprep.subr.bf16.mxu0 0
    %2605 = vmatpush1.bf16.msra.mxu0 0
    %2606 = vmatprep.subr.bf16.mxu0 0
    %2607 = vmatpush1.bf16.msra.mxu0 0
    %2608 = vmatprep.subr.bf16.mxu0 0
    %2609 = vmatpush1.bf16.msra.mxu0 0
    %2610 = vmatprep.subr.bf16.mxu0 0
    %2611 = vmatpush1.bf16.msra.mxu0 0
    %2612 = vmatprep.mubr.bf16.mxu0 0
    %2613 = vmatmul.mubr.bf16.gmra.mrb[0].mxu0 %v2578
    %v2614 = vpop.f32.mrb[0].mxu0
    %v2615 = vadd.f32 %v2550, %v2614
    %v2616 = vpop.f32.mrb[0].mxu0
    %v2617 = vpop.f32.mrb[0].mxu0
    %v2618 = vadd.f32 %v2550, %v2617
    %v2619 = vpop.f32.mrb[0].mxu0
    %2620 = vdwg.mxu0
    %v2621 = vadd.f32 %v2464, %v2615
    %v2622 = vadd.f32 %v2465, %v2618
    %v2623 = vld [vmem:[#allocation2] sm:$0x1]
    %v2624 = vld [vmem:[#allocation4] sm:$0x1]
    %v2625 = vsel %vm140, %v2621, 0.0
    %2626 = vadd.xlane.f32.xlu0 %v2625
    %v2627 = vpop.xlane.xlu0 %2626
    %v2628 = vsel %vm140, %v2622, 0.0
    %2629 = vadd.xlane.f32.xlu0 %v2628
    %v2630 = vpop.xlane.xlu0 %2629
    %v2631 = vmul.f32 %v2627, %v1257
    %v2632 = vmul.f32 %v2630, %v1257
    %v2633 = vsub.f32 %v2621, %v2631
    %v2634 = vsub.f32 %v2622, %v2632
    %v2635 = vmul.f32 %v2633, %v2633
    %v2636 = vmul.f32 %v2634, %v2634
    %v2637 = vsel %vm140, %v2635, 0.0
    %2638 = vadd.xlane.f32.xlu0 %v2637
    %v2639 = vpop.xlane.xlu0 %2638
    %v2640 = vsel %vm140, %v2636, 0.0
    %2641 = vadd.xlane.f32.xlu0 %v2640
    %v2642 = vpop.xlane.xlu0 %2641
    %v2643 = vmul.f32 %v2639, %v1257
    %v2644 = vmul.f32 %v2642, %v1257
    %v2645 = vadd.f32 %v2643, 1e-05
    %v2646 = vadd.f32 %v2644, 1e-05
    %v2647 = vrsqrt.pop %v2645
    %v2648 = vrsqrt.pop %v2646
    %v2649 = vmul.f32 %v2633, %v2647
    %v2650 = vmul.f32 %v2634, %v2648
    %v2652 = vlaneseq
    %v2653 = vshrl.u32 %v2652, 7
    %v2654 = vsub.s32 0, %v2653
    %v2655 = vrot.slane %v2623, %v2654
    %v2657 = vmul.f32 %v2649, %v2655
    %v2658 = vmul.f32 %v2650, %v2655
    %v2660 = vlaneseq
    %v2661 = vshrl.u32 %v2660, 7
    %v2662 = vsub.s32 0, %v2661
    %v2663 = vrot.slane %v2624, %v2662
    %v2665 = vadd.f32 %v2657, %v2663
    %v2666 = vadd.f32 %v2658, %v2663
    %2667 = vst.msk [vmem:[%s24] sm:$0xff] %vm140, %v2665
    %2668 = vst.msk [vmem:[%s24 + $0x8] sm:$0xff] %vm140, %v2666
    // Predicated region
    $region106: #{transformer_block_forward.4} parent=1 // pred_check
      _
    $region107: #{transformer_block_forward.4} parent=1 // pred_check_branch
      %2670 = sbr.rel (0) target = $region109
    $region108: #{transformer_block_forward.4} parent=1 // pred_region
      _
    $region109: #{transformer_block_forward.4} parent=1 // pred_fallthru
      _
    // Predicated region
    $region110: #{transformer_block_forward.4} parent=1 // pred_check
      _
    $region111: #{transformer_block_forward.4} parent=1 // pred_check_branch
      %2672 = sbr.rel (0) target = $region113
    $region112: #{transformer_block_forward.4} parent=1 // pred_region
      _
    $region113: #{transformer_block_forward.4} parent=1 // pred_fallthru
      _
    %2673 = vsyncpa [#allocation3], 1
    %2674 = vsyncpa [#allocation5], 1

</llo_original>
